<compile_context>
chip_gen: v7x
topology: tpu7x:2x2x1
jax: 0.10.0
libtpu: 0.0.40
codegen_flags: <defaults>
</compile_context>

<pallas_src>
import functools

import jax
import jax.numpy as jnp
from jax import lax
from jax.experimental import pallas as pl
from jax.experimental.pallas import tpu as pltpu


def _attention_kernel(*refs, heads, dim_head, vis, masked):
    """One batch element per grid step; all heads unrolled statically inside.

    refs (in order):
      x_ref    : (1, Np, D)          input tokens (zero-padded rows)
      g_ref    : (1, D)     f32      LayerNorm gamma
      bt_ref   : (1, D)     f32      LayerNorm beta
      wqkv_ref : (D, 3*inner) bf16   fused [Wq*scale | Wk | Wv]   (VMEM resident)
      wo_ref   : (inner, D) bf16     output projection            (VMEM resident)
      bo_ref   : (1, D)     f32      output projection bias
      kb_ref   : (1, Np)    f32      additive key mask row (only when masked)
      out_ref  : (1, Np, D)          projected output
      attn_ref : (1, H, Np, Np)      attention weights (only when vis)
    """
    idx = 0
    x_ref = refs[idx]; idx += 1
    g_ref = refs[idx]; idx += 1
    bt_ref = refs[idx]; idx += 1
    wqkv_ref = refs[idx]; idx += 1
    wo_ref = refs[idx]; idx += 1
    bo_ref = refs[idx]; idx += 1
    kb_ref = None
    if masked:
        kb_ref = refs[idx]; idx += 1
    out_ref = refs[idx]; idx += 1
    attn_ref = refs[idx] if vis else None

    inner = heads * dim_head

    # --- LayerNorm in f32 (VPU), cast once to bf16 for the MXU ---
    x = x_ref[0].astype(jnp.float32)                               # (Np, D)
    mean = jnp.mean(x, axis=-1, keepdims=True)
    xc = x - mean
    var = jnp.mean(xc * xc, axis=-1, keepdims=True)                # biased, as nn.LayerNorm
    xn = (xc * lax.rsqrt(var + 1e-5) * g_ref[...] + bt_ref[...]).astype(jnp.bfloat16)

    # --- Single fused QKV projection for all heads (scale pre-folded into Q columns) ---
    qkv = jnp.dot(xn, wqkv_ref[...], preferred_element_type=jnp.float32)   # (Np, 3*inner) f32

    head_outs = []
    for h in range(heads):                                         # static unroll
        q = qkv[:, h * dim_head:(h + 1) * dim_head].astype(jnp.bfloat16)
        k = qkv[:, inner + h * dim_head:inner + (h + 1) * dim_head].astype(jnp.bfloat16)
        v = qkv[:, 2 * inner + h * dim_head:2 * inner + (h + 1) * dim_head].astype(jnp.bfloat16)

        # Q . K^T  (bf16 operands, f32 accumulation on the MXU)
        dots = lax.dot_general(q, k, (((1,), (1,)), ((), ())),
                               preferred_element_type=jnp.float32)          # (Np, Np)
        if masked:
            dots = dots + kb_ref[...]                              # additive -1e30 key bias

        m = jnp.max(dots, axis=-1, keepdims=True)
        p = jnp.exp(dots - m)
        denom = jnp.sum(p, axis=-1, keepdims=True)
        # NOTE: approx reciprocal + bf16 weights => stored rows sum to 1 only to ~3 decimals
        # (fine for rollout visualization).
        attn_bf = (p * pl.reciprocal(denom, approx=True)).astype(jnp.bfloat16)

        if vis:
            attn_ref[0, h] = attn_bf.astype(attn_ref.dtype)

        head_outs.append(
            jnp.dot(attn_bf, v, preferred_element_type=jnp.float32).astype(jnp.bfloat16))

    # --- One full-depth output projection: (Np, inner) @ (inner, D), head-major concat ---
    concat = jnp.concatenate(head_outs, axis=-1)                   # (Np, inner) bf16
    proj = jnp.dot(concat, wo_ref[...], preferred_element_type=jnp.float32)
    out_ref[0] = (proj + bo_ref[...]).astype(out_ref.dtype)


def attention_forward(x, gamma, beta, w_qkv, w_out, b_out, *, heads, dim_head,
                      vis=True, weights_dtype=jnp.bfloat16):
    """x: (B, N, D).  Returns (out (B, N, D), attn_weights (B, H, N, N) or None)."""
    B, N, D = x.shape
    inner = heads * dim_head
    scale = float(dim_head) ** -0.5

    # Pad the token axis so the attention-weight last dim is lane-dense (multiple of 128).
    Np = ((N + 127) // 128) * 128
    x_p = jnp.pad(x, ((0, 0), (0, Np - N), (0, 0))) if Np != N else x
    masked = Np != N

    # Fold the softmax scale into the Q columns; keep the fused [Wq|Wk|Wv] layout; cast bf16.
    wq, wk, wv = jnp.split(w_qkv, 3, axis=-1)                      # each (D, inner)
    w_qkv_s = jnp.concatenate([wq * scale, wk, wv], axis=-1).astype(jnp.bfloat16)  # (D, 3*inner)
    w_out_b = w_out.astype(jnp.bfloat16)                           # (inner, D)

    gamma2 = gamma.reshape(1, D).astype(jnp.float32)
    beta2 = beta.reshape(1, D).astype(jnp.float32)
    bo2 = b_out.reshape(1, D).astype(jnp.float32)

    inputs = [x_p, gamma2, beta2, w_qkv_s, w_out_b, bo2]
    in_specs = [
        pl.BlockSpec((1, Np, D), lambda b: (b, 0, 0)),             # x (per batch element)
        pl.BlockSpec((1, D), lambda b: (0, 0)),                    # gamma
        pl.BlockSpec((1, D), lambda b: (0, 0)),                    # beta
        pl.BlockSpec((D, 3 * inner), lambda b: (0, 0)),            # fused QKV weight (resident)
        pl.BlockSpec((inner, D), lambda b: (0, 0)),                # output proj weight (resident)
        pl.BlockSpec((1, D), lambda b: (0, 0)),                    # output proj bias
    ]
    if masked:
        key_bias = jnp.where(jnp.arange(Np) < N, 0.0, -1e30).astype(jnp.float32).reshape(1, Np)
        inputs.append(key_bias)
        in_specs.append(pl.BlockSpec((1, Np), lambda b: (0, 0)))

    out_shapes = [jax.ShapeDtypeStruct((B, Np, D), x.dtype)]
    out_specs = [pl.BlockSpec((1, Np, D), lambda b: (b, 0, 0))]
    if vis:
        out_shapes.append(jax.ShapeDtypeStruct((B, heads, Np, Np), weights_dtype))
        out_specs.append(pl.BlockSpec((1, heads, Np, Np), lambda b: (b, 0, 0, 0)))

    kernel = functools.partial(_attention_kernel, heads=heads, dim_head=dim_head,
                               vis=vis, masked=masked)

    grid_spec = pltpu.PrefetchScalarGridSpec(
        num_scalar_prefetch=0,
        grid=(B,),
        in_specs=in_specs,
        out_specs=out_specs,
        scratch_shapes=[],
    )

    # --- VMEM budget: resident weights + double-buffered I/O blocks + in-kernel temporaries ---
    isz = jnp.dtype(x.dtype).itemsize
    wsz = jnp.dtype(weights_dtype).itemsize
    resident = (D * 3 * inner + inner * D) * 2                     # bf16 weights, single copy
    step = 2 * (Np * D * isz)                                      # x block (double-buffered)
    step += 2 * (Np * D * isz)                                     # out block (double-buffered)
    if vis:
        step += 2 * (heads * Np * Np * wsz)                        # attn block (double-buffered)
    temps = (Np * 3 * inner * 4                                    # qkv f32
             + Np * D * 2                                          # xn bf16
             + 2 * Np * inner * 2                                  # head outputs + concat bf16
             + 4 * Np * Np * 4)                                    # softmax temps + slack
    needed = resident + step + temps + (2 << 20)
    try:
        cap = int(pltpu.get_tpu_info().vmem_capacity_bytes)
    except Exception:
        cap = 64 << 20                                             # conservative (v7x-sized)
    vmem_limit = int(min(max(needed, 32 << 20), int(0.85 * cap)))

    results = pl.pallas_call(
        kernel,
        out_shape=out_shapes,
        grid_spec=grid_spec,
        compiler_params=pltpu.CompilerParams(
            dimension_semantics=("parallel",),
            vmem_limit_bytes=vmem_limit),
    )(*inputs)

    if vis:
        out_p, weights_p = results
        return out_p[:, :N, :], weights_p[:, :, :N, :N]
    (out_p,) = results
    return out_p[:, :N, :], None


def _reference(x, gamma, beta, w_qkv, w_out, b_out, *, heads, dim_head):
    """Pure-JAX reference mirroring the PyTorch forward (for sanity check)."""
    B, N, D = x.shape
    inner = heads * dim_head
    scale = float(dim_head) ** -0.5
    xf = x.astype(jnp.float32)
    mean = jnp.mean(xf, axis=-1, keepdims=True)
    var = jnp.mean((xf - mean) ** 2, axis=-1, keepdims=True)
    xn = (xf - mean) / jnp.sqrt(var + 1e-5) * gamma + beta
    qkv = xn @ w_qkv
    q, k, v = jnp.split(qkv, 3, axis=-1)
    def split_heads(t):
        return t.reshape(B, N, heads, dim_head).transpose(0, 2, 1, 3)
    q, k, v = map(split_heads, (q, k, v))
    dots = jnp.einsum("bhnd,bhmd->bhnm", q, k) * scale
    attn = jax.nn.softmax(dots, axis=-1)
    out = jnp.einsum("bhnm,bhmd->bhnd", attn, v)
    out = out.transpose(0, 2, 1, 3).reshape(B, N, inner)
    out = out @ w_out + b_out
    return out, attn


if __name__ == "__main__":
    # Small ViT-ish shapes: batch=2, seq=8, dim=32, heads=4, dim_head=16.
    B, N, D = 2, 8, 32
    HEADS, DIM_HEAD = 4, 16
    INNER = HEADS * DIM_HEAD

    key = jax.random.PRNGKey(0)
    k_x, k_qkv, k_out = jax.random.split(key, 3)

    x = jax.random.normal(k_x, (B, N, D), dtype=jnp.float32)

    # Deterministic parameter init (synthetic; shapes per nn.Module __init__).
    gamma = jnp.ones((D,), dtype=jnp.float32)          # LayerNorm weight
    beta = jnp.zeros((D,), dtype=jnp.float32)          # LayerNorm bias
    w_qkv = 0.02 * jax.random.normal(k_qkv, (D, 3 * INNER), dtype=jnp.float32)
    w_out = 0.02 * jax.random.normal(k_out, (INNER, D), dtype=jnp.float32)
    b_out = jnp.zeros((D,), dtype=jnp.float32)

    # TODO(synk): dropout is identity here (p=0.0 / eval mode); vis is treated as True.
    out, weights = attention_forward(x, gamma, beta, w_qkv, w_out, b_out,
                                     heads=HEADS, dim_head=DIM_HEAD, vis=True)
    out = jax.block_until_ready(out)
    weights = jax.block_until_ready(weights)

    out_ref, w_ref = _reference(x, gamma, beta, w_qkv, w_out, b_out,
                                heads=HEADS, dim_head=DIM_HEAD)
    assert out.shape == (B, N, D) and weights.shape == (B, HEADS, N, N)
    # bf16 MXU operands + bf16 attention-weight output -> looser tolerance than pure f32.
    assert jnp.allclose(out.astype(jnp.float32), out_ref, atol=2e-2, rtol=2e-2)
    assert jnp.allclose(weights.astype(jnp.float32), w_ref, atol=2e-2, rtol=2e-2)

    print("KERNEL_OK")
</pallas_src>

<mosaic_0001>
module attributes {stable_mosaic.version = 11 : i64} {
  func.func @_attention_kernel(%arg0: i32, %arg1: memref<1x128x32xf32, #tpu.memory_space<vmem>>, %arg2: memref<1x32xf32, #tpu.memory_space<vmem>>, %arg3: memref<1x32xf32, #tpu.memory_space<vmem>>, %arg4: memref<32x192xbf16, #tpu.memory_space<vmem>>, %arg5: memref<64x32xbf16, #tpu.memory_space<vmem>>, %arg6: memref<1x32xf32, #tpu.memory_space<vmem>>, %arg7: memref<1x128xf32, #tpu.memory_space<vmem>>, %arg8: memref<1x128x32xf32, #tpu.memory_space<vmem>>, %arg9: memref<1x4x128x128xbf16, #tpu.memory_space<vmem>>) attributes {dimension_semantics = [#tpu.dimension_semantics<parallel>], iteration_bounds = array<i64: 2>, scalar_prefetch = 0 : i64, scratch_operands = 0 : i64, tpu.core_type = #tpu.core_type<tc>, window_params = [{transform_indices = @transform_0, window_bounds = array<i64: 1, 128, 32>}, {pipeline_mode = #tpu.pipeline_mode<synchronous>, transform_indices = @transform_1, window_bounds = array<i64: 1, 32>}, {pipeline_mode = #tpu.pipeline_mode<synchronous>, transform_indices = @transform_2, window_bounds = array<i64: 1, 32>}, {pipeline_mode = #tpu.pipeline_mode<synchronous>, transform_indices = @transform_3, window_bounds = array<i64: 32, 192>}, {pipeline_mode = #tpu.pipeline_mode<synchronous>, transform_indices = @transform_4, window_bounds = array<i64: 64, 32>}, {pipeline_mode = #tpu.pipeline_mode<synchronous>, transform_indices = @transform_5, window_bounds = array<i64: 1, 32>}, {pipeline_mode = #tpu.pipeline_mode<synchronous>, transform_indices = @transform_6, window_bounds = array<i64: 1, 128>}, {transform_indices = @transform_7, window_bounds = array<i64: 1, 128, 32>}, {transform_indices = @transform_8, window_bounds = array<i64: 1, 4, 128, 128>}]} {
    %c0 = arith.constant 0 : index
    %c0_0 = arith.constant 0 : index
    %c0_1 = arith.constant 0 : index
    %0 = vector.load %arg1[%c0, %c0_0, %c0_1] : memref<1x128x32xf32, #tpu.memory_space<vmem>>, vector<1x128x32xf32>
    %1 = vector.shape_cast %0 : vector<1x128x32xf32> to vector<128x32xf32>
    %cst = arith.constant dense<0.000000e+00> : vector<128xf32>
    %2 = vector.multi_reduction <add>, %1, %cst [1] : vector<128x32xf32> to vector<128xf32>
    %3 = vector.shape_cast %2 : vector<128xf32> to vector<128x1xf32>
    %cst_2 = arith.constant 3.200000e+01 : f32
    %4 = vector.broadcast %cst_2 : f32 to vector<128x1xf32>
    %5 = arith.divf %3, %4 : vector<128x1xf32>
    %6 = vector.broadcast %5 : vector<128x1xf32> to vector<128x32xf32>
    %7 = arith.subf %1, %6 : vector<128x32xf32>
    %8 = arith.mulf %7, %7 : vector<128x32xf32>
    %cst_3 = arith.constant dense<0.000000e+00> : vector<128xf32>
    %9 = vector.multi_reduction <add>, %8, %cst_3 [1] : vector<128x32xf32> to vector<128xf32>
    %10 = vector.shape_cast %9 : vector<128xf32> to vector<128x1xf32>
    %cst_4 = arith.constant 3.200000e+01 : f32
    %11 = vector.broadcast %cst_4 : f32 to vector<128x1xf32>
    %12 = arith.divf %10, %11 : vector<128x1xf32>
    %cst_5 = arith.constant 9.99999974E-6 : f32
    %13 = vector.broadcast %cst_5 : f32 to vector<128x1xf32>
    %14 = arith.addf %12, %13 : vector<128x1xf32>
    %15 = math.rsqrt %14 : vector<128x1xf32>
    %16 = vector.broadcast %15 : vector<128x1xf32> to vector<128x32xf32>
    %17 = arith.mulf %7, %16 : vector<128x32xf32>
    %c0_6 = arith.constant 0 : index
    %c0_7 = arith.constant 0 : index
    %18 = vector.load %arg2[%c0_6, %c0_7] : memref<1x32xf32, #tpu.memory_space<vmem>>, vector<1x32xf32>
    %19 = vector.broadcast %18 : vector<1x32xf32> to vector<128x32xf32>
    %20 = arith.mulf %17, %19 : vector<128x32xf32>
    %c0_8 = arith.constant 0 : index
    %c0_9 = arith.constant 0 : index
    %21 = vector.load %arg3[%c0_8, %c0_9] : memref<1x32xf32, #tpu.memory_space<vmem>>, vector<1x32xf32>
    %22 = vector.broadcast %21 : vector<1x32xf32> to vector<128x32xf32>
    %23 = arith.addf %20, %22 : vector<128x32xf32>
    %24 = arith.truncf %23 : vector<128x32xf32> to vector<128x32xbf16>
    %c0_10 = arith.constant 0 : index
    %c0_11 = arith.constant 0 : index
    %25 = vector.load %arg4[%c0_10, %c0_11] : memref<32x192xbf16, #tpu.memory_space<vmem>>, vector<32x192xbf16>
    %cst_12 = arith.constant dense<0.000000e+00> : vector<128x192xf32>
    %26 = tpu.matmul %24, %25, %cst_12 {dimension_numbers = #tpu.dot_dimension_numbers<[1], [0], [0], [1], [0, 0, 1, 1], [], []>} : vector<128x32xbf16>, vector<32x192xbf16>, vector<128x192xf32> -> vector<128x192xf32>
    %27 = vector.extract_strided_slice %26 {offsets = [0, 0], sizes = [128, 16], strides = [1, 1]} : vector<128x192xf32> to vector<128x16xf32>
    %28 = arith.truncf %27 : vector<128x16xf32> to vector<128x16xbf16>
    %29 = vector.extract_strided_slice %26 {offsets = [0, 64], sizes = [128, 16], strides = [1, 1]} : vector<128x192xf32> to vector<128x16xf32>
    %30 = arith.truncf %29 : vector<128x16xf32> to vector<128x16xbf16>
    %31 = vector.extract_strided_slice %26 {offsets = [0, 128], sizes = [128, 16], strides = [1, 1]} : vector<128x192xf32> to vector<128x16xf32>
    %32 = arith.truncf %31 : vector<128x16xf32> to vector<128x16xbf16>
    %cst_13 = arith.constant dense<0.000000e+00> : vector<128x128xf32>
    %33 = tpu.matmul %28, %30, %cst_13 {dimension_numbers = #tpu.dot_dimension_numbers<[1], [1], [0], [0], [0, 0, 1, 0], [], []>} : vector<128x16xbf16>, vector<128x16xbf16>, vector<128x128xf32> -> vector<128x128xf32>
    %c0_14 = arith.constant 0 : index
    %c0_15 = arith.constant 0 : index
    %34 = vector.load %arg7[%c0_14, %c0_15] : memref<1x128xf32, #tpu.memory_space<vmem>>, vector<1x128xf32>
    %35 = vector.broadcast %34 : vector<1x128xf32> to vector<128x128xf32>
    %36 = arith.addf %33, %35 : vector<128x128xf32>
    %cst_16 = arith.constant dense<0xFF800000> : vector<128xf32>
    %37 = vector.multi_reduction <maximumf>, %36, %cst_16 [1] : vector<128x128xf32> to vector<128xf32>
    %38 = vector.shape_cast %37 : vector<128xf32> to vector<128x1xf32>
    %39 = vector.broadcast %38 : vector<128x1xf32> to vector<128x128xf32>
    %40 = arith.subf %36, %39 : vector<128x128xf32>
    %41 = math.exp %40 : vector<128x128xf32>
    %cst_17 = arith.constant dense<0.000000e+00> : vector<128xf32>
    %42 = vector.multi_reduction <add>, %41, %cst_17 [1] : vector<128x128xf32> to vector<128xf32>
    %43 = vector.shape_cast %42 : vector<128xf32> to vector<128x1xf32>
    %44 = tpu.reciprocal %43 {approx = true} : vector<128x1xf32> -> vector<128x1xf32>
    %45 = vector.broadcast %44 : vector<128x1xf32> to vector<128x128xf32>
    %46 = arith.mulf %41, %45 : vector<128x128xf32>
    %47 = arith.truncf %46 : vector<128x128xf32> to vector<128x128xbf16>
    %c0_18 = arith.constant 0 : index
    %c0_19 = arith.constant 0 : index
    %c0_20 = arith.constant 0 : index
    %c0_21 = arith.constant 0 : index
    %48 = vector.load %arg9[%c0_18, %c0_19, %c0_20, %c0_21] : memref<1x4x128x128xbf16, #tpu.memory_space<vmem>>, vector<1x1x128x128xbf16>
    %49 = vector.shape_cast %48 : vector<1x1x128x128xbf16> to vector<128x128xbf16>
    %50 = vector.shape_cast %47 : vector<128x128xbf16> to vector<1x1x128x128xbf16>
    tpu.vector_store %arg9[%c0_18, %c0_19, %c0_20, %c0_21], %50 {strides = array<i32>} : memref<1x4x128x128xbf16, #tpu.memory_space<vmem>>, vector<1x1x128x128xbf16>,
    %cst_22 = arith.constant dense<0.000000e+00> : vector<128x16xf32>
    %51 = tpu.matmul %47, %32, %cst_22 {dimension_numbers = #tpu.dot_dimension_numbers<[1], [0], [0], [1], [0, 0, 1, 1], [], []>} : vector<128x128xbf16>, vector<128x16xbf16>, vector<128x16xf32> -> vector<128x16xf32>
    %52 = arith.truncf %51 : vector<128x16xf32> to vector<128x16xbf16>
    %53 = vector.extract_strided_slice %26 {offsets = [0, 16], sizes = [128, 16], strides = [1, 1]} : vector<128x192xf32> to vector<128x16xf32>
    %54 = arith.truncf %53 : vector<128x16xf32> to vector<128x16xbf16>
    %55 = vector.extract_strided_slice %26 {offsets = [0, 80], sizes = [128, 16], strides = [1, 1]} : vector<128x192xf32> to vector<128x16xf32>
    %56 = arith.truncf %55 : vector<128x16xf32> to vector<128x16xbf16>
    %57 = vector.extract_strided_slice %26 {offsets = [0, 144], sizes = [128, 16], strides = [1, 1]} : vector<128x192xf32> to vector<128x16xf32>
    %58 = arith.truncf %57 : vector<128x16xf32> to vector<128x16xbf16>
    %cst_23 = arith.constant dense<0.000000e+00> : vector<128x128xf32>
    %59 = tpu.matmul %54, %56, %cst_23 {dimension_numbers = #tpu.dot_dimension_numbers<[1], [1], [0], [0], [0, 0, 1, 0], [], []>} : vector<128x16xbf16>, vector<128x16xbf16>, vector<128x128xf32> -> vector<128x128xf32>
    %c0_24 = arith.constant 0 : index
    %c0_25 = arith.constant 0 : index
    %60 = vector.load %arg7[%c0_24, %c0_25] : memref<1x128xf32, #tpu.memory_space<vmem>>, vector<1x128xf32>
    %61 = vector.broadcast %60 : vector<1x128xf32> to vector<128x128xf32>
    %62 = arith.addf %59, %61 : vector<128x128xf32>
    %cst_26 = arith.constant dense<0xFF800000> : vector<128xf32>
    %63 = vector.multi_reduction <maximumf>, %62, %cst_26 [1] : vector<128x128xf32> to vector<128xf32>
    %64 = vector.shape_cast %63 : vector<128xf32> to vector<128x1xf32>
    %65 = vector.broadcast %64 : vector<128x1xf32> to vector<128x128xf32>
    %66 = arith.subf %62, %65 : vector<128x128xf32>
    %67 = math.exp %66 : vector<128x128xf32>
    %cst_27 = arith.constant dense<0.000000e+00> : vector<128xf32>
    %68 = vector.multi_reduction <add>, %67, %cst_27 [1] : vector<128x128xf32> to vector<128xf32>
    %69 = vector.shape_cast %68 : vector<128xf32> to vector<128x1xf32>
    %70 = tpu.reciprocal %69 {approx = true} : vector<128x1xf32> -> vector<128x1xf32>
    %71 = vector.broadcast %70 : vector<128x1xf32> to vector<128x128xf32>
    %72 = arith.mulf %67, %71 : vector<128x128xf32>
    %73 = arith.truncf %72 : vector<128x128xf32> to vector<128x128xbf16>
    %c0_28 = arith.constant 0 : index
    %c1 = arith.constant 1 : index
    %c0_29 = arith.constant 0 : index
    %c0_30 = arith.constant 0 : index
    %74 = vector.load %arg9[%c0_28, %c1, %c0_29, %c0_30] : memref<1x4x128x128xbf16, #tpu.memory_space<vmem>>, vector<1x1x128x128xbf16>
    %75 = vector.shape_cast %74 : vector<1x1x128x128xbf16> to vector<128x128xbf16>
    %76 = vector.shape_cast %73 : vector<128x128xbf16> to vector<1x1x128x128xbf16>
    tpu.vector_store %arg9[%c0_28, %c1, %c0_29, %c0_30], %76 {strides = array<i32>} : memref<1x4x128x128xbf16, #tpu.memory_space<vmem>>, vector<1x1x128x128xbf16>,
    %cst_31 = arith.constant dense<0.000000e+00> : vector<128x16xf32>
    %77 = tpu.matmul %73, %58, %cst_31 {dimension_numbers = #tpu.dot_dimension_numbers<[1], [0], [0], [1], [0, 0, 1, 1], [], []>} : vector<128x128xbf16>, vector<128x16xbf16>, vector<128x16xf32> -> vector<128x16xf32>
    %78 = arith.truncf %77 : vector<128x16xf32> to vector<128x16xbf16>
    %79 = vector.extract_strided_slice %26 {offsets = [0, 32], sizes = [128, 16], strides = [1, 1]} : vector<128x192xf32> to vector<128x16xf32>
    %80 = arith.truncf %79 : vector<128x16xf32> to vector<128x16xbf16>
    %81 = vector.extract_strided_slice %26 {offsets = [0, 96], sizes = [128, 16], strides = [1, 1]} : vector<128x192xf32> to vector<128x16xf32>
    %82 = arith.truncf %81 : vector<128x16xf32> to vector<128x16xbf16>
    %83 = vector.extract_strided_slice %26 {offsets = [0, 160], sizes = [128, 16], strides = [1, 1]} : vector<128x192xf32> to vector<128x16xf32>
    %84 = arith.truncf %83 : vector<128x16xf32> to vector<128x16xbf16>
    %cst_32 = arith.constant dense<0.000000e+00> : vector<128x128xf32>
    %85 = tpu.matmul %80, %82, %cst_32 {dimension_numbers = #tpu.dot_dimension_numbers<[1], [1], [0], [0], [0, 0, 1, 0], [], []>} : vector<128x16xbf16>, vector<128x16xbf16>, vector<128x128xf32> -> vector<128x128xf32>
    %c0_33 = arith.constant 0 : index
    %c0_34 = arith.constant 0 : index
    %86 = vector.load %arg7[%c0_33, %c0_34] : memref<1x128xf32, #tpu.memory_space<vmem>>, vector<1x128xf32>
    %87 = vector.broadcast %86 : vector<1x128xf32> to vector<128x128xf32>
    %88 = arith.addf %85, %87 : vector<128x128xf32>
    %cst_35 = arith.constant dense<0xFF800000> : vector<128xf32>
    %89 = vector.multi_reduction <maximumf>, %88, %cst_35 [1] : vector<128x128xf32> to vector<128xf32>
    %90 = vector.shape_cast %89 : vector<128xf32> to vector<128x1xf32>
    %91 = vector.broadcast %90 : vector<128x1xf32> to vector<128x128xf32>
    %92 = arith.subf %88, %91 : vector<128x128xf32>
    %93 = math.exp %92 : vector<128x128xf32>
    %cst_36 = arith.constant dense<0.000000e+00> : vector<128xf32>
    %94 = vector.multi_reduction <add>, %93, %cst_36 [1] : vector<128x128xf32> to vector<128xf32>
    %95 = vector.shape_cast %94 : vector<128xf32> to vector<128x1xf32>
    %96 = tpu.reciprocal %95 {approx = true} : vector<128x1xf32> -> vector<128x1xf32>
    %97 = vector.broadcast %96 : vector<128x1xf32> to vector<128x128xf32>
    %98 = arith.mulf %93, %97 : vector<128x128xf32>
    %99 = arith.truncf %98 : vector<128x128xf32> to vector<128x128xbf16>
    %c0_37 = arith.constant 0 : index
    %c2 = arith.constant 2 : index
    %c0_38 = arith.constant 0 : index
    %c0_39 = arith.constant 0 : index
    %100 = vector.load %arg9[%c0_37, %c2, %c0_38, %c0_39] : memref<1x4x128x128xbf16, #tpu.memory_space<vmem>>, vector<1x1x128x128xbf16>
    %101 = vector.shape_cast %100 : vector<1x1x128x128xbf16> to vector<128x128xbf16>
    %102 = vector.shape_cast %99 : vector<128x128xbf16> to vector<1x1x128x128xbf16>
    tpu.vector_store %arg9[%c0_37, %c2, %c0_38, %c0_39], %102 {strides = array<i32>} : memref<1x4x128x128xbf16, #tpu.memory_space<vmem>>, vector<1x1x128x128xbf16>,
    %cst_40 = arith.constant dense<0.000000e+00> : vector<128x16xf32>
    %103 = tpu.matmul %99, %84, %cst_40 {dimension_numbers = #tpu.dot_dimension_numbers<[1], [0], [0], [1], [0, 0, 1, 1], [], []>} : vector<128x128xbf16>, vector<128x16xbf16>, vector<128x16xf32> -> vector<128x16xf32>
    %104 = arith.truncf %103 : vector<128x16xf32> to vector<128x16xbf16>
    %105 = vector.extract_strided_slice %26 {offsets = [0, 48], sizes = [128, 16], strides = [1, 1]} : vector<128x192xf32> to vector<128x16xf32>
    %106 = arith.truncf %105 : vector<128x16xf32> to vector<128x16xbf16>
    %107 = vector.extract_strided_slice %26 {offsets = [0, 112], sizes = [128, 16], strides = [1, 1]} : vector<128x192xf32> to vector<128x16xf32>
    %108 = arith.truncf %107 : vector<128x16xf32> to vector<128x16xbf16>
    %109 = vector.extract_strided_slice %26 {offsets = [0, 176], sizes = [128, 16], strides = [1, 1]} : vector<128x192xf32> to vector<128x16xf32>
    %110 = arith.truncf %109 : vector<128x16xf32> to vector<128x16xbf16>
    %cst_41 = arith.constant dense<0.000000e+00> : vector<128x128xf32>
    %111 = tpu.matmul %106, %108, %cst_41 {dimension_numbers = #tpu.dot_dimension_numbers<[1], [1], [0], [0], [0, 0, 1, 0], [], []>} : vector<128x16xbf16>, vector<128x16xbf16>, vector<128x128xf32> -> vector<128x128xf32>
    %c0_42 = arith.constant 0 : index
    %c0_43 = arith.constant 0 : index
    %112 = vector.load %arg7[%c0_42, %c0_43] : memref<1x128xf32, #tpu.memory_space<vmem>>, vector<1x128xf32>
    %113 = vector.broadcast %112 : vector<1x128xf32> to vector<128x128xf32>
    %114 = arith.addf %111, %113 : vector<128x128xf32>
    %cst_44 = arith.constant dense<0xFF800000> : vector<128xf32>
    %115 = vector.multi_reduction <maximumf>, %114, %cst_44 [1] : vector<128x128xf32> to vector<128xf32>
    %116 = vector.shape_cast %115 : vector<128xf32> to vector<128x1xf32>
    %117 = vector.broadcast %116 : vector<128x1xf32> to vector<128x128xf32>
    %118 = arith.subf %114, %117 : vector<128x128xf32>
    %119 = math.exp %118 : vector<128x128xf32>
    %cst_45 = arith.constant dense<0.000000e+00> : vector<128xf32>
    %120 = vector.multi_reduction <add>, %119, %cst_45 [1] : vector<128x128xf32> to vector<128xf32>
    %121 = vector.shape_cast %120 : vector<128xf32> to vector<128x1xf32>
    %122 = tpu.reciprocal %121 {approx = true} : vector<128x1xf32> -> vector<128x1xf32>
    %123 = vector.broadcast %122 : vector<128x1xf32> to vector<128x128xf32>
    %124 = arith.mulf %119, %123 : vector<128x128xf32>
    %125 = arith.truncf %124 : vector<128x128xf32> to vector<128x128xbf16>
    %c0_46 = arith.constant 0 : index
    %c3 = arith.constant 3 : index
    %c0_47 = arith.constant 0 : index
    %c0_48 = arith.constant 0 : index
    %126 = vector.load %arg9[%c0_46, %c3, %c0_47, %c0_48] : memref<1x4x128x128xbf16, #tpu.memory_space<vmem>>, vector<1x1x128x128xbf16>
    %127 = vector.shape_cast %126 : vector<1x1x128x128xbf16> to vector<128x128xbf16>
    %128 = vector.shape_cast %125 : vector<128x128xbf16> to vector<1x1x128x128xbf16>
    tpu.vector_store %arg9[%c0_46, %c3, %c0_47, %c0_48], %128 {strides = array<i32>} : memref<1x4x128x128xbf16, #tpu.memory_space<vmem>>, vector<1x1x128x128xbf16>,
    %cst_49 = arith.constant dense<0.000000e+00> : vector<128x16xf32>
    %129 = tpu.matmul %125, %110, %cst_49 {dimension_numbers = #tpu.dot_dimension_numbers<[1], [0], [0], [1], [0, 0, 1, 1], [], []>} : vector<128x128xbf16>, vector<128x16xbf16>, vector<128x16xf32> -> vector<128x16xf32>
    %130 = arith.truncf %129 : vector<128x16xf32> to vector<128x16xbf16>
    %131 = tpu.concatenate %52, %78, %104, %130 in 1 : vector<128x16xbf16>, vector<128x16xbf16>, vector<128x16xbf16>, vector<128x16xbf16> -> vector<128x64xbf16>
    %c0_50 = arith.constant 0 : index
    %c0_51 = arith.constant 0 : index
    %132 = vector.load %arg5[%c0_50, %c0_51] : memref<64x32xbf16, #tpu.memory_space<vmem>>, vector<64x32xbf16>
    %cst_52 = arith.constant dense<0.000000e+00> : vector<128x32xf32>
    %133 = tpu.matmul %131, %132, %cst_52 {dimension_numbers = #tpu.dot_dimension_numbers<[1], [0], [0], [1], [0, 0, 1, 1], [], []>} : vector<128x64xbf16>, vector<64x32xbf16>, vector<128x32xf32> -> vector<128x32xf32>
    %c0_53 = arith.constant 0 : index
    %c0_54 = arith.constant 0 : index
    %134 = vector.load %arg6[%c0_53, %c0_54] : memref<1x32xf32, #tpu.memory_space<vmem>>, vector<1x32xf32>
    %135 = vector.broadcast %134 : vector<1x32xf32> to vector<128x32xf32>
    %136 = arith.addf %133, %135 : vector<128x32xf32>
    %c0_55 = arith.constant 0 : index
    %c0_56 = arith.constant 0 : index
    %c0_57 = arith.constant 0 : index
    %137 = vector.load %arg8[%c0_55, %c0_56, %c0_57] : memref<1x128x32xf32, #tpu.memory_space<vmem>>, vector<1x128x32xf32>
    %138 = vector.shape_cast %137 : vector<1x128x32xf32> to vector<128x32xf32>
    %139 = vector.shape_cast %136 : vector<128x32xf32> to vector<1x128x32xf32>
    tpu.vector_store %arg8[%c0_55, %c0_56, %c0_57], %139 {strides = array<i32>} : memref<1x128x32xf32, #tpu.memory_space<vmem>>, vector<1x128x32xf32>,
    return
  }
  func.func @transform_0(%arg0: i32) -> (i32, i32, i32) {
    %c0_i32 = arith.constant 0 : i32
    %c0_i32_0 = arith.constant 0 : i32
    %c0_i32_1 = arith.constant 0 : i32
    return %arg0, %c0_i32, %c0_i32_0 : i32, i32, i32
  }
  func.func @transform_1(%arg0: i32) -> (i32, i32) {
    %c0_i32 = arith.constant 0 : i32
    %c0_i32_0 = arith.constant 0 : i32
    %c0_i32_1 = arith.constant 0 : i32
    return %c0_i32, %c0_i32_0 : i32, i32
  }
  func.func @transform_2(%arg0: i32) -> (i32, i32) {
    %c0_i32 = arith.constant 0 : i32
    %c0_i32_0 = arith.constant 0 : i32
    %c0_i32_1 = arith.constant 0 : i32
    return %c0_i32, %c0_i32_0 : i32, i32
  }
  func.func @transform_3(%arg0: i32) -> (i32, i32) {
    %c0_i32 = arith.constant 0 : i32
    %c0_i32_0 = arith.constant 0 : i32
    %c0_i32_1 = arith.constant 0 : i32
    return %c0_i32, %c0_i32_0 : i32, i32
  }
  func.func @transform_4(%arg0: i32) -> (i32, i32) {
    %c0_i32 = arith.constant 0 : i32
    %c0_i32_0 = arith.constant 0 : i32
    %c0_i32_1 = arith.constant 0 : i32
    return %c0_i32, %c0_i32_0 : i32, i32
  }
  func.func @transform_5(%arg0: i32) -> (i32, i32) {
    %c0_i32 = arith.constant 0 : i32
    %c0_i32_0 = arith.constant 0 : i32
    %c0_i32_1 = arith.constant 0 : i32
    return %c0_i32, %c0_i32_0 : i32, i32
  }
  func.func @transform_6(%arg0: i32) -> (i32, i32) {
    %c0_i32 = arith.constant 0 : i32
    %c0_i32_0 = arith.constant 0 : i32
    %c0_i32_1 = arith.constant 0 : i32
    return %c0_i32, %c0_i32_0 : i32, i32
  }
  func.func @transform_7(%arg0: i32) -> (i32, i32, i32) {
    %c0_i32 = arith.constant 0 : i32
    %c0_i32_0 = arith.constant 0 : i32
    %c0_i32_1 = arith.constant 0 : i32
    return %arg0, %c0_i32, %c0_i32_0 : i32, i32, i32
  }
  func.func @transform_8(%arg0: i32) -> (i32, i32, i32, i32) {
    %c0_i32 = arith.constant 0 : i32
    %c0_i32_0 = arith.constant 0 : i32
    %c0_i32_1 = arith.constant 0 : i32
    %c0_i32_2 = arith.constant 0 : i32
    return %arg0, %c0_i32, %c0_i32_0, %c0_i32_1 : i32, i32, i32, i32
  }
}

</mosaic_0001>

<llo_original>
// kernel: tpu_custom_call.1
$region0: #{tpu_custom_call.1}
  #allocation0 [shape = 'u32[]', space=smem, size = 0x4, offset = 0x4, fixed_abs, tag = 'smem constant byte address 0x4 - core index']
  #allocation1 [shape = 'u32[144,128]{1,0:T(1,128)}', space=vmem, size = 0x12000, scoped, tag = 'internal scratch']
  %s0 = inlined_call_operand.vmem [shape: f32[2,128,32], index: 0, kind: input, shape index: {}]
  %s1 = inlined_call_operand.vmem [shape: f32[1,32], index: 1, kind: input, shape index: {}]
  %s2 = inlined_call_operand.vmem [shape: f32[1,32], index: 2, kind: input, shape index: {}]
  %s3 = inlined_call_operand.vmem [shape: bf16[32,192], index: 3, kind: input, shape index: {}]
  %s4 = inlined_call_operand.vmem [shape: bf16[64,32], index: 4, kind: input, shape index: {}]
  %s5 = inlined_call_operand.vmem [shape: f32[1,32], index: 5, kind: input, shape index: {}]
  %s6 = inlined_call_operand.vmem [shape: f32[1,128], index: 6, kind: input, shape index: {}]
  %s7 = inlined_call_operand.vmem [shape: f32[2,128,32], index: 7, kind: output, shape index: {0}]
  %s8 = inlined_call_operand.hbm [shape: bf16[2,4,128,128], index: 8, kind: output, shape index: {1}]
  %9 = xla_tuple %s7, %s8
  %s10 = sld [smem:[#allocation0]]
  $region69: #{tpu_custom_call.1} parent=0
    _
  %s12 = ssub.s32 1, %s10
  %s13 = scalar_select 0, %s12, %s10
  $region1: #{tpu_custom_call.1} parent=0
    #allocation2 [shape = 'u8[262144]{0}', space=vmem, size = 0x40000, scoped, tag = 'output window, operand 1']
    #allocation3 [shape = 's32[2]{0}', space=sflag, size = 0x8, scoped, tag = 'scoped memory for tpu_custom_call.1']
    %14 = vsyncpa [#allocation3], 0
    %s15 = scalar_lea.sflag [#allocation3], 1
    %16 = vsyncpa %s15, 0
    loop: start=0, step=1, limit=4
    $region2: #{tpu_custom_call.1} parent=1 // loop_pre_header
      _
    $region3: #{tpu_custom_call.1} parent=1 // loop_header
      %s18 = sphi 0, %s22
      %p19 = scmp.ge.s32.totalorder %s18, 4
      %s28 = sphi 0, %s30
      %s31 = sphi 0, %s28
      %s32 = sphi 0, %s31
      %s48 = sphi 0, %s32
      %s52 = sphi 0, %s52
      %s54 = sphi 0, %s52
      %s55 = sphi 0, %s54
      %s69 = sphi 0, %s55
      %s73 = sphi 0, %s73
      %s75 = sphi 0, %s73
      %s76 = sphi 0, %s75
      %s90 = sphi 0, %s76
      %s94 = sphi 0, %s94
      %s96 = sphi 0, %s94
      %s97 = sphi 0, %s96
      %s111 = sphi 0, %s97
      %s115 = sphi 0, %s115
      %s117 = sphi 0, %s115
      %s118 = sphi 0, %s117
      %s132 = sphi 0, %s118
      %s136 = sphi 0, %s136
      %s138 = sphi 0, %s136
      %s139 = sphi 0, %s138
      %s153 = sphi 0, %s139
      %s157 = sphi 0, %s157
      %s159 = sphi 0, %s157
      %s160 = sphi 0, %s159
      %s174 = sphi 0, %s160
      %s180 = sphi 0, %s182
      %s183 = sphi 0, %s180
      %s184 = sphi 0, %s183
      %s200 = sphi 0, %s184
      %s206 = sphi 0, %s208
      %s209 = sphi 0, %s206
      %s210 = sphi 0, %s209
      %s226 = sphi 0, %s210
    $region4: #{tpu_custom_call.1} parent=1 // loop_header_branch
      %21 = sbr.rel (%p19) target = $region8
    $region5: #{tpu_custom_call.1} parent=1 // loop_body
      %s23 = ssub.s32 %s18, 1
      %s24 = ssub.s32 %s18, 2
      %s25 = sadd.s32 %s18, 1
      %s26 = ssub.s32 %s18, %s25
      %p27 = scmp.eq.s32.totalorder %s26, 0
      %s29 = sadd.s32 %s28, 1
      %s30 = scalar_select %p27, %s28, %s29
      %p33 = pneg %p27
      %p34 = scmp.eq.s32.totalorder %s18, 1
      %p35 = por %p33, %p34
      %p36 = scmp.ne.s32.totalorder %s28, %s31
      %p37 = scmp.eq.s32.totalorder %s18, 0
      %p38 = por %p36, %p37
      %p39 = scmp.ne.s32.totalorder %s28, %s31
      %p40 = scmp.eq.s32.totalorder %s23, 1
      %p41 = por %p39, %p40
      %p42 = scmp.ne.s32.totalorder %s31, %s32
      %p43 = scmp.eq.s32.totalorder %s23, 0
      %p44 = por %p42, %p43
      %p45 = scmp.ne.s32.totalorder %s31, %s32
      %p46 = scmp.eq.s32.totalorder %s24, 1
      %p47 = por %p45, %p46
      %p49 = scmp.ne.s32.totalorder %s32, %s48
      %p50 = scmp.eq.s32.totalorder %s24, 0
      %p51 = por %p49, %p50
      %s53 = sadd.s32 %s52, 1
      %p56 = scmp.eq.s32.totalorder %s18, 1
      %p57 = scmp.ne.s32.totalorder %s52, %s54
      %p58 = scmp.eq.s32.totalorder %s18, 0
      %p59 = por %p57, %p58
      %p60 = scmp.ne.s32.totalorder %s52, %s54
      %p61 = scmp.eq.s32.totalorder %s23, 1
      %p62 = por %p60, %p61
      %p63 = scmp.ne.s32.totalorder %s54, %s55
      %p64 = scmp.eq.s32.totalorder %s23, 0
      %p65 = por %p63, %p64
      %p66 = scmp.ne.s32.totalorder %s54, %s55
      %p67 = scmp.eq.s32.totalorder %s24, 1
      %p68 = por %p66, %p67
      %p70 = scmp.ne.s32.totalorder %s55, %s69
      %p71 = scmp.eq.s32.totalorder %s24, 0
      %p72 = por %p70, %p71
      %s74 = sadd.s32 %s73, 1
      %p77 = scmp.eq.s32.totalorder %s18, 1
      %p78 = scmp.ne.s32.totalorder %s73, %s75
      %p79 = scmp.eq.s32.totalorder %s18, 0
      %p80 = por %p78, %p79
      %p81 = scmp.ne.s32.totalorder %s73, %s75
      %p82 = scmp.eq.s32.totalorder %s23, 1
      %p83 = por %p81, %p82
      %p84 = scmp.ne.s32.totalorder %s75, %s76
      %p85 = scmp.eq.s32.totalorder %s23, 0
      %p86 = por %p84, %p85
      %p87 = scmp.ne.s32.totalorder %s75, %s76
      %p88 = scmp.eq.s32.totalorder %s24, 1
      %p89 = por %p87, %p88
      %p91 = scmp.ne.s32.totalorder %s76, %s90
      %p92 = scmp.eq.s32.totalorder %s24, 0
      %p93 = por %p91, %p92
      %s95 = sadd.s32 %s94, 1
      %p98 = scmp.eq.s32.totalorder %s18, 1
      %p99 = scmp.ne.s32.totalorder %s94, %s96
      %p100 = scmp.eq.s32.totalorder %s18, 0
      %p101 = por %p99, %p100
      %p102 = scmp.ne.s32.totalorder %s94, %s96
      %p103 = scmp.eq.s32.totalorder %s23, 1
      %p104 = por %p102, %p103
      %p105 = scmp.ne.s32.totalorder %s96, %s97
      %p106 = scmp.eq.s32.totalorder %s23, 0
      %p107 = por %p105, %p106
      %p108 = scmp.ne.s32.totalorder %s96, %s97
      %p109 = scmp.eq.s32.totalorder %s24, 1
      %p110 = por %p108, %p109
      %p112 = scmp.ne.s32.totalorder %s97, %s111
      %p113 = scmp.eq.s32.totalorder %s24, 0
      %p114 = por %p112, %p113
      %s116 = sadd.s32 %s115, 1
      %p119 = scmp.eq.s32.totalorder %s18, 1
      %p120 = scmp.ne.s32.totalorder %s115, %s117
      %p121 = scmp.eq.s32.totalorder %s18, 0
      %p122 = por %p120, %p121
      %p123 = scmp.ne.s32.totalorder %s115, %s117
      %p124 = scmp.eq.s32.totalorder %s23, 1
      %p125 = por %p123, %p124
      %p126 = scmp.ne.s32.totalorder %s117, %s118
      %p127 = scmp.eq.s32.totalorder %s23, 0
      %p128 = por %p126, %p127
      %p129 = scmp.ne.s32.totalorder %s117, %s118
      %p130 = scmp.eq.s32.totalorder %s24, 1
      %p131 = por %p129, %p130
      %p133 = scmp.ne.s32.totalorder %s118, %s132
      %p134 = scmp.eq.s32.totalorder %s24, 0
      %p135 = por %p133, %p134
      %s137 = sadd.s32 %s136, 1
      %p140 = scmp.eq.s32.totalorder %s18, 1
      %p141 = scmp.ne.s32.totalorder %s136, %s138
      %p142 = scmp.eq.s32.totalorder %s18, 0
      %p143 = por %p141, %p142
      %p144 = scmp.ne.s32.totalorder %s136, %s138
      %p145 = scmp.eq.s32.totalorder %s23, 1
      %p146 = por %p144, %p145
      %p147 = scmp.ne.s32.totalorder %s138, %s139
      %p148 = scmp.eq.s32.totalorder %s23, 0
      %p149 = por %p147, %p148
      %p150 = scmp.ne.s32.totalorder %s138, %s139
      %p151 = scmp.eq.s32.totalorder %s24, 1
      %p152 = por %p150, %p151
      %p154 = scmp.ne.s32.totalorder %s139, %s153
      %p155 = scmp.eq.s32.totalorder %s24, 0
      %p156 = por %p154, %p155
      %s158 = sadd.s32 %s157, 1
      %p161 = scmp.eq.s32.totalorder %s18, 1
      %p162 = scmp.ne.s32.totalorder %s157, %s159
      %p163 = scmp.eq.s32.totalorder %s18, 0
      %p164 = por %p162, %p163
      %p165 = scmp.ne.s32.totalorder %s157, %s159
      %p166 = scmp.eq.s32.totalorder %s23, 1
      %p167 = por %p165, %p166
      %p168 = scmp.ne.s32.totalorder %s159, %s160
      %p169 = scmp.eq.s32.totalorder %s23, 0
      %p170 = por %p168, %p169
      %p171 = scmp.ne.s32.totalorder %s159, %s160
      %p172 = scmp.eq.s32.totalorder %s24, 1
      %p173 = por %p171, %p172
      %p175 = scmp.ne.s32.totalorder %s160, %s174
      %p176 = scmp.eq.s32.totalorder %s24, 0
      %p177 = por %p175, %p176
      %s178 = ssub.s32 %s18, %s25
      %p179 = scmp.eq.s32.totalorder %s178, 0
      %s181 = sadd.s32 %s180, 1
      %s182 = scalar_select %p179, %s180, %s181
      %p185 = pneg %p179
      %p186 = scmp.eq.s32.totalorder %s18, 1
      %p187 = por %p185, %p186
      %p188 = scmp.ne.s32.totalorder %s180, %s183
      %p189 = scmp.eq.s32.totalorder %s18, 0
      %p190 = por %p188, %p189
      %p191 = scmp.ne.s32.totalorder %s180, %s183
      %p192 = scmp.eq.s32.totalorder %s23, 1
      %p193 = por %p191, %p192
      %p194 = scmp.ne.s32.totalorder %s183, %s184
      %p195 = scmp.eq.s32.totalorder %s23, 0
      %p196 = por %p194, %p195
      %p197 = scmp.ne.s32.totalorder %s183, %s184
      %p198 = scmp.eq.s32.totalorder %s24, 1
      %p199 = por %p197, %p198
      %p201 = scmp.ne.s32.totalorder %s184, %s200
      %p202 = scmp.eq.s32.totalorder %s24, 0
      %p203 = por %p201, %p202
      %s204 = ssub.s32 %s18, %s25
      %p205 = scmp.eq.s32.totalorder %s204, 0
      %s207 = sadd.s32 %s206, 1
      %s208 = scalar_select %p205, %s206, %s207
      %p211 = pneg %p205
      %p212 = scmp.eq.s32.totalorder %s18, 1
      %p213 = por %p211, %p212
      %p214 = scmp.ne.s32.totalorder %s206, %s209
      %p215 = scmp.eq.s32.totalorder %s18, 0
      %p216 = por %p214, %p215
      %p217 = scmp.ne.s32.totalorder %s206, %s209
      %p218 = scmp.eq.s32.totalorder %s23, 1
      %p219 = por %p217, %p218
      %p220 = scmp.ne.s32.totalorder %s209, %s210
      %p221 = scmp.eq.s32.totalorder %s23, 0
      %p222 = por %p220, %p221
      %p223 = scmp.ne.s32.totalorder %s209, %s210
      %p224 = scmp.eq.s32.totalorder %s24, 1
      %p225 = por %p223, %p224
      %p227 = scmp.ne.s32.totalorder %s210, %s226
      %p228 = scmp.eq.s32.totalorder %s24, 0
      %p229 = por %p227, %p228
      %p230 = scmp.le.s32.totalorder 1, %s18
      %p231 = scmp.lt.s32.totalorder %s18, 3
      %p232 = pnand %p230, %p231
      %p233 = pneg %p232
      // Predicated region
      $region9: #{tpu_custom_call.1} parent=5 // pred_check
        _
      $region10: #{tpu_custom_call.1} parent=5 // pred_check_branch
        %235 = sbr.rel (%p232) target = $region12
      $region11: #{tpu_custom_call.1} parent=5 // pred_region
        %s236 = ssub.s32 %s18, 1
        // Predicated region
        $region13: #{tpu_custom_call.1} parent=11 // pred_check
          %p237 = pneg %p65
        $region14: #{tpu_custom_call.1} parent=11 // pred_check_branch
          %239 = sbr.rel (%p237) target = $region16
        $region15: #{tpu_custom_call.1} parent=11 // pred_region
          _
        $region16: #{tpu_custom_call.1} parent=11 // pred_fallthru
          _
        // Predicated region
        $region17: #{tpu_custom_call.1} parent=11 // pred_check
          %p240 = pneg %p86
        $region18: #{tpu_custom_call.1} parent=11 // pred_check_branch
          %242 = sbr.rel (%p240) target = $region20
        $region19: #{tpu_custom_call.1} parent=11 // pred_region
          _
        $region20: #{tpu_custom_call.1} parent=11 // pred_fallthru
          _
        // Predicated region
        $region21: #{tpu_custom_call.1} parent=11 // pred_check
          %p243 = pneg %p107
        $region22: #{tpu_custom_call.1} parent=11 // pred_check_branch
          %245 = sbr.rel (%p243) target = $region24
        $region23: #{tpu_custom_call.1} parent=11 // pred_region
          _
        $region24: #{tpu_custom_call.1} parent=11 // pred_fallthru
          _
        // Predicated region
        $region25: #{tpu_custom_call.1} parent=11 // pred_check
          %p246 = pneg %p128
        $region26: #{tpu_custom_call.1} parent=11 // pred_check_branch
          %248 = sbr.rel (%p246) target = $region28
        $region27: #{tpu_custom_call.1} parent=11 // pred_region
          _
        $region28: #{tpu_custom_call.1} parent=11 // pred_fallthru
          _
        // Predicated region
        $region29: #{tpu_custom_call.1} parent=11 // pred_check
          %p249 = pneg %p149
        $region30: #{tpu_custom_call.1} parent=11 // pred_check_branch
          %251 = sbr.rel (%p249) target = $region32
        $region31: #{tpu_custom_call.1} parent=11 // pred_region
          _
        $region32: #{tpu_custom_call.1} parent=11 // pred_fallthru
          _
        // Predicated region
        $region33: #{tpu_custom_call.1} parent=11 // pred_check
          %p252 = pneg %p170
        $region34: #{tpu_custom_call.1} parent=11 // pred_check_branch
          %254 = sbr.rel (%p252) target = $region36
        $region35: #{tpu_custom_call.1} parent=11 // pred_region
          _
        $region36: #{tpu_custom_call.1} parent=11 // pred_fallthru
          _
      $region12: #{tpu_custom_call.1} parent=5 // pred_fallthru
        _
      %p255 = scmp.lt.s32.totalorder %s18, 2
      // Predicated region
      $region37: #{tpu_custom_call.1} parent=5 // pred_check
        %p256 = pneg %p255
      $region38: #{tpu_custom_call.1} parent=5 // pred_check_branch
        %258 = sbr.rel (%p256) target = $region40
      $region39: #{tpu_custom_call.1} parent=5 // pred_region
        // Predicated region
        $region41: #{tpu_custom_call.1} parent=39 // pred_check
          %p259 = pneg %p38
        $region42: #{tpu_custom_call.1} parent=39 // pred_check_branch
          %261 = sbr.rel (%p259) target = $region44
        $region43: #{tpu_custom_call.1} parent=39 // pred_region
          %p262 = scmp.lt.s32.totalorder %s18, 1
          %s263 = scalar_select %p262, %s18, 1
          %s264 = smul.addr %s263, 16
          %s265 = smul.addr %s264, 8
          %s266 = scalar_lea.vmem %s0, %s265
        $region44: #{tpu_custom_call.1} parent=39 // pred_fallthru
          _
      $region40: #{tpu_custom_call.1} parent=5 // pred_fallthru
        _
      %p267 = scmp.le.s32.totalorder 1, %s18
      %p268 = scmp.lt.s32.totalorder %s18, 3
      %p269 = pnand %p267, %p268
      %p270 = pneg %p269
      // Predicated region
      $region45: #{tpu_custom_call.1} parent=5 // pred_check
        _
      $region46: #{tpu_custom_call.1} parent=5 // pred_check_branch
        %272 = sbr.rel (%p269) target = $region48
      $region47: #{tpu_custom_call.1} parent=5 // pred_region
        %s273 = ssub.s32 %s18, 1
        %p274 = scmp.lt.s32.totalorder %s23, 1
        %s275 = scalar_select %p274, %s23, 1
        %s276 = smul.addr %s275, 16
        %s277 = smul.addr %s276, 8
        %s278 = scalar_lea.vmem %s0, %s277
        %p279 = pneg %p44
        %p280 = pneg %p41
        %p281 = pneg %p65
        %p282 = pneg %p62
        %p283 = pneg %p86
        %p284 = pneg %p83
        %p285 = pneg %p107
        %p286 = pneg %p104
        %p287 = pneg %p128
        %p288 = pneg %p125
        %p289 = pneg %p149
        %p290 = pneg %p146
        %p291 = pneg %p170
        %p292 = pneg %p167
        %p293 = pneg %p196
        %p294 = pneg %p193
        %p295 = scmp.lt.s32.totalorder %s23, 1
        %s296 = scalar_select %p295, %s23, 1
        %s297 = smul.addr %s296, 16
        %s298 = smul.addr %s297, 8
        %s299 = scalar_lea.vmem %s7, %s298
        %p300 = pneg %p222
        %p301 = pneg %p219
        %s302 = sand.u32 %s209, 1
        %s303 = scalar_lea.sflag [#allocation3], %s302
        %s304 = sand.u32 %s209, 1
        %s305 = smul.addr %s304, 256
        %s306 = scalar_lea.vmem [#allocation2], %s305
        %p307 = scmp.lt.s32.totalorder %s23, 1
        %s308 = scalar_select %p307, %s23, 1
        %s309 = smul.addr %s308, 16
        %s310 = smul.addr %s309, 8
        %s311 = scalar_lea.vmem %s0, %s310
        %p312 = scmp.lt.s32.totalorder %s23, 1
        %s313 = scalar_select %p312, %s23, 1
        %s314 = smul.addr %s313, 16
        %s315 = smul.addr %s314, 8
        %s316 = scalar_lea.vmem %s7, %s315
        %v318 = vld [vmem:[%s311] sm:$0xff]
        %v319 = vld [vmem:[%s311 + $0x8] sm:$0xff]
        %v320 = vld [vmem:[%s311 + $0x10] sm:$0xff]
        %v321 = vld [vmem:[%s311 + $0x18] sm:$0xff]
        %v322 = vld [vmem:[%s311 + $0x20] sm:$0xff]
        %v323 = vld [vmem:[%s311 + $0x28] sm:$0xff]
        %v324 = vld [vmem:[%s311 + $0x30] sm:$0xff]
        %v325 = vld [vmem:[%s311 + $0x38] sm:$0xff]
        %v326 = vld [vmem:[%s311 + $0x40] sm:$0xff]
        %v327 = vld [vmem:[%s311 + $0x48] sm:$0xff]
        %v328 = vld [vmem:[%s311 + $0x50] sm:$0xff]
        %v329 = vld [vmem:[%s311 + $0x58] sm:$0xff]
        %v330 = vld [vmem:[%s311 + $0x60] sm:$0xff]
        %v331 = vld [vmem:[%s311 + $0x68] sm:$0xff]
        %v332 = vld [vmem:[%s311 + $0x70] sm:$0xff]
        %v333 = vld [vmem:[%s311 + $0x78] sm:$0xff]
        %vm334 = vcmask 261120
        %v335 = vsel %vm334, %v318, 0.0
        %336 = vadd.xlane.f32.xlu0 %v335
        %v337 = vpop.xlane.xlu0 %336
        %v338 = vsel %vm334, %v319, 0.0
        %339 = vadd.xlane.f32.xlu0 %v338
        %v340 = vpop.xlane.xlu0 %339
        %v341 = vsel %vm334, %v320, 0.0
        %342 = vadd.xlane.f32.xlu0 %v341
        %v343 = vpop.xlane.xlu0 %342
        %v344 = vsel %vm334, %v321, 0.0
        %345 = vadd.xlane.f32.xlu0 %v344
        %v346 = vpop.xlane.xlu0 %345
        %v347 = vsel %vm334, %v322, 0.0
        %348 = vadd.xlane.f32.xlu0 %v347
        %v349 = vpop.xlane.xlu0 %348
        %v350 = vsel %vm334, %v323, 0.0
        %351 = vadd.xlane.f32.xlu0 %v350
        %v352 = vpop.xlane.xlu0 %351
        %v353 = vsel %vm334, %v324, 0.0
        %354 = vadd.xlane.f32.xlu0 %v353
        %v355 = vpop.xlane.xlu0 %354
        %v356 = vsel %vm334, %v325, 0.0
        %357 = vadd.xlane.f32.xlu0 %v356
        %v358 = vpop.xlane.xlu0 %357
        %v359 = vsel %vm334, %v326, 0.0
        %360 = vadd.xlane.f32.xlu0 %v359
        %v361 = vpop.xlane.xlu0 %360
        %v362 = vsel %vm334, %v327, 0.0
        %363 = vadd.xlane.f32.xlu0 %v362
        %v364 = vpop.xlane.xlu0 %363
        %v365 = vsel %vm334, %v328, 0.0
        %366 = vadd.xlane.f32.xlu0 %v365
        %v367 = vpop.xlane.xlu0 %366
        %v368 = vsel %vm334, %v329, 0.0
        %369 = vadd.xlane.f32.xlu0 %v368
        %v370 = vpop.xlane.xlu0 %369
        %v371 = vsel %vm334, %v330, 0.0
        %372 = vadd.xlane.f32.xlu0 %v371
        %v373 = vpop.xlane.xlu0 %372
        %v374 = vsel %vm334, %v331, 0.0
        %375 = vadd.xlane.f32.xlu0 %v374
        %v376 = vpop.xlane.xlu0 %375
        %v377 = vsel %vm334, %v332, 0.0
        %378 = vadd.xlane.f32.xlu0 %v377
        %v379 = vpop.xlane.xlu0 %378
        %v380 = vsel %vm334, %v333, 0.0
        %381 = vadd.xlane.f32.xlu0 %v380
        %v382 = vpop.xlane.xlu0 %381
        %v383 = vrcp.pop 32.0
        %v384 = vmul.f32 %v337, %v383
        %v385 = vmul.f32 %v340, %v383
        %v386 = vmul.f32 %v343, %v383
        %v387 = vmul.f32 %v346, %v383
        %v388 = vmul.f32 %v349, %v383
        %v389 = vmul.f32 %v352, %v383
        %v390 = vmul.f32 %v355, %v383
        %v391 = vmul.f32 %v358, %v383
        %v392 = vmul.f32 %v361, %v383
        %v393 = vmul.f32 %v364, %v383
        %v394 = vmul.f32 %v367, %v383
        %v395 = vmul.f32 %v370, %v383
        %v396 = vmul.f32 %v373, %v383
        %v397 = vmul.f32 %v376, %v383
        %v398 = vmul.f32 %v379, %v383
        %v399 = vmul.f32 %v382, %v383
        %v400 = vsub.f32 %v318, %v384
        %v401 = vsub.f32 %v319, %v385
        %v402 = vsub.f32 %v320, %v386
        %v403 = vsub.f32 %v321, %v387
        %v404 = vsub.f32 %v322, %v388
        %v405 = vsub.f32 %v323, %v389
        %v406 = vsub.f32 %v324, %v390
        %v407 = vsub.f32 %v325, %v391
        %v408 = vsub.f32 %v326, %v392
        %v409 = vsub.f32 %v327, %v393
        %v410 = vsub.f32 %v328, %v394
        %v411 = vsub.f32 %v329, %v395
        %v412 = vsub.f32 %v330, %v396
        %v413 = vsub.f32 %v331, %v397
        %v414 = vsub.f32 %v332, %v398
        %v415 = vsub.f32 %v333, %v399
        %v416 = vmul.f32 %v400, %v400
        %v417 = vmul.f32 %v401, %v401
        %v418 = vmul.f32 %v402, %v402
        %v419 = vmul.f32 %v403, %v403
        %v420 = vmul.f32 %v404, %v404
        %v421 = vmul.f32 %v405, %v405
        %v422 = vmul.f32 %v406, %v406
        %v423 = vmul.f32 %v407, %v407
        %v424 = vmul.f32 %v408, %v408
        %v425 = vmul.f32 %v409, %v409
        %v426 = vmul.f32 %v410, %v410
        %v427 = vmul.f32 %v411, %v411
        %v428 = vmul.f32 %v412, %v412
        %v429 = vmul.f32 %v413, %v413
        %v430 = vmul.f32 %v414, %v414
        %v431 = vmul.f32 %v415, %v415
        %v432 = vsel %vm334, %v416, 0.0
        %433 = vadd.xlane.f32.xlu0 %v432
        %v434 = vpop.xlane.xlu0 %433
        %v435 = vsel %vm334, %v417, 0.0
        %436 = vadd.xlane.f32.xlu0 %v435
        %v437 = vpop.xlane.xlu0 %436
        %v438 = vsel %vm334, %v418, 0.0
        %439 = vadd.xlane.f32.xlu0 %v438
        %v440 = vpop.xlane.xlu0 %439
        %v441 = vsel %vm334, %v419, 0.0
        %442 = vadd.xlane.f32.xlu0 %v441
        %v443 = vpop.xlane.xlu0 %442
        %v444 = vsel %vm334, %v420, 0.0
        %445 = vadd.xlane.f32.xlu0 %v444
        %v446 = vpop.xlane.xlu0 %445
        %v447 = vsel %vm334, %v421, 0.0
        %448 = vadd.xlane.f32.xlu0 %v447
        %v449 = vpop.xlane.xlu0 %448
        %v450 = vsel %vm334, %v422, 0.0
        %451 = vadd.xlane.f32.xlu0 %v450
        %v452 = vpop.xlane.xlu0 %451
        %v453 = vsel %vm334, %v423, 0.0
        %454 = vadd.xlane.f32.xlu0 %v453
        %v455 = vpop.xlane.xlu0 %454
        %v456 = vsel %vm334, %v424, 0.0
        %457 = vadd.xlane.f32.xlu0 %v456
        %v458 = vpop.xlane.xlu0 %457
        %v459 = vsel %vm334, %v425, 0.0
        %460 = vadd.xlane.f32.xlu0 %v459
        %v461 = vpop.xlane.xlu0 %460
        %v462 = vsel %vm334, %v426, 0.0
        %463 = vadd.xlane.f32.xlu0 %v462
        %v464 = vpop.xlane.xlu0 %463
        %v465 = vsel %vm334, %v427, 0.0
        %466 = vadd.xlane.f32.xlu0 %v465
        %v467 = vpop.xlane.xlu0 %466
        %v468 = vsel %vm334, %v428, 0.0
        %469 = vadd.xlane.f32.xlu0 %v468
        %v470 = vpop.xlane.xlu0 %469
        %v471 = vsel %vm334, %v429, 0.0
        %472 = vadd.xlane.f32.xlu0 %v471
        %v473 = vpop.xlane.xlu0 %472
        %v474 = vsel %vm334, %v430, 0.0
        %475 = vadd.xlane.f32.xlu0 %v474
        %v476 = vpop.xlane.xlu0 %475
        %v477 = vsel %vm334, %v431, 0.0
        %478 = vadd.xlane.f32.xlu0 %v477
        %v479 = vpop.xlane.xlu0 %478
        %v480 = vmul.f32 %v434, %v383
        %v481 = vmul.f32 %v437, %v383
        %v482 = vmul.f32 %v440, %v383
        %v483 = vmul.f32 %v443, %v383
        %v484 = vmul.f32 %v446, %v383
        %v485 = vmul.f32 %v449, %v383
        %v486 = vmul.f32 %v452, %v383
        %v487 = vmul.f32 %v455, %v383
        %v488 = vmul.f32 %v458, %v383
        %v489 = vmul.f32 %v461, %v383
        %v490 = vmul.f32 %v464, %v383
        %v491 = vmul.f32 %v467, %v383
        %v492 = vmul.f32 %v470, %v383
        %v493 = vmul.f32 %v473, %v383
        %v494 = vmul.f32 %v476, %v383
        %v495 = vmul.f32 %v479, %v383
        %v496 = vadd.f32 %v480, 1e-05
        %v497 = vadd.f32 %v481, 1e-05
        %v498 = vadd.f32 %v482, 1e-05
        %v499 = vadd.f32 %v483, 1e-05
        %v500 = vadd.f32 %v484, 1e-05
        %v501 = vadd.f32 %v485, 1e-05
        %v502 = vadd.f32 %v486, 1e-05
        %v503 = vadd.f32 %v487, 1e-05
        %v504 = vadd.f32 %v488, 1e-05
        %v505 = vadd.f32 %v489, 1e-05
        %v506 = vadd.f32 %v490, 1e-05
        %v507 = vadd.f32 %v491, 1e-05
        %v508 = vadd.f32 %v492, 1e-05
        %v509 = vadd.f32 %v493, 1e-05
        %v510 = vadd.f32 %v494, 1e-05
        %v511 = vadd.f32 %v495, 1e-05
        %v512 = vrsqrt.pop %v496
        %v513 = vrsqrt.pop %v497
        %v514 = vrsqrt.pop %v498
        %v515 = vrsqrt.pop %v499
        %v516 = vrsqrt.pop %v500
        %v517 = vrsqrt.pop %v501
        %v518 = vrsqrt.pop %v502
        %v519 = vrsqrt.pop %v503
        %v520 = vrsqrt.pop %v504
        %v521 = vrsqrt.pop %v505
        %v522 = vrsqrt.pop %v506
        %v523 = vrsqrt.pop %v507
        %v524 = vrsqrt.pop %v508
        %v525 = vrsqrt.pop %v509
        %v526 = vrsqrt.pop %v510
        %v527 = vrsqrt.pop %v511
        %v528 = vmul.f32 %v400, %v512
        %v529 = vmul.f32 %v401, %v513
        %v530 = vmul.f32 %v402, %v514
        %v531 = vmul.f32 %v403, %v515
        %v532 = vmul.f32 %v404, %v516
        %v533 = vmul.f32 %v405, %v517
        %v534 = vmul.f32 %v406, %v518
        %v535 = vmul.f32 %v407, %v519
        %v536 = vmul.f32 %v408, %v520
        %v537 = vmul.f32 %v409, %v521
        %v538 = vmul.f32 %v410, %v522
        %v539 = vmul.f32 %v411, %v523
        %v540 = vmul.f32 %v412, %v524
        %v541 = vmul.f32 %v413, %v525
        %v542 = vmul.f32 %v414, %v526
        %v543 = vmul.f32 %v415, %v527
        %v544 = vld [vmem:[%s1] sm:$0x1]
        %v546 = vlaneseq
        %v547 = vshrl.u32 %v546, 7
        %v548 = vsub.s32 0, %v547
        %v549 = vrot.slane %v544, %v548
        %v551 = vmul.f32 %v528, %v549
        %v552 = vmul.f32 %v529, %v549
        %v553 = vmul.f32 %v530, %v549
        %v554 = vmul.f32 %v531, %v549
        %v555 = vmul.f32 %v532, %v549
        %v556 = vmul.f32 %v533, %v549
        %v557 = vmul.f32 %v534, %v549
        %v558 = vmul.f32 %v535, %v549
        %v559 = vmul.f32 %v536, %v549
        %v560 = vmul.f32 %v537, %v549
        %v561 = vmul.f32 %v538, %v549
        %v562 = vmul.f32 %v539, %v549
        %v563 = vmul.f32 %v540, %v549
        %v564 = vmul.f32 %v541, %v549
        %v565 = vmul.f32 %v542, %v549
        %v566 = vmul.f32 %v543, %v549
        %v567 = vld [vmem:[%s2] sm:$0x1]
        %v569 = vlaneseq
        %v570 = vshrl.u32 %v569, 7
        %v571 = vsub.s32 0, %v570
        %v572 = vrot.slane %v567, %v571
        %v574 = vadd.f32 %v551, %v572
        %v575 = vadd.f32 %v552, %v572
        %v576 = vadd.f32 %v553, %v572
        %v577 = vadd.f32 %v554, %v572
        %v578 = vadd.f32 %v555, %v572
        %v579 = vadd.f32 %v556, %v572
        %v580 = vadd.f32 %v557, %v572
        %v581 = vadd.f32 %v558, %v572
        %v582 = vadd.f32 %v559, %v572
        %v583 = vadd.f32 %v560, %v572
        %v584 = vadd.f32 %v561, %v572
        %v585 = vadd.f32 %v562, %v572
        %v586 = vadd.f32 %v563, %v572
        %v587 = vadd.f32 %v564, %v572
        %v588 = vadd.f32 %v565, %v572
        %v589 = vadd.f32 %v566, %v572
        %v590 = vpack.c.bf16 %v575, %v574
        %v591 = vpack.c.bf16 %v577, %v576
        %v592 = vpack.c.bf16 %v579, %v578
        %v593 = vpack.c.bf16 %v581, %v580
        %v594 = vpack.c.bf16 %v583, %v582
        %v595 = vpack.c.bf16 %v585, %v584
        %v596 = vpack.c.bf16 %v587, %v586
        %v597 = vpack.c.bf16 %v589, %v588
        %v598 = vld [vmem:[%s3] sm:$0xff]
        %v599 = vld [vmem:[%s3 + $0x8] sm:$0xff]
        %v600 = vld [vmem:[%s3 + $0x10] sm:$0xff]
        %v601 = vld [vmem:[%s3 + $0x18] sm:$0xff]
        %v606 = vunpack.c.l.b16 %v598
        %v607 = vunpack.c.h.b16 %v598
        %v608 = vunpack.c.l.b16 %v599
        %v609 = vunpack.c.h.b16 %v599
        %v610 = vunpack.c.l.b16 %v600
        %v611 = vunpack.c.h.b16 %v600
        %v612 = vunpack.c.l.b16 %v601
        %v613 = vunpack.c.h.b16 %v601
        %v614 = vpack.c.b16 %v608, %v606
        %v615 = vpack.c.b16 %v609, %v607
        %v616 = vpack.c.b16 %v612, %v610
        %v617 = vpack.c.b16 %v613, %v611
        %v623 = vsel %vm334, %v590, 0
        %v626 = vsel %vm334, %v591, 0
        %v629 = vsel %vm334, %v592, 0
        %v632 = vsel %vm334, %v593, 0
        %v635 = vsel %vm334, %v594, 0
        %v638 = vsel %vm334, %v595, 0
        %v641 = vsel %vm334, %v596, 0
        %v644 = vsel %vm334, %v597, 0
        %646 = vmatprep.subr.bf16.mxu0 %v615
        %647 = vmatpush1.bf16.msra.mxu0 %v614
        %648 = vmatprep.subr.bf16.mxu0 %v617
        %649 = vmatpush1.bf16.msra.mxu0 %v616
        %650 = vmatprep.subr.bf16.mxu0 0
        %651 = vmatpush1.bf16.msra.mxu0 0
        %652 = vmatprep.subr.bf16.mxu0 0
        %653 = vmatpush1.bf16.msra.mxu0 0
        %654 = vmatprep.subr.bf16.mxu0 0
        %655 = vmatpush1.bf16.msra.mxu0 0
        %656 = vmatprep.subr.bf16.mxu0 0
        %657 = vmatpush1.bf16.msra.mxu0 0
        %658 = vmatprep.subr.bf16.mxu0 0
        %659 = vmatpush1.bf16.msra.mxu0 0
        %660 = vmatprep.subr.bf16.mxu0 0
        %661 = vmatpush1.bf16.msra.mxu0 0
        %662 = vmatprep.subr.bf16.mxu0 0
        %663 = vmatpush1.bf16.msra.mxu0 0
        %664 = vmatprep.subr.bf16.mxu0 0
        %665 = vmatpush1.bf16.msra.mxu0 0
        %666 = vmatprep.subr.bf16.mxu0 0
        %667 = vmatpush1.bf16.msra.mxu0 0
        %668 = vmatprep.subr.bf16.mxu0 0
        %669 = vmatpush1.bf16.msra.mxu0 0
        %670 = vmatprep.subr.bf16.mxu0 0
        %671 = vmatpush1.bf16.msra.mxu0 0
        %672 = vmatprep.subr.bf16.mxu0 0
        %673 = vmatpush1.bf16.msra.mxu0 0
        %674 = vmatprep.subr.bf16.mxu0 0
        %675 = vmatpush1.bf16.msra.mxu0 0
        %676 = vmatprep.subr.bf16.mxu0 0
        %677 = vmatpush1.bf16.msra.mxu0 0
        %678 = vmatprep.mubr.bf16.mxu0 0
        %679 = vmatmul.mubr.bf16.gmra.mrb[0].mxu0 %v623
        %v680 = vpop.f32.mrb[0].mxu0
        %v681 = vadd.f32 0.0, %v680
        %v682 = vpop.f32.mrb[0].mxu0
        %v683 = vadd.f32 0.0, %v682
        %v684 = vpop.f32.mrb[0].mxu0
        %v685 = vadd.f32 0.0, %v684
        %v686 = vpop.f32.mrb[0].mxu0
        %v687 = vadd.f32 0.0, %v686
        %688 = vmatprep.mubr.bf16.mxu0 0
        %689 = vmatmul.mubr.bf16.gmra.mrb[0].mxu0 %v626
        %v690 = vpop.f32.mrb[0].mxu0
        %v691 = vadd.f32 0.0, %v690
        %v692 = vpop.f32.mrb[0].mxu0
        %v693 = vadd.f32 0.0, %v692
        %v694 = vpop.f32.mrb[0].mxu0
        %v695 = vadd.f32 0.0, %v694
        %v696 = vpop.f32.mrb[0].mxu0
        %v697 = vadd.f32 0.0, %v696
        %698 = vmatprep.mubr.bf16.mxu0 0
        %699 = vmatmul.mubr.bf16.gmra.mrb[0].mxu0 %v629
        %v700 = vpop.f32.mrb[0].mxu0
        %v701 = vadd.f32 0.0, %v700
        %v702 = vpop.f32.mrb[0].mxu0
        %v703 = vadd.f32 0.0, %v702
        %v704 = vpop.f32.mrb[0].mxu0
        %v705 = vadd.f32 0.0, %v704
        %v706 = vpop.f32.mrb[0].mxu0
        %v707 = vadd.f32 0.0, %v706
        %708 = vmatprep.mubr.bf16.mxu0 0
        %709 = vmatmul.mubr.bf16.gmra.mrb[0].mxu0 %v632
        %v710 = vpop.f32.mrb[0].mxu0
        %v711 = vadd.f32 0.0, %v710
        %v712 = vpop.f32.mrb[0].mxu0
        %v713 = vadd.f32 0.0, %v712
        %v714 = vpop.f32.mrb[0].mxu0
        %v715 = vadd.f32 0.0, %v714
        %v716 = vpop.f32.mrb[0].mxu0
        %v717 = vadd.f32 0.0, %v716
        %718 = vmatprep.mubr.bf16.mxu0 0
        %719 = vmatmul.mubr.bf16.gmra.mrb[0].mxu0 %v635
        %v720 = vpop.f32.mrb[0].mxu0
        %v721 = vadd.f32 0.0, %v720
        %v722 = vpop.f32.mrb[0].mxu0
        %v723 = vadd.f32 0.0, %v722
        %v724 = vpop.f32.mrb[0].mxu0
        %v725 = vadd.f32 0.0, %v724
        %v726 = vpop.f32.mrb[0].mxu0
        %v727 = vadd.f32 0.0, %v726
        %728 = vmatprep.mubr.bf16.mxu0 0
        %729 = vmatmul.mubr.bf16.gmra.mrb[0].mxu0 %v638
        %v730 = vpop.f32.mrb[0].mxu0
        %v731 = vadd.f32 0.0, %v730
        %v732 = vpop.f32.mrb[0].mxu0
        %v733 = vadd.f32 0.0, %v732
        %v734 = vpop.f32.mrb[0].mxu0
        %v735 = vadd.f32 0.0, %v734
        %v736 = vpop.f32.mrb[0].mxu0
        %v737 = vadd.f32 0.0, %v736
        %738 = vmatprep.mubr.bf16.mxu0 0
        %739 = vmatmul.mubr.bf16.gmra.mrb[0].mxu0 %v641
        %v740 = vpop.f32.mrb[0].mxu0
        %v741 = vadd.f32 0.0, %v740
        %v742 = vpop.f32.mrb[0].mxu0
        %v743 = vadd.f32 0.0, %v742
        %v744 = vpop.f32.mrb[0].mxu0
        %v745 = vadd.f32 0.0, %v744
        %v746 = vpop.f32.mrb[0].mxu0
        %v747 = vadd.f32 0.0, %v746
        %748 = vmatprep.mubr.bf16.mxu0 0
        %749 = vmatmul.mubr.bf16.gmra.mrb[0].mxu0 %v644
        %v750 = vpop.f32.mrb[0].mxu0
        %v751 = vadd.f32 0.0, %v750
        %v752 = vpop.f32.mrb[0].mxu0
        %v753 = vadd.f32 0.0, %v752
        %v754 = vpop.f32.mrb[0].mxu0
        %v755 = vadd.f32 0.0, %v754
        %v756 = vpop.f32.mrb[0].mxu0
        %v757 = vadd.f32 0.0, %v756
        %758 = vdwg.mxu0
        %v759 = vpack.c.bf16 %v685, %v681
        %v760 = vpack.c.bf16 %v695, %v691
        %v761 = vpack.c.bf16 %v705, %v701
        %v762 = vpack.c.bf16 %v715, %v711
        %v763 = vpack.c.bf16 %v725, %v721
        %v764 = vpack.c.bf16 %v735, %v731
        %v765 = vpack.c.bf16 %v745, %v741
        %v766 = vpack.c.bf16 %v755, %v751
        %v767 = vpack.c.bf16 %v687, %v683
        %v768 = vpack.c.bf16 %v697, %v693
        %v769 = vpack.c.bf16 %v707, %v703
        %v770 = vpack.c.bf16 %v717, %v713
        %v771 = vpack.c.bf16 %v727, %v723
        %v772 = vpack.c.bf16 %v737, %v733
        %v773 = vpack.c.bf16 %v747, %v743
        %v774 = vpack.c.bf16 %v757, %v753
        %v775 = vld [vmem:[%s6] sm:$0x1]
        %v777 = vlaneseq
        %v778 = vshrl.u32 %v777, 7
        %v779 = vsub.s32 0, %v778
        %v780 = vrot.slane %v775, %v779
        %790 = vrot.lane.b32.xlu0 %v759, 64
        %v791 = vpop.permute.xlu0 %790
        %792 = vrot.lane.b32.xlu0 %v760, 64
        %v793 = vpop.permute.xlu0 %792
        %794 = vrot.lane.b32.xlu0 %v761, 64
        %v795 = vpop.permute.xlu0 %794
        %796 = vrot.lane.b32.xlu0 %v762, 64
        %v797 = vpop.permute.xlu0 %796
        %798 = vrot.lane.b32.xlu0 %v763, 64
        %v799 = vpop.permute.xlu0 %798
        %800 = vrot.lane.b32.xlu0 %v764, 64
        %v801 = vpop.permute.xlu0 %800
        %802 = vrot.lane.b32.xlu0 %v765, 64
        %v803 = vpop.permute.xlu0 %802
        %804 = vrot.lane.b32.xlu0 %v766, 64
        %v805 = vpop.permute.xlu0 %804
        %vm806 = vcmask 130048
        %v808 = vsel %vm806, %v759, 0
        %v811 = vsel %vm806, %v760, 0
        %v814 = vsel %vm806, %v761, 0
        %v817 = vsel %vm806, %v762, 0
        %v820 = vsel %vm806, %v763, 0
        %v823 = vsel %vm806, %v764, 0
        %v826 = vsel %vm806, %v765, 0
        %v829 = vsel %vm806, %v766, 0
        %v832 = vsel %vm806, %v791, 0
        %v835 = vsel %vm806, %v793, 0
        %v838 = vsel %vm806, %v795, 0
        %v841 = vsel %vm806, %v797, 0
        %v844 = vsel %vm806, %v799, 0
        %v847 = vsel %vm806, %v801, 0
        %v850 = vsel %vm806, %v803, 0
        %v853 = vsel %vm806, %v805, 0
        %855 = vmatprep.subr.bf16.mxu0 0
        %856 = vmatpush1.bf16.xpose.msra.mxu0 %v832
        %857 = vmatprep.subr.bf16.mxu0 0
        %858 = vmatpush1.bf16.xpose.msra.mxu0 %v835
        %859 = vmatprep.subr.bf16.mxu0 0
        %860 = vmatpush1.bf16.xpose.msra.mxu0 %v838
        %861 = vmatprep.subr.bf16.mxu0 0
        %862 = vmatpush1.bf16.xpose.msra.mxu0 %v841
        %863 = vmatprep.subr.bf16.mxu0 0
        %864 = vmatpush1.bf16.xpose.msra.mxu0 %v844
        %865 = vmatprep.subr.bf16.mxu0 0
        %866 = vmatpush1.bf16.xpose.msra.mxu0 %v847
        %867 = vmatprep.subr.bf16.mxu0 0
        %868 = vmatpush1.bf16.xpose.msra.mxu0 %v850
        %869 = vmatprep.subr.bf16.mxu0 0
        %870 = vmatpush1.bf16.xpose.msra.mxu0 %v853
        %871 = vmatprep.subr.bf16.mxu0 0
        %872 = vmatpush1.bf16.xpose.msra.mxu0 0
        %873 = vmatprep.subr.bf16.mxu0 0
        %874 = vmatpush1.bf16.xpose.msra.mxu0 0
        %875 = vmatprep.subr.bf16.mxu0 0
        %876 = vmatpush1.bf16.xpose.msra.mxu0 0
        %877 = vmatprep.subr.bf16.mxu0 0
        %878 = vmatpush1.bf16.xpose.msra.mxu0 0
        %879 = vmatprep.subr.bf16.mxu0 0
        %880 = vmatpush1.bf16.xpose.msra.mxu0 0
        %881 = vmatprep.subr.bf16.mxu0 0
        %882 = vmatpush1.bf16.xpose.msra.mxu0 0
        %883 = vmatprep.subr.bf16.mxu0 0
        %884 = vmatpush1.bf16.xpose.msra.mxu0 0
        %885 = vmatprep.subr.bf16.mxu0 0
        %886 = vmatpush1.bf16.xpose.msra.mxu0 0
        %887 = vmatprep.mubr.bf16.mxu0 0
        %888 = vmatmul.mubr.bf16.gmra.mrb[0].mxu0 %v808
        %v889 = vpop.f32.mrb[0].mxu0
        %v890 = vadd.f32 %v780, %v889
        %v891 = vpop.f32.mrb[0].mxu0
        %v892 = vpop.f32.mrb[0].mxu0
        %v893 = vadd.f32 %v780, %v892
        %v894 = vpop.f32.mrb[0].mxu0
        %895 = vmatprep.mubr.bf16.mxu0 0
        %896 = vmatmul.mubr.bf16.gmra.mrb[0].mxu0 %v811
        %v897 = vpop.f32.mrb[0].mxu0
        %v898 = vadd.f32 %v780, %v897
        %v899 = vpop.f32.mrb[0].mxu0
        %v900 = vpop.f32.mrb[0].mxu0
        %v901 = vadd.f32 %v780, %v900
        %v902 = vpop.f32.mrb[0].mxu0
        %903 = vmatprep.mubr.bf16.mxu0 0
        %904 = vmatmul.mubr.bf16.gmra.mrb[0].mxu0 %v814
        %v905 = vpop.f32.mrb[0].mxu0
        %v906 = vadd.f32 %v780, %v905
        %v907 = vpop.f32.mrb[0].mxu0
        %v908 = vpop.f32.mrb[0].mxu0
        %v909 = vadd.f32 %v780, %v908
        %v910 = vpop.f32.mrb[0].mxu0
        %911 = vmatprep.mubr.bf16.mxu0 0
        %912 = vmatmul.mubr.bf16.gmra.mrb[0].mxu0 %v817
        %v913 = vpop.f32.mrb[0].mxu0
        %v914 = vadd.f32 %v780, %v913
        %v915 = vpop.f32.mrb[0].mxu0
        %v916 = vpop.f32.mrb[0].mxu0
        %v917 = vadd.f32 %v780, %v916
        %v918 = vpop.f32.mrb[0].mxu0
        %919 = vmatprep.mubr.bf16.mxu0 0
        %920 = vmatmul.mubr.bf16.gmra.mrb[0].mxu0 %v820
        %v921 = vpop.f32.mrb[0].mxu0
        %v922 = vadd.f32 %v780, %v921
        %v923 = vpop.f32.mrb[0].mxu0
        %v924 = vpop.f32.mrb[0].mxu0
        %v925 = vadd.f32 %v780, %v924
        %v926 = vpop.f32.mrb[0].mxu0
        %927 = vmatprep.mubr.bf16.mxu0 0
        %928 = vmatmul.mubr.bf16.gmra.mrb[0].mxu0 %v823
        %v929 = vpop.f32.mrb[0].mxu0
        %v930 = vadd.f32 %v780, %v929
        %v931 = vpop.f32.mrb[0].mxu0
        %v932 = vpop.f32.mrb[0].mxu0
        %v933 = vadd.f32 %v780, %v932
        %v934 = vpop.f32.mrb[0].mxu0
        %935 = vmatprep.mubr.bf16.mxu0 0
        %936 = vmatmul.mubr.bf16.gmra.mrb[0].mxu0 %v826
        %v937 = vpop.f32.mrb[0].mxu0
        %v938 = vadd.f32 %v780, %v937
        %v939 = vpop.f32.mrb[0].mxu0
        %v940 = vpop.f32.mrb[0].mxu0
        %v941 = vadd.f32 %v780, %v940
        %v942 = vpop.f32.mrb[0].mxu0
        %943 = vmatprep.mubr.bf16.mxu0 0
        %944 = vmatmul.mubr.bf16.gmra.mrb[0].mxu0 %v829
        %v945 = vpop.f32.mrb[0].mxu0
        %v946 = vadd.f32 %v780, %v945
        %v947 = vpop.f32.mrb[0].mxu0
        %v948 = vpop.f32.mrb[0].mxu0
        %v949 = vadd.f32 %v780, %v948
        %v950 = vpop.f32.mrb[0].mxu0
        %951 = vdwg.mxu0
        %952 = vmax.xlane.f32.xlu0 %v890
        %v953 = vpop.xlane.xlu0 %952
        %954 = vmax.xlane.f32.xlu0 %v893
        %v955 = vpop.xlane.xlu0 %954
        %956 = vmax.xlane.f32.xlu0 %v898
        %v957 = vpop.xlane.xlu0 %956
        %958 = vmax.xlane.f32.xlu0 %v901
        %v959 = vpop.xlane.xlu0 %958
        %960 = vmax.xlane.f32.xlu0 %v906
        %v961 = vpop.xlane.xlu0 %960
        %962 = vmax.xlane.f32.xlu0 %v909
        %v963 = vpop.xlane.xlu0 %962
        %964 = vmax.xlane.f32.xlu0 %v914
        %v965 = vpop.xlane.xlu0 %964
        %966 = vmax.xlane.f32.xlu0 %v917
        %v967 = vpop.xlane.xlu0 %966
        %968 = vmax.xlane.f32.xlu0 %v922
        %v969 = vpop.xlane.xlu0 %968
        %970 = vmax.xlane.f32.xlu0 %v925
        %v971 = vpop.xlane.xlu0 %970
        %972 = vmax.xlane.f32.xlu0 %v930
        %v973 = vpop.xlane.xlu0 %972
        %974 = vmax.xlane.f32.xlu0 %v933
        %v975 = vpop.xlane.xlu0 %974
        %976 = vmax.xlane.f32.xlu0 %v938
        %v977 = vpop.xlane.xlu0 %976
        %978 = vmax.xlane.f32.xlu0 %v941
        %v979 = vpop.xlane.xlu0 %978
        %980 = vmax.xlane.f32.xlu0 %v946
        %v981 = vpop.xlane.xlu0 %980
        %982 = vmax.xlane.f32.xlu0 %v949
        %v983 = vpop.xlane.xlu0 %982
        %v984 = vsub.f32 %v890, %v953
        %v985 = vsub.f32 %v893, %v955
        %v986 = vsub.f32 %v898, %v957
        %v987 = vsub.f32 %v901, %v959
        %v988 = vsub.f32 %v906, %v961
        %v989 = vsub.f32 %v909, %v963
        %v990 = vsub.f32 %v914, %v965
        %v991 = vsub.f32 %v917, %v967
        %v992 = vsub.f32 %v922, %v969
        %v993 = vsub.f32 %v925, %v971
        %v994 = vsub.f32 %v930, %v973
        %v995 = vsub.f32 %v933, %v975
        %v996 = vsub.f32 %v938, %v977
        %v997 = vsub.f32 %v941, %v979
        %v998 = vsub.f32 %v946, %v981
        %v999 = vsub.f32 %v949, %v983
        %v1000 = vmul.f32 %v984, 1.442695
        %v1001 = vpow.pop %v1000
        %v1002 = vmul.f32 %v985, 1.442695
        %v1003 = vpow.pop %v1002
        %v1004 = vmul.f32 %v986, 1.442695
        %v1005 = vpow.pop %v1004
        %v1006 = vmul.f32 %v987, 1.442695
        %v1007 = vpow.pop %v1006
        %v1008 = vmul.f32 %v988, 1.442695
        %v1009 = vpow.pop %v1008
        %v1010 = vmul.f32 %v989, 1.442695
        %v1011 = vpow.pop %v1010
        %v1012 = vmul.f32 %v990, 1.442695
        %v1013 = vpow.pop %v1012
        %v1014 = vmul.f32 %v991, 1.442695
        %v1015 = vpow.pop %v1014
        %v1016 = vmul.f32 %v992, 1.442695
        %v1017 = vpow.pop %v1016
        %v1018 = vmul.f32 %v993, 1.442695
        %v1019 = vpow.pop %v1018
        %v1020 = vmul.f32 %v994, 1.442695
        %v1021 = vpow.pop %v1020
        %v1022 = vmul.f32 %v995, 1.442695
        %v1023 = vpow.pop %v1022
        %v1024 = vmul.f32 %v996, 1.442695
        %v1025 = vpow.pop %v1024
        %v1026 = vmul.f32 %v997, 1.442695
        %v1027 = vpow.pop %v1026
        %v1028 = vmul.f32 %v998, 1.442695
        %v1029 = vpow.pop %v1028
        %v1030 = vmul.f32 %v999, 1.442695
        %v1031 = vpow.pop %v1030
        %1032 = vadd.xlane.f32.xlu0 %v1001
        %v1033 = vpop.xlane.xlu0 %1032
        %1034 = vadd.xlane.f32.xlu0 %v1003
        %v1035 = vpop.xlane.xlu0 %1034
        %1036 = vadd.xlane.f32.xlu0 %v1005
        %v1037 = vpop.xlane.xlu0 %1036
        %1038 = vadd.xlane.f32.xlu0 %v1007
        %v1039 = vpop.xlane.xlu0 %1038
        %1040 = vadd.xlane.f32.xlu0 %v1009
        %v1041 = vpop.xlane.xlu0 %1040
        %1042 = vadd.xlane.f32.xlu0 %v1011
        %v1043 = vpop.xlane.xlu0 %1042
        %1044 = vadd.xlane.f32.xlu0 %v1013
        %v1045 = vpop.xlane.xlu0 %1044
        %1046 = vadd.xlane.f32.xlu0 %v1015
        %v1047 = vpop.xlane.xlu0 %1046
        %1048 = vadd.xlane.f32.xlu0 %v1017
        %v1049 = vpop.xlane.xlu0 %1048
        %1050 = vadd.xlane.f32.xlu0 %v1019
        %v1051 = vpop.xlane.xlu0 %1050
        %1052 = vadd.xlane.f32.xlu0 %v1021
        %v1053 = vpop.xlane.xlu0 %1052
        %1054 = vadd.xlane.f32.xlu0 %v1023
        %v1055 = vpop.xlane.xlu0 %1054
        %1056 = vadd.xlane.f32.xlu0 %v1025
        %v1057 = vpop.xlane.xlu0 %1056
        %1058 = vadd.xlane.f32.xlu0 %v1027
        %v1059 = vpop.xlane.xlu0 %1058
        %1060 = vadd.xlane.f32.xlu0 %v1029
        %v1061 = vpop.xlane.xlu0 %1060
        %1062 = vadd.xlane.f32.xlu0 %v1031
        %v1063 = vpop.xlane.xlu0 %1062
        %v1064 = vrcp.pop %v1033
        %v1065 = vrcp.pop %v1035
        %v1066 = vrcp.pop %v1037
        %v1067 = vrcp.pop %v1039
        %v1068 = vrcp.pop %v1041
        %v1069 = vrcp.pop %v1043
        %v1070 = vrcp.pop %v1045
        %v1071 = vrcp.pop %v1047
        %v1072 = vrcp.pop %v1049
        %v1073 = vrcp.pop %v1051
        %v1074 = vrcp.pop %v1053
        %v1075 = vrcp.pop %v1055
        %v1076 = vrcp.pop %v1057
        %v1077 = vrcp.pop %v1059
        %v1078 = vrcp.pop %v1061
        %v1079 = vrcp.pop %v1063
        %v1080 = vmul.f32 %v1001, %v1064
        %v1081 = vmul.f32 %v1003, %v1065
        %v1082 = vmul.f32 %v1005, %v1066
        %v1083 = vmul.f32 %v1007, %v1067
        %v1084 = vmul.f32 %v1009, %v1068
        %v1085 = vmul.f32 %v1011, %v1069
        %v1086 = vmul.f32 %v1013, %v1070
        %v1087 = vmul.f32 %v1015, %v1071
        %v1088 = vmul.f32 %v1017, %v1072
        %v1089 = vmul.f32 %v1019, %v1073
        %v1090 = vmul.f32 %v1021, %v1074
        %v1091 = vmul.f32 %v1023, %v1075
        %v1092 = vmul.f32 %v1025, %v1076
        %v1093 = vmul.f32 %v1027, %v1077
        %v1094 = vmul.f32 %v1029, %v1078
        %v1095 = vmul.f32 %v1031, %v1079
        %v1096 = vpack.c.bf16 %v1081, %v1080
        %v1097 = vpack.c.bf16 %v1083, %v1082
        %v1098 = vpack.c.bf16 %v1085, %v1084
        %v1099 = vpack.c.bf16 %v1087, %v1086
        %v1100 = vpack.c.bf16 %v1089, %v1088
        %v1101 = vpack.c.bf16 %v1091, %v1090
        %v1102 = vpack.c.bf16 %v1093, %v1092
        %v1103 = vpack.c.bf16 %v1095, %v1094
        %v1112 = vunpack.c.l.b16 %v1096
        %v1113 = vunpack.c.h.b16 %v1096
        %v1114 = vunpack.c.l.b16 %v1097
        %v1115 = vunpack.c.h.b16 %v1097
        %v1116 = vunpack.c.l.b16 %v1098
        %v1117 = vunpack.c.h.b16 %v1098
        %v1118 = vunpack.c.l.b16 %v1099
        %v1119 = vunpack.c.h.b16 %v1099
        %v1120 = vunpack.c.l.b16 %v1100
        %v1121 = vunpack.c.h.b16 %v1100
        %v1122 = vunpack.c.l.b16 %v1101
        %v1123 = vunpack.c.h.b16 %v1101
        %v1124 = vunpack.c.l.b16 %v1102
        %v1125 = vunpack.c.h.b16 %v1102
        %v1126 = vunpack.c.l.b16 %v1103
        %v1127 = vunpack.c.h.b16 %v1103
        %v1128 = vpack.c.b16 %v1112, %v1112
        %v1129 = vpack.c.b16 %v1113, %v1113
        %v1130 = vpack.c.b16 %v1114, %v1114
        %v1131 = vpack.c.b16 %v1115, %v1115
        %v1132 = vpack.c.b16 %v1116, %v1116
        %v1133 = vpack.c.b16 %v1117, %v1117
        %v1134 = vpack.c.b16 %v1118, %v1118
        %v1135 = vpack.c.b16 %v1119, %v1119
        %v1136 = vpack.c.b16 %v1120, %v1120
        %v1137 = vpack.c.b16 %v1121, %v1121
        %v1138 = vpack.c.b16 %v1122, %v1122
        %v1139 = vpack.c.b16 %v1123, %v1123
        %v1140 = vpack.c.b16 %v1124, %v1124
        %v1141 = vpack.c.b16 %v1125, %v1125
        %v1142 = vpack.c.b16 %v1126, %v1126
        %v1143 = vpack.c.b16 %v1127, %v1127
        %1160 = vst [vmem:[%s306] sm:$0xf] %v1128
        %1161 = vst [vmem:[%s306 + $0x4] sm:$0xf] %v1129
        %1162 = vst [vmem:[%s306 + $0x8] sm:$0xf] %v1130
        %1163 = vst [vmem:[%s306 + $0xc] sm:$0xf] %v1131
        %1164 = vst [vmem:[%s306 + $0x10] sm:$0xf] %v1132
        %1165 = vst [vmem:[%s306 + $0x14] sm:$0xf] %v1133
        %1166 = vst [vmem:[%s306 + $0x18] sm:$0xf] %v1134
        %1167 = vst [vmem:[%s306 + $0x1c] sm:$0xf] %v1135
        %1168 = vst [vmem:[%s306 + $0x20] sm:$0xf] %v1136
        %1169 = vst [vmem:[%s306 + $0x24] sm:$0xf] %v1137
        %1170 = vst [vmem:[%s306 + $0x28] sm:$0xf] %v1138
        %1171 = vst [vmem:[%s306 + $0x2c] sm:$0xf] %v1139
        %1172 = vst [vmem:[%s306 + $0x30] sm:$0xf] %v1140
        %1173 = vst [vmem:[%s306 + $0x34] sm:$0xf] %v1141
        %1174 = vst [vmem:[%s306 + $0x38] sm:$0xf] %v1142
        %1175 = vst [vmem:[%s306 + $0x3c] sm:$0xf] %v1143
        %1176 = vmatprep.subr.bf16.mxu0 0
        %1177 = vmatpush1.bf16.msra.mxu0 %v767
        %1178 = vmatprep.subr.bf16.mxu0 0
        %1179 = vmatpush1.bf16.msra.mxu0 %v768
        %1180 = vmatprep.subr.bf16.mxu0 0
        %1181 = vmatpush1.bf16.msra.mxu0 %v769
        %1182 = vmatprep.subr.bf16.mxu0 0
        %1183 = vmatpush1.bf16.msra.mxu0 %v770
        %1184 = vmatprep.subr.bf16.mxu0 0
        %1185 = vmatpush1.bf16.msra.mxu0 %v771
        %1186 = vmatprep.subr.bf16.mxu0 0
        %1187 = vmatpush1.bf16.msra.mxu0 %v772
        %1188 = vmatprep.subr.bf16.mxu0 0
        %1189 = vmatpush1.bf16.msra.mxu0 %v773
        %1190 = vmatprep.subr.bf16.mxu0 0
        %1191 = vmatpush1.bf16.msra.mxu0 %v774
        %1192 = vmatprep.subr.bf16.mxu0 0
        %1193 = vmatpush1.bf16.msra.mxu0 0
        %1194 = vmatprep.subr.bf16.mxu0 0
        %1195 = vmatpush1.bf16.msra.mxu0 0
        %1196 = vmatprep.subr.bf16.mxu0 0
        %1197 = vmatpush1.bf16.msra.mxu0 0
        %1198 = vmatprep.subr.bf16.mxu0 0
        %1199 = vmatpush1.bf16.msra.mxu0 0
        %1200 = vmatprep.subr.bf16.mxu0 0
        %1201 = vmatpush1.bf16.msra.mxu0 0
        %1202 = vmatprep.subr.bf16.mxu0 0
        %1203 = vmatpush1.bf16.msra.mxu0 0
        %1204 = vmatprep.subr.bf16.mxu0 0
        %1205 = vmatpush1.bf16.msra.mxu0 0
        %1206 = vmatprep.subr.bf16.mxu0 0
        %1207 = vmatpush1.bf16.msra.mxu0 0
        %1208 = vmatprep.mubr.bf16.mxu0 0
        %1209 = vmatmul.mubr.bf16.gmra.mrb[0].mxu0 %v1096
        %v1210 = vpop.f32.mrb[0].mxu0
        %v1211 = vadd.f32 0.0, %v1210
        %v1212 = vpop.f32.mrb[0].mxu0
        %v1213 = vpop.f32.mrb[0].mxu0
        %v1214 = vadd.f32 0.0, %v1213
        %v1215 = vpop.f32.mrb[0].mxu0
        %1216 = vmatprep.mubr.bf16.mxu0 0
        %1217 = vmatmul.mubr.bf16.gmra.mrb[0].mxu0 %v1097
        %v1218 = vpop.f32.mrb[0].mxu0
        %v1219 = vadd.f32 0.0, %v1218
        %v1220 = vpop.f32.mrb[0].mxu0
        %v1221 = vpop.f32.mrb[0].mxu0
        %v1222 = vadd.f32 0.0, %v1221
        %v1223 = vpop.f32.mrb[0].mxu0
        %1224 = vmatprep.mubr.bf16.mxu0 0
        %1225 = vmatmul.mubr.bf16.gmra.mrb[0].mxu0 %v1098
        %v1226 = vpop.f32.mrb[0].mxu0
        %v1227 = vadd.f32 0.0, %v1226
        %v1228 = vpop.f32.mrb[0].mxu0
        %v1229 = vpop.f32.mrb[0].mxu0
        %v1230 = vadd.f32 0.0, %v1229
        %v1231 = vpop.f32.mrb[0].mxu0
        %1232 = vmatprep.mubr.bf16.mxu0 0
        %1233 = vmatmul.mubr.bf16.gmra.mrb[0].mxu0 %v1099
        %v1234 = vpop.f32.mrb[0].mxu0
        %v1235 = vadd.f32 0.0, %v1234
        %v1236 = vpop.f32.mrb[0].mxu0
        %v1237 = vpop.f32.mrb[0].mxu0
        %v1238 = vadd.f32 0.0, %v1237
        %v1239 = vpop.f32.mrb[0].mxu0
        %1240 = vmatprep.mubr.bf16.mxu0 0
        %1241 = vmatmul.mubr.bf16.gmra.mrb[0].mxu0 %v1100
        %v1242 = vpop.f32.mrb[0].mxu0
        %v1243 = vadd.f32 0.0, %v1242
        %v1244 = vpop.f32.mrb[0].mxu0
        %v1245 = vpop.f32.mrb[0].mxu0
        %v1246 = vadd.f32 0.0, %v1245
        %v1247 = vpop.f32.mrb[0].mxu0
        %1248 = vmatprep.mubr.bf16.mxu0 0
        %1249 = vmatmul.mubr.bf16.gmra.mrb[0].mxu0 %v1101
        %v1250 = vpop.f32.mrb[0].mxu0
        %v1251 = vadd.f32 0.0, %v1250
        %v1252 = vpop.f32.mrb[0].mxu0
        %v1253 = vpop.f32.mrb[0].mxu0
        %v1254 = vadd.f32 0.0, %v1253
        %v1255 = vpop.f32.mrb[0].mxu0
        %1256 = vmatprep.mubr.bf16.mxu0 0
        %1257 = vmatmul.mubr.bf16.gmra.mrb[0].mxu0 %v1102
        %v1258 = vpop.f32.mrb[0].mxu0
        %v1259 = vadd.f32 0.0, %v1258
        %v1260 = vpop.f32.mrb[0].mxu0
        %v1261 = vpop.f32.mrb[0].mxu0
        %v1262 = vadd.f32 0.0, %v1261
        %v1263 = vpop.f32.mrb[0].mxu0
        %1264 = vmatprep.mubr.bf16.mxu0 0
        %1265 = vmatmul.mubr.bf16.gmra.mrb[0].mxu0 %v1103
        %v1266 = vpop.f32.mrb[0].mxu0
        %v1267 = vadd.f32 0.0, %v1266
        %v1268 = vpop.f32.mrb[0].mxu0
        %v1269 = vpop.f32.mrb[0].mxu0
        %v1270 = vadd.f32 0.0, %v1269
        %v1271 = vpop.f32.mrb[0].mxu0
        %1272 = vdwg.mxu0
        %v1273 = vpack.c.bf16 %v1214, %v1211
        %v1274 = vpack.c.bf16 %v1222, %v1219
        %v1275 = vpack.c.bf16 %v1230, %v1227
        %v1276 = vpack.c.bf16 %v1238, %v1235
        %v1277 = vpack.c.bf16 %v1246, %v1243
        %v1278 = vpack.c.bf16 %v1254, %v1251
        %v1279 = vpack.c.bf16 %v1262, %v1259
        %v1280 = vpack.c.bf16 %v1270, %v1267
        %v1281 = vld [vmem:[%s6] sm:$0x1]
        %v1283 = vlaneseq
        %v1284 = vshrl.u32 %v1283, 7
        %v1285 = vsub.s32 0, %v1284
        %v1286 = vrot.slane %v1281, %v1285
        %1288 = vrot.lane.b32.xlu0 %v759, 112
        %v1289 = vpop.permute.xlu0 %1288
        %1290 = vrot.lane.b32.xlu0 %v760, 112
        %v1291 = vpop.permute.xlu0 %1290
        %1292 = vrot.lane.b32.xlu0 %v761, 112
        %v1293 = vpop.permute.xlu0 %1292
        %1294 = vrot.lane.b32.xlu0 %v762, 112
        %v1295 = vpop.permute.xlu0 %1294
        %1296 = vrot.lane.b32.xlu0 %v763, 112
        %v1297 = vpop.permute.xlu0 %1296
        %1298 = vrot.lane.b32.xlu0 %v764, 112
        %v1299 = vpop.permute.xlu0 %1298
        %1300 = vrot.lane.b32.xlu0 %v765, 112
        %v1301 = vpop.permute.xlu0 %1300
        %1302 = vrot.lane.b32.xlu0 %v766, 112
        %v1303 = vpop.permute.xlu0 %1302
        %1304 = vrot.lane.b32.xlu0 %v759, 48
        %v1305 = vpop.permute.xlu0 %1304
        %1306 = vrot.lane.b32.xlu0 %v760, 48
        %v1307 = vpop.permute.xlu0 %1306
        %1308 = vrot.lane.b32.xlu0 %v761, 48
        %v1309 = vpop.permute.xlu0 %1308
        %1310 = vrot.lane.b32.xlu0 %v762, 48
        %v1311 = vpop.permute.xlu0 %1310
        %1312 = vrot.lane.b32.xlu0 %v763, 48
        %v1313 = vpop.permute.xlu0 %1312
        %1314 = vrot.lane.b32.xlu0 %v764, 48
        %v1315 = vpop.permute.xlu0 %1314
        %1316 = vrot.lane.b32.xlu0 %v765, 48
        %v1317 = vpop.permute.xlu0 %1316
        %1318 = vrot.lane.b32.xlu0 %v766, 48
        %v1319 = vpop.permute.xlu0 %1318
        %v1321 = vsel %vm806, %v1289, 0
        %v1324 = vsel %vm806, %v1291, 0
        %v1327 = vsel %vm806, %v1293, 0
        %v1330 = vsel %vm806, %v1295, 0
        %v1333 = vsel %vm806, %v1297, 0
        %v1336 = vsel %vm806, %v1299, 0
        %v1339 = vsel %vm806, %v1301, 0
        %v1342 = vsel %vm806, %v1303, 0
        %v1345 = vsel %vm806, %v1305, 0
        %v1348 = vsel %vm806, %v1307, 0
        %v1351 = vsel %vm806, %v1309, 0
        %v1354 = vsel %vm806, %v1311, 0
        %v1357 = vsel %vm806, %v1313, 0
        %v1360 = vsel %vm806, %v1315, 0
        %v1363 = vsel %vm806, %v1317, 0
        %v1366 = vsel %vm806, %v1319, 0
        %1368 = vmatprep.subr.bf16.mxu0 0
        %1369 = vmatpush1.bf16.xpose.msra.mxu0 %v1345
        %1370 = vmatprep.subr.bf16.mxu0 0
        %1371 = vmatpush1.bf16.xpose.msra.mxu0 %v1348
        %1372 = vmatprep.subr.bf16.mxu0 0
        %1373 = vmatpush1.bf16.xpose.msra.mxu0 %v1351
        %1374 = vmatprep.subr.bf16.mxu0 0
        %1375 = vmatpush1.bf16.xpose.msra.mxu0 %v1354
        %1376 = vmatprep.subr.bf16.mxu0 0
        %1377 = vmatpush1.bf16.xpose.msra.mxu0 %v1357
        %1378 = vmatprep.subr.bf16.mxu0 0
        %1379 = vmatpush1.bf16.xpose.msra.mxu0 %v1360
        %1380 = vmatprep.subr.bf16.mxu0 0
        %1381 = vmatpush1.bf16.xpose.msra.mxu0 %v1363
        %1382 = vmatprep.subr.bf16.mxu0 0
        %1383 = vmatpush1.bf16.xpose.msra.mxu0 %v1366
        %1384 = vmatprep.subr.bf16.mxu0 0
        %1385 = vmatpush1.bf16.xpose.msra.mxu0 0
        %1386 = vmatprep.subr.bf16.mxu0 0
        %1387 = vmatpush1.bf16.xpose.msra.mxu0 0
        %1388 = vmatprep.subr.bf16.mxu0 0
        %1389 = vmatpush1.bf16.xpose.msra.mxu0 0
        %1390 = vmatprep.subr.bf16.mxu0 0
        %1391 = vmatpush1.bf16.xpose.msra.mxu0 0
        %1392 = vmatprep.subr.bf16.mxu0 0
        %1393 = vmatpush1.bf16.xpose.msra.mxu0 0
        %1394 = vmatprep.subr.bf16.mxu0 0
        %1395 = vmatpush1.bf16.xpose.msra.mxu0 0
        %1396 = vmatprep.subr.bf16.mxu0 0
        %1397 = vmatpush1.bf16.xpose.msra.mxu0 0
        %1398 = vmatprep.subr.bf16.mxu0 0
        %1399 = vmatpush1.bf16.xpose.msra.mxu0 0
        %1400 = vmatprep.mubr.bf16.mxu0 0
        %1401 = vmatmul.mubr.bf16.gmra.mrb[0].mxu0 %v1321
        %v1402 = vpop.f32.mrb[0].mxu0
        %v1403 = vadd.f32 %v1286, %v1402
        %v1404 = vpop.f32.mrb[0].mxu0
        %v1405 = vpop.f32.mrb[0].mxu0
        %v1406 = vadd.f32 %v1286, %v1405
        %v1407 = vpop.f32.mrb[0].mxu0
        %1408 = vmatprep.mubr.bf16.mxu0 0
        %1409 = vmatmul.mubr.bf16.gmra.mrb[0].mxu0 %v1324
        %v1410 = vpop.f32.mrb[0].mxu0
        %v1411 = vadd.f32 %v1286, %v1410
        %v1412 = vpop.f32.mrb[0].mxu0
        %v1413 = vpop.f32.mrb[0].mxu0
        %v1414 = vadd.f32 %v1286, %v1413
        %v1415 = vpop.f32.mrb[0].mxu0
        %1416 = vmatprep.mubr.bf16.mxu0 0
        %1417 = vmatmul.mubr.bf16.gmra.mrb[0].mxu0 %v1327
        %v1418 = vpop.f32.mrb[0].mxu0
        %v1419 = vadd.f32 %v1286, %v1418
        %v1420 = vpop.f32.mrb[0].mxu0
        %v1421 = vpop.f32.mrb[0].mxu0
        %v1422 = vadd.f32 %v1286, %v1421
        %v1423 = vpop.f32.mrb[0].mxu0
        %1424 = vmatprep.mubr.bf16.mxu0 0
        %1425 = vmatmul.mubr.bf16.gmra.mrb[0].mxu0 %v1330
        %v1426 = vpop.f32.mrb[0].mxu0
        %v1427 = vadd.f32 %v1286, %v1426
        %v1428 = vpop.f32.mrb[0].mxu0
        %v1429 = vpop.f32.mrb[0].mxu0
        %v1430 = vadd.f32 %v1286, %v1429
        %v1431 = vpop.f32.mrb[0].mxu0
        %1432 = vmatprep.mubr.bf16.mxu0 0
        %1433 = vmatmul.mubr.bf16.gmra.mrb[0].mxu0 %v1333
        %v1434 = vpop.f32.mrb[0].mxu0
        %v1435 = vadd.f32 %v1286, %v1434
        %v1436 = vpop.f32.mrb[0].mxu0
        %v1437 = vpop.f32.mrb[0].mxu0
        %v1438 = vadd.f32 %v1286, %v1437
        %v1439 = vpop.f32.mrb[0].mxu0
        %1440 = vmatprep.mubr.bf16.mxu0 0
        %1441 = vmatmul.mubr.bf16.gmra.mrb[0].mxu0 %v1336
        %v1442 = vpop.f32.mrb[0].mxu0
        %v1443 = vadd.f32 %v1286, %v1442
        %v1444 = vpop.f32.mrb[0].mxu0
        %v1445 = vpop.f32.mrb[0].mxu0
        %v1446 = vadd.f32 %v1286, %v1445
        %v1447 = vpop.f32.mrb[0].mxu0
        %1448 = vmatprep.mubr.bf16.mxu0 0
        %1449 = vmatmul.mubr.bf16.gmra.mrb[0].mxu0 %v1339
        %v1450 = vpop.f32.mrb[0].mxu0
        %v1451 = vadd.f32 %v1286, %v1450
        %v1452 = vpop.f32.mrb[0].mxu0
        %v1453 = vpop.f32.mrb[0].mxu0
        %v1454 = vadd.f32 %v1286, %v1453
        %v1455 = vpop.f32.mrb[0].mxu0
        %1456 = vmatprep.mubr.bf16.mxu0 0
        %1457 = vmatmul.mubr.bf16.gmra.mrb[0].mxu0 %v1342
        %v1458 = vpop.f32.mrb[0].mxu0
        %v1459 = vadd.f32 %v1286, %v1458
        %v1460 = vpop.f32.mrb[0].mxu0
        %v1461 = vpop.f32.mrb[0].mxu0
        %v1462 = vadd.f32 %v1286, %v1461
        %v1463 = vpop.f32.mrb[0].mxu0
        %1464 = vdwg.mxu0
        %1465 = vmax.xlane.f32.xlu0 %v1403
        %v1466 = vpop.xlane.xlu0 %1465
        %1467 = vmax.xlane.f32.xlu0 %v1406
        %v1468 = vpop.xlane.xlu0 %1467
        %1469 = vmax.xlane.f32.xlu0 %v1411
        %v1470 = vpop.xlane.xlu0 %1469
        %1471 = vmax.xlane.f32.xlu0 %v1414
        %v1472 = vpop.xlane.xlu0 %1471
        %1473 = vmax.xlane.f32.xlu0 %v1419
        %v1474 = vpop.xlane.xlu0 %1473
        %1475 = vmax.xlane.f32.xlu0 %v1422
        %v1476 = vpop.xlane.xlu0 %1475
        %1477 = vmax.xlane.f32.xlu0 %v1427
        %v1478 = vpop.xlane.xlu0 %1477
        %1479 = vmax.xlane.f32.xlu0 %v1430
        %v1480 = vpop.xlane.xlu0 %1479
        %1481 = vmax.xlane.f32.xlu0 %v1435
        %v1482 = vpop.xlane.xlu0 %1481
        %1483 = vmax.xlane.f32.xlu0 %v1438
        %v1484 = vpop.xlane.xlu0 %1483
        %1485 = vmax.xlane.f32.xlu0 %v1443
        %v1486 = vpop.xlane.xlu0 %1485
        %1487 = vmax.xlane.f32.xlu0 %v1446
        %v1488 = vpop.xlane.xlu0 %1487
        %1489 = vmax.xlane.f32.xlu0 %v1451
        %v1490 = vpop.xlane.xlu0 %1489
        %1491 = vmax.xlane.f32.xlu0 %v1454
        %v1492 = vpop.xlane.xlu0 %1491
        %1493 = vmax.xlane.f32.xlu0 %v1459
        %v1494 = vpop.xlane.xlu0 %1493
        %1495 = vmax.xlane.f32.xlu0 %v1462
        %v1496 = vpop.xlane.xlu0 %1495
        %v1497 = vsub.f32 %v1403, %v1466
        %v1498 = vsub.f32 %v1406, %v1468
        %v1499 = vsub.f32 %v1411, %v1470
        %v1500 = vsub.f32 %v1414, %v1472
        %v1501 = vsub.f32 %v1419, %v1474
        %v1502 = vsub.f32 %v1422, %v1476
        %v1503 = vsub.f32 %v1427, %v1478
        %v1504 = vsub.f32 %v1430, %v1480
        %v1505 = vsub.f32 %v1435, %v1482
        %v1506 = vsub.f32 %v1438, %v1484
        %v1507 = vsub.f32 %v1443, %v1486
        %v1508 = vsub.f32 %v1446, %v1488
        %v1509 = vsub.f32 %v1451, %v1490
        %v1510 = vsub.f32 %v1454, %v1492
        %v1511 = vsub.f32 %v1459, %v1494
        %v1512 = vsub.f32 %v1462, %v1496
        %v1513 = vmul.f32 %v1497, 1.442695
        %v1514 = vpow.pop %v1513
        %v1515 = vmul.f32 %v1498, 1.442695
        %v1516 = vpow.pop %v1515
        %v1517 = vmul.f32 %v1499, 1.442695
        %v1518 = vpow.pop %v1517
        %v1519 = vmul.f32 %v1500, 1.442695
        %v1520 = vpow.pop %v1519
        %v1521 = vmul.f32 %v1501, 1.442695
        %v1522 = vpow.pop %v1521
        %v1523 = vmul.f32 %v1502, 1.442695
        %v1524 = vpow.pop %v1523
        %v1525 = vmul.f32 %v1503, 1.442695
        %v1526 = vpow.pop %v1525
        %v1527 = vmul.f32 %v1504, 1.442695
        %v1528 = vpow.pop %v1527
        %v1529 = vmul.f32 %v1505, 1.442695
        %v1530 = vpow.pop %v1529
        %v1531 = vmul.f32 %v1506, 1.442695
        %v1532 = vpow.pop %v1531
        %v1533 = vmul.f32 %v1507, 1.442695
        %v1534 = vpow.pop %v1533
        %v1535 = vmul.f32 %v1508, 1.442695
        %v1536 = vpow.pop %v1535
        %v1537 = vmul.f32 %v1509, 1.442695
        %v1538 = vpow.pop %v1537
        %v1539 = vmul.f32 %v1510, 1.442695
        %v1540 = vpow.pop %v1539
        %v1541 = vmul.f32 %v1511, 1.442695
        %v1542 = vpow.pop %v1541
        %v1543 = vmul.f32 %v1512, 1.442695
        %v1544 = vpow.pop %v1543
        %1545 = vadd.xlane.f32.xlu0 %v1514
        %v1546 = vpop.xlane.xlu0 %1545
        %1547 = vadd.xlane.f32.xlu0 %v1516
        %v1548 = vpop.xlane.xlu0 %1547
        %1549 = vadd.xlane.f32.xlu0 %v1518
        %v1550 = vpop.xlane.xlu0 %1549
        %1551 = vadd.xlane.f32.xlu0 %v1520
        %v1552 = vpop.xlane.xlu0 %1551
        %1553 = vadd.xlane.f32.xlu0 %v1522
        %v1554 = vpop.xlane.xlu0 %1553
        %1555 = vadd.xlane.f32.xlu0 %v1524
        %v1556 = vpop.xlane.xlu0 %1555
        %1557 = vadd.xlane.f32.xlu0 %v1526
        %v1558 = vpop.xlane.xlu0 %1557
        %1559 = vadd.xlane.f32.xlu0 %v1528
        %v1560 = vpop.xlane.xlu0 %1559
        %1561 = vadd.xlane.f32.xlu0 %v1530
        %v1562 = vpop.xlane.xlu0 %1561
        %1563 = vadd.xlane.f32.xlu0 %v1532
        %v1564 = vpop.xlane.xlu0 %1563
        %1565 = vadd.xlane.f32.xlu0 %v1534
        %v1566 = vpop.xlane.xlu0 %1565
        %1567 = vadd.xlane.f32.xlu0 %v1536
        %v1568 = vpop.xlane.xlu0 %1567
        %1569 = vadd.xlane.f32.xlu0 %v1538
        %v1570 = vpop.xlane.xlu0 %1569
        %1571 = vadd.xlane.f32.xlu0 %v1540
        %v1572 = vpop.xlane.xlu0 %1571
        %1573 = vadd.xlane.f32.xlu0 %v1542
        %v1574 = vpop.xlane.xlu0 %1573
        %1575 = vadd.xlane.f32.xlu0 %v1544
        %v1576 = vpop.xlane.xlu0 %1575
        %v1577 = vrcp.pop %v1546
        %v1578 = vrcp.pop %v1548
        %v1579 = vrcp.pop %v1550
        %v1580 = vrcp.pop %v1552
        %v1581 = vrcp.pop %v1554
        %v1582 = vrcp.pop %v1556
        %v1583 = vrcp.pop %v1558
        %v1584 = vrcp.pop %v1560
        %v1585 = vrcp.pop %v1562
        %v1586 = vrcp.pop %v1564
        %v1587 = vrcp.pop %v1566
        %v1588 = vrcp.pop %v1568
        %v1589 = vrcp.pop %v1570
        %v1590 = vrcp.pop %v1572
        %v1591 = vrcp.pop %v1574
        %v1592 = vrcp.pop %v1576
        %v1593 = vmul.f32 %v1514, %v1577
        %v1594 = vmul.f32 %v1516, %v1578
        %v1595 = vmul.f32 %v1518, %v1579
        %v1596 = vmul.f32 %v1520, %v1580
        %v1597 = vmul.f32 %v1522, %v1581
        %v1598 = vmul.f32 %v1524, %v1582
        %v1599 = vmul.f32 %v1526, %v1583
        %v1600 = vmul.f32 %v1528, %v1584
        %v1601 = vmul.f32 %v1530, %v1585
        %v1602 = vmul.f32 %v1532, %v1586
        %v1603 = vmul.f32 %v1534, %v1587
        %v1604 = vmul.f32 %v1536, %v1588
        %v1605 = vmul.f32 %v1538, %v1589
        %v1606 = vmul.f32 %v1540, %v1590
        %v1607 = vmul.f32 %v1542, %v1591
        %v1608 = vmul.f32 %v1544, %v1592
        %v1609 = vpack.c.bf16 %v1594, %v1593
        %v1610 = vpack.c.bf16 %v1596, %v1595
        %v1611 = vpack.c.bf16 %v1598, %v1597
        %v1612 = vpack.c.bf16 %v1600, %v1599
        %v1613 = vpack.c.bf16 %v1602, %v1601
        %v1614 = vpack.c.bf16 %v1604, %v1603
        %v1615 = vpack.c.bf16 %v1606, %v1605
        %v1616 = vpack.c.bf16 %v1608, %v1607
        %v1625 = vunpack.c.l.b16 %v1609
        %v1626 = vunpack.c.h.b16 %v1609
        %v1627 = vunpack.c.l.b16 %v1610
        %v1628 = vunpack.c.h.b16 %v1610
        %v1629 = vunpack.c.l.b16 %v1611
        %v1630 = vunpack.c.h.b16 %v1611
        %v1631 = vunpack.c.l.b16 %v1612
        %v1632 = vunpack.c.h.b16 %v1612
        %v1633 = vunpack.c.l.b16 %v1613
        %v1634 = vunpack.c.h.b16 %v1613
        %v1635 = vunpack.c.l.b16 %v1614
        %v1636 = vunpack.c.h.b16 %v1614
        %v1637 = vunpack.c.l.b16 %v1615
        %v1638 = vunpack.c.h.b16 %v1615
        %v1639 = vunpack.c.l.b16 %v1616
        %v1640 = vunpack.c.h.b16 %v1616
        %v1641 = vpack.c.b16 %v1625, %v1625
        %v1642 = vpack.c.b16 %v1626, %v1626
        %v1643 = vpack.c.b16 %v1627, %v1627
        %v1644 = vpack.c.b16 %v1628, %v1628
        %v1645 = vpack.c.b16 %v1629, %v1629
        %v1646 = vpack.c.b16 %v1630, %v1630
        %v1647 = vpack.c.b16 %v1631, %v1631
        %v1648 = vpack.c.b16 %v1632, %v1632
        %v1649 = vpack.c.b16 %v1633, %v1633
        %v1650 = vpack.c.b16 %v1634, %v1634
        %v1651 = vpack.c.b16 %v1635, %v1635
        %v1652 = vpack.c.b16 %v1636, %v1636
        %v1653 = vpack.c.b16 %v1637, %v1637
        %v1654 = vpack.c.b16 %v1638, %v1638
        %v1655 = vpack.c.b16 %v1639, %v1639
        %v1656 = vpack.c.b16 %v1640, %v1640
        %s1673 = scalar_lea.vmem %s306, 64 [#allocation2]
        %1674 = vst [vmem:[%s1673] sm:$0xf] %v1641
        %1675 = vst [vmem:[%s1673 + $0x4] sm:$0xf] %v1642
        %1676 = vst [vmem:[%s1673 + $0x8] sm:$0xf] %v1643
        %1677 = vst [vmem:[%s1673 + $0xc] sm:$0xf] %v1644
        %1678 = vst [vmem:[%s1673 + $0x10] sm:$0xf] %v1645
        %1679 = vst [vmem:[%s1673 + $0x14] sm:$0xf] %v1646
        %1680 = vst [vmem:[%s1673 + $0x18] sm:$0xf] %v1647
        %1681 = vst [vmem:[%s1673 + $0x1c] sm:$0xf] %v1648
        %1682 = vst [vmem:[%s1673 + $0x20] sm:$0xf] %v1649
        %1683 = vst [vmem:[%s1673 + $0x24] sm:$0xf] %v1650
        %1684 = vst [vmem:[%s1673 + $0x28] sm:$0xf] %v1651
        %1685 = vst [vmem:[%s1673 + $0x2c] sm:$0xf] %v1652
        %1686 = vst [vmem:[%s1673 + $0x30] sm:$0xf] %v1653
        %1687 = vst [vmem:[%s1673 + $0x34] sm:$0xf] %v1654
        %1688 = vst [vmem:[%s1673 + $0x38] sm:$0xf] %v1655
        %1689 = vst [vmem:[%s1673 + $0x3c] sm:$0xf] %v1656
        %1698 = vrot.lane.b32.xlu0 %v767, 112
        %v1699 = vpop.permute.xlu0 %1698
        %1700 = vrot.lane.b32.xlu0 %v768, 112
        %v1701 = vpop.permute.xlu0 %1700
        %1702 = vrot.lane.b32.xlu0 %v769, 112
        %v1703 = vpop.permute.xlu0 %1702
        %1704 = vrot.lane.b32.xlu0 %v770, 112
        %v1705 = vpop.permute.xlu0 %1704
        %1706 = vrot.lane.b32.xlu0 %v771, 112
        %v1707 = vpop.permute.xlu0 %1706
        %1708 = vrot.lane.b32.xlu0 %v772, 112
        %v1709 = vpop.permute.xlu0 %1708
        %1710 = vrot.lane.b32.xlu0 %v773, 112
        %v1711 = vpop.permute.xlu0 %1710
        %1712 = vrot.lane.b32.xlu0 %v774, 112
        %v1713 = vpop.permute.xlu0 %1712
        %1722 = vmatprep.subr.bf16.mxu0 0
        %1723 = vmatpush1.bf16.msra.mxu0 %v1699
        %1724 = vmatprep.subr.bf16.mxu0 0
        %1725 = vmatpush1.bf16.msra.mxu0 %v1701
        %1726 = vmatprep.subr.bf16.mxu0 0
        %1727 = vmatpush1.bf16.msra.mxu0 %v1703
        %1728 = vmatprep.subr.bf16.mxu0 0
        %1729 = vmatpush1.bf16.msra.mxu0 %v1705
        %1730 = vmatprep.subr.bf16.mxu0 0
        %1731 = vmatpush1.bf16.msra.mxu0 %v1707
        %1732 = vmatprep.subr.bf16.mxu0 0
        %1733 = vmatpush1.bf16.msra.mxu0 %v1709
        %1734 = vmatprep.subr.bf16.mxu0 0
        %1735 = vmatpush1.bf16.msra.mxu0 %v1711
        %1736 = vmatprep.subr.bf16.mxu0 0
        %1737 = vmatpush1.bf16.msra.mxu0 %v1713
        %1738 = vmatprep.subr.bf16.mxu0 0
        %1739 = vmatpush1.bf16.msra.mxu0 0
        %1740 = vmatprep.subr.bf16.mxu0 0
        %1741 = vmatpush1.bf16.msra.mxu0 0
        %1742 = vmatprep.subr.bf16.mxu0 0
        %1743 = vmatpush1.bf16.msra.mxu0 0
        %1744 = vmatprep.subr.bf16.mxu0 0
        %1745 = vmatpush1.bf16.msra.mxu0 0
        %1746 = vmatprep.subr.bf16.mxu0 0
        %1747 = vmatpush1.bf16.msra.mxu0 0
        %1748 = vmatprep.subr.bf16.mxu0 0
        %1749 = vmatpush1.bf16.msra.mxu0 0
        %1750 = vmatprep.subr.bf16.mxu0 0
        %1751 = vmatpush1.bf16.msra.mxu0 0
        %1752 = vmatprep.subr.bf16.mxu0 0
        %1753 = vmatpush1.bf16.msra.mxu0 0
        %1754 = vmatprep.mubr.bf16.mxu0 0
        %1755 = vmatmul.mubr.bf16.gmra.mrb[0].mxu0 %v1609
        %v1756 = vpop.f32.mrb[0].mxu0
        %v1757 = vadd.f32 0.0, %v1756
        %v1758 = vpop.f32.mrb[0].mxu0
        %v1759 = vpop.f32.mrb[0].mxu0
        %v1760 = vadd.f32 0.0, %v1759
        %v1761 = vpop.f32.mrb[0].mxu0
        %1762 = vmatprep.mubr.bf16.mxu0 0
        %1763 = vmatmul.mubr.bf16.gmra.mrb[0].mxu0 %v1610
        %v1764 = vpop.f32.mrb[0].mxu0
        %v1765 = vadd.f32 0.0, %v1764
        %v1766 = vpop.f32.mrb[0].mxu0
        %v1767 = vpop.f32.mrb[0].mxu0
        %v1768 = vadd.f32 0.0, %v1767
        %v1769 = vpop.f32.mrb[0].mxu0
        %1770 = vmatprep.mubr.bf16.mxu0 0
        %1771 = vmatmul.mubr.bf16.gmra.mrb[0].mxu0 %v1611
        %v1772 = vpop.f32.mrb[0].mxu0
        %v1773 = vadd.f32 0.0, %v1772
        %v1774 = vpop.f32.mrb[0].mxu0
        %v1775 = vpop.f32.mrb[0].mxu0
        %v1776 = vadd.f32 0.0, %v1775
        %v1777 = vpop.f32.mrb[0].mxu0
        %1778 = vmatprep.mubr.bf16.mxu0 0
        %1779 = vmatmul.mubr.bf16.gmra.mrb[0].mxu0 %v1612
        %v1780 = vpop.f32.mrb[0].mxu0
        %v1781 = vadd.f32 0.0, %v1780
        %v1782 = vpop.f32.mrb[0].mxu0
        %v1783 = vpop.f32.mrb[0].mxu0
        %v1784 = vadd.f32 0.0, %v1783
        %v1785 = vpop.f32.mrb[0].mxu0
        %1786 = vmatprep.mubr.bf16.mxu0 0
        %1787 = vmatmul.mubr.bf16.gmra.mrb[0].mxu0 %v1613
        %v1788 = vpop.f32.mrb[0].mxu0
        %v1789 = vadd.f32 0.0, %v1788
        %v1790 = vpop.f32.mrb[0].mxu0
        %v1791 = vpop.f32.mrb[0].mxu0
        %v1792 = vadd.f32 0.0, %v1791
        %v1793 = vpop.f32.mrb[0].mxu0
        %1794 = vmatprep.mubr.bf16.mxu0 0
        %1795 = vmatmul.mubr.bf16.gmra.mrb[0].mxu0 %v1614
        %v1796 = vpop.f32.mrb[0].mxu0
        %v1797 = vadd.f32 0.0, %v1796
        %v1798 = vpop.f32.mrb[0].mxu0
        %v1799 = vpop.f32.mrb[0].mxu0
        %v1800 = vadd.f32 0.0, %v1799
        %v1801 = vpop.f32.mrb[0].mxu0
        %1802 = vmatprep.mubr.bf16.mxu0 0
        %1803 = vmatmul.mubr.bf16.gmra.mrb[0].mxu0 %v1615
        %v1804 = vpop.f32.mrb[0].mxu0
        %v1805 = vadd.f32 0.0, %v1804
        %v1806 = vpop.f32.mrb[0].mxu0
        %v1807 = vpop.f32.mrb[0].mxu0
        %v1808 = vadd.f32 0.0, %v1807
        %v1809 = vpop.f32.mrb[0].mxu0
        %1810 = vmatprep.mubr.bf16.mxu0 0
        %1811 = vmatmul.mubr.bf16.gmra.mrb[0].mxu0 %v1616
        %v1812 = vpop.f32.mrb[0].mxu0
        %v1813 = vadd.f32 0.0, %v1812
        %v1814 = vpop.f32.mrb[0].mxu0
        %v1815 = vpop.f32.mrb[0].mxu0
        %v1816 = vadd.f32 0.0, %v1815
        %v1817 = vpop.f32.mrb[0].mxu0
        %1818 = vdwg.mxu0
        %v1819 = vpack.c.bf16 %v1760, %v1757
        %v1820 = vpack.c.bf16 %v1768, %v1765
        %v1821 = vpack.c.bf16 %v1776, %v1773
        %v1822 = vpack.c.bf16 %v1784, %v1781
        %v1823 = vpack.c.bf16 %v1792, %v1789
        %v1824 = vpack.c.bf16 %v1800, %v1797
        %v1825 = vpack.c.bf16 %v1808, %v1805
        %v1826 = vpack.c.bf16 %v1816, %v1813
        %v1827 = vld [vmem:[%s6] sm:$0x1]
        %v1829 = vlaneseq
        %v1830 = vshrl.u32 %v1829, 7
        %v1831 = vsub.s32 0, %v1830
        %v1832 = vrot.slane %v1827, %v1831
        %1834 = vrot.lane.b32.xlu0 %v759, 96
        %v1835 = vpop.permute.xlu0 %1834
        %1836 = vrot.lane.b32.xlu0 %v760, 96
        %v1837 = vpop.permute.xlu0 %1836
        %1838 = vrot.lane.b32.xlu0 %v761, 96
        %v1839 = vpop.permute.xlu0 %1838
        %1840 = vrot.lane.b32.xlu0 %v762, 96
        %v1841 = vpop.permute.xlu0 %1840
        %1842 = vrot.lane.b32.xlu0 %v763, 96
        %v1843 = vpop.permute.xlu0 %1842
        %1844 = vrot.lane.b32.xlu0 %v764, 96
        %v1845 = vpop.permute.xlu0 %1844
        %1846 = vrot.lane.b32.xlu0 %v765, 96
        %v1847 = vpop.permute.xlu0 %1846
        %1848 = vrot.lane.b32.xlu0 %v766, 96
        %v1849 = vpop.permute.xlu0 %1848
        %1850 = vrot.lane.b32.xlu0 %v759, 32
        %v1851 = vpop.permute.xlu0 %1850
        %1852 = vrot.lane.b32.xlu0 %v760, 32
        %v1853 = vpop.permute.xlu0 %1852
        %1854 = vrot.lane.b32.xlu0 %v761, 32
        %v1855 = vpop.permute.xlu0 %1854
        %1856 = vrot.lane.b32.xlu0 %v762, 32
        %v1857 = vpop.permute.xlu0 %1856
        %1858 = vrot.lane.b32.xlu0 %v763, 32
        %v1859 = vpop.permute.xlu0 %1858
        %1860 = vrot.lane.b32.xlu0 %v764, 32
        %v1861 = vpop.permute.xlu0 %1860
        %1862 = vrot.lane.b32.xlu0 %v765, 32
        %v1863 = vpop.permute.xlu0 %1862
        %1864 = vrot.lane.b32.xlu0 %v766, 32
        %v1865 = vpop.permute.xlu0 %1864
        %v1867 = vsel %vm806, %v1835, 0
        %v1870 = vsel %vm806, %v1837, 0
        %v1873 = vsel %vm806, %v1839, 0
        %v1876 = vsel %vm806, %v1841, 0
        %v1879 = vsel %vm806, %v1843, 0
        %v1882 = vsel %vm806, %v1845, 0
        %v1885 = vsel %vm806, %v1847, 0
        %v1888 = vsel %vm806, %v1849, 0
        %v1891 = vsel %vm806, %v1851, 0
        %v1894 = vsel %vm806, %v1853, 0
        %v1897 = vsel %vm806, %v1855, 0
        %v1900 = vsel %vm806, %v1857, 0
        %v1903 = vsel %vm806, %v1859, 0
        %v1906 = vsel %vm806, %v1861, 0
        %v1909 = vsel %vm806, %v1863, 0
        %v1912 = vsel %vm806, %v1865, 0
        %1914 = vmatprep.subr.bf16.mxu0 0
        %1915 = vmatpush1.bf16.xpose.msra.mxu0 %v1891
        %1916 = vmatprep.subr.bf16.mxu0 0
        %1917 = vmatpush1.bf16.xpose.msra.mxu0 %v1894
        %1918 = vmatprep.subr.bf16.mxu0 0
        %1919 = vmatpush1.bf16.xpose.msra.mxu0 %v1897
        %1920 = vmatprep.subr.bf16.mxu0 0
        %1921 = vmatpush1.bf16.xpose.msra.mxu0 %v1900
        %1922 = vmatprep.subr.bf16.mxu0 0
        %1923 = vmatpush1.bf16.xpose.msra.mxu0 %v1903
        %1924 = vmatprep.subr.bf16.mxu0 0
        %1925 = vmatpush1.bf16.xpose.msra.mxu0 %v1906
        %1926 = vmatprep.subr.bf16.mxu0 0
        %1927 = vmatpush1.bf16.xpose.msra.mxu0 %v1909
        %1928 = vmatprep.subr.bf16.mxu0 0
        %1929 = vmatpush1.bf16.xpose.msra.mxu0 %v1912
        %1930 = vmatprep.subr.bf16.mxu0 0
        %1931 = vmatpush1.bf16.xpose.msra.mxu0 0
        %1932 = vmatprep.subr.bf16.mxu0 0
        %1933 = vmatpush1.bf16.xpose.msra.mxu0 0
        %1934 = vmatprep.subr.bf16.mxu0 0
        %1935 = vmatpush1.bf16.xpose.msra.mxu0 0
        %1936 = vmatprep.subr.bf16.mxu0 0
        %1937 = vmatpush1.bf16.xpose.msra.mxu0 0
        %1938 = vmatprep.subr.bf16.mxu0 0
        %1939 = vmatpush1.bf16.xpose.msra.mxu0 0
        %1940 = vmatprep.subr.bf16.mxu0 0
        %1941 = vmatpush1.bf16.xpose.msra.mxu0 0
        %1942 = vmatprep.subr.bf16.mxu0 0
        %1943 = vmatpush1.bf16.xpose.msra.mxu0 0
        %1944 = vmatprep.subr.bf16.mxu0 0
        %1945 = vmatpush1.bf16.xpose.msra.mxu0 0
        %1946 = vmatprep.mubr.bf16.mxu0 0
        %1947 = vmatmul.mubr.bf16.gmra.mrb[0].mxu0 %v1867
        %v1948 = vpop.f32.mrb[0].mxu0
        %v1949 = vadd.f32 %v1832, %v1948
        %v1950 = vpop.f32.mrb[0].mxu0
        %v1951 = vpop.f32.mrb[0].mxu0
        %v1952 = vadd.f32 %v1832, %v1951
        %v1953 = vpop.f32.mrb[0].mxu0
        %1954 = vmatprep.mubr.bf16.mxu0 0
        %1955 = vmatmul.mubr.bf16.gmra.mrb[0].mxu0 %v1870
        %v1956 = vpop.f32.mrb[0].mxu0
        %v1957 = vadd.f32 %v1832, %v1956
        %v1958 = vpop.f32.mrb[0].mxu0
        %v1959 = vpop.f32.mrb[0].mxu0
        %v1960 = vadd.f32 %v1832, %v1959
        %v1961 = vpop.f32.mrb[0].mxu0
        %1962 = vmatprep.mubr.bf16.mxu0 0
        %1963 = vmatmul.mubr.bf16.gmra.mrb[0].mxu0 %v1873
        %v1964 = vpop.f32.mrb[0].mxu0
        %v1965 = vadd.f32 %v1832, %v1964
        %v1966 = vpop.f32.mrb[0].mxu0
        %v1967 = vpop.f32.mrb[0].mxu0
        %v1968 = vadd.f32 %v1832, %v1967
        %v1969 = vpop.f32.mrb[0].mxu0
        %1970 = vmatprep.mubr.bf16.mxu0 0
        %1971 = vmatmul.mubr.bf16.gmra.mrb[0].mxu0 %v1876
        %v1972 = vpop.f32.mrb[0].mxu0
        %v1973 = vadd.f32 %v1832, %v1972
        %v1974 = vpop.f32.mrb[0].mxu0
        %v1975 = vpop.f32.mrb[0].mxu0
        %v1976 = vadd.f32 %v1832, %v1975
        %v1977 = vpop.f32.mrb[0].mxu0
        %1978 = vmatprep.mubr.bf16.mxu0 0
        %1979 = vmatmul.mubr.bf16.gmra.mrb[0].mxu0 %v1879
        %v1980 = vpop.f32.mrb[0].mxu0
        %v1981 = vadd.f32 %v1832, %v1980
        %v1982 = vpop.f32.mrb[0].mxu0
        %v1983 = vpop.f32.mrb[0].mxu0
        %v1984 = vadd.f32 %v1832, %v1983
        %v1985 = vpop.f32.mrb[0].mxu0
        %1986 = vmatprep.mubr.bf16.mxu0 0
        %1987 = vmatmul.mubr.bf16.gmra.mrb[0].mxu0 %v1882
        %v1988 = vpop.f32.mrb[0].mxu0
        %v1989 = vadd.f32 %v1832, %v1988
        %v1990 = vpop.f32.mrb[0].mxu0
        %v1991 = vpop.f32.mrb[0].mxu0
        %v1992 = vadd.f32 %v1832, %v1991
        %v1993 = vpop.f32.mrb[0].mxu0
        %1994 = vmatprep.mubr.bf16.mxu0 0
        %1995 = vmatmul.mubr.bf16.gmra.mrb[0].mxu0 %v1885
        %v1996 = vpop.f32.mrb[0].mxu0
        %v1997 = vadd.f32 %v1832, %v1996
        %v1998 = vpop.f32.mrb[0].mxu0
        %v1999 = vpop.f32.mrb[0].mxu0
        %v2000 = vadd.f32 %v1832, %v1999
        %v2001 = vpop.f32.mrb[0].mxu0
        %2002 = vmatprep.mubr.bf16.mxu0 0
        %2003 = vmatmul.mubr.bf16.gmra.mrb[0].mxu0 %v1888
        %v2004 = vpop.f32.mrb[0].mxu0
        %v2005 = vadd.f32 %v1832, %v2004
        %v2006 = vpop.f32.mrb[0].mxu0
        %v2007 = vpop.f32.mrb[0].mxu0
        %v2008 = vadd.f32 %v1832, %v2007
        %v2009 = vpop.f32.mrb[0].mxu0
        %2010 = vdwg.mxu0
        %2011 = vmax.xlane.f32.xlu0 %v1949
        %v2012 = vpop.xlane.xlu0 %2011
        %2013 = vmax.xlane.f32.xlu0 %v1952
        %v2014 = vpop.xlane.xlu0 %2013
        %2015 = vmax.xlane.f32.xlu0 %v1957
        %v2016 = vpop.xlane.xlu0 %2015
        %2017 = vmax.xlane.f32.xlu0 %v1960
        %v2018 = vpop.xlane.xlu0 %2017
        %2019 = vmax.xlane.f32.xlu0 %v1965
        %v2020 = vpop.xlane.xlu0 %2019
        %2021 = vmax.xlane.f32.xlu0 %v1968
        %v2022 = vpop.xlane.xlu0 %2021
        %2023 = vmax.xlane.f32.xlu0 %v1973
        %v2024 = vpop.xlane.xlu0 %2023
        %2025 = vmax.xlane.f32.xlu0 %v1976
        %v2026 = vpop.xlane.xlu0 %2025
        %2027 = vmax.xlane.f32.xlu0 %v1981
        %v2028 = vpop.xlane.xlu0 %2027
        %2029 = vmax.xlane.f32.xlu0 %v1984
        %v2030 = vpop.xlane.xlu0 %2029
        %2031 = vmax.xlane.f32.xlu0 %v1989
        %v2032 = vpop.xlane.xlu0 %2031
        %2033 = vmax.xlane.f32.xlu0 %v1992
        %v2034 = vpop.xlane.xlu0 %2033
        %2035 = vmax.xlane.f32.xlu0 %v1997
        %v2036 = vpop.xlane.xlu0 %2035
        %2037 = vmax.xlane.f32.xlu0 %v2000
        %v2038 = vpop.xlane.xlu0 %2037
        %2039 = vmax.xlane.f32.xlu0 %v2005
        %v2040 = vpop.xlane.xlu0 %2039
        %2041 = vmax.xlane.f32.xlu0 %v2008
        %v2042 = vpop.xlane.xlu0 %2041
        %v2043 = vsub.f32 %v1949, %v2012
        %v2044 = vsub.f32 %v1952, %v2014
        %v2045 = vsub.f32 %v1957, %v2016
        %v2046 = vsub.f32 %v1960, %v2018
        %v2047 = vsub.f32 %v1965, %v2020
        %v2048 = vsub.f32 %v1968, %v2022
        %v2049 = vsub.f32 %v1973, %v2024
        %v2050 = vsub.f32 %v1976, %v2026
        %v2051 = vsub.f32 %v1981, %v2028
        %v2052 = vsub.f32 %v1984, %v2030
        %v2053 = vsub.f32 %v1989, %v2032
        %v2054 = vsub.f32 %v1992, %v2034
        %v2055 = vsub.f32 %v1997, %v2036
        %v2056 = vsub.f32 %v2000, %v2038
        %v2057 = vsub.f32 %v2005, %v2040
        %v2058 = vsub.f32 %v2008, %v2042
        %v2059 = vmul.f32 %v2043, 1.442695
        %v2060 = vpow.pop %v2059
        %v2061 = vmul.f32 %v2044, 1.442695
        %v2062 = vpow.pop %v2061
        %v2063 = vmul.f32 %v2045, 1.442695
        %v2064 = vpow.pop %v2063
        %v2065 = vmul.f32 %v2046, 1.442695
        %v2066 = vpow.pop %v2065
        %v2067 = vmul.f32 %v2047, 1.442695
        %v2068 = vpow.pop %v2067
        %v2069 = vmul.f32 %v2048, 1.442695
        %v2070 = vpow.pop %v2069
        %v2071 = vmul.f32 %v2049, 1.442695
        %v2072 = vpow.pop %v2071
        %v2073 = vmul.f32 %v2050, 1.442695
        %v2074 = vpow.pop %v2073
        %v2075 = vmul.f32 %v2051, 1.442695
        %v2076 = vpow.pop %v2075
        %v2077 = vmul.f32 %v2052, 1.442695
        %v2078 = vpow.pop %v2077
        %v2079 = vmul.f32 %v2053, 1.442695
        %v2080 = vpow.pop %v2079
        %v2081 = vmul.f32 %v2054, 1.442695
        %v2082 = vpow.pop %v2081
        %v2083 = vmul.f32 %v2055, 1.442695
        %v2084 = vpow.pop %v2083
        %v2085 = vmul.f32 %v2056, 1.442695
        %v2086 = vpow.pop %v2085
        %v2087 = vmul.f32 %v2057, 1.442695
        %v2088 = vpow.pop %v2087
        %v2089 = vmul.f32 %v2058, 1.442695
        %v2090 = vpow.pop %v2089
        %2091 = vadd.xlane.f32.xlu0 %v2060
        %v2092 = vpop.xlane.xlu0 %2091
        %2093 = vadd.xlane.f32.xlu0 %v2062
        %v2094 = vpop.xlane.xlu0 %2093
        %2095 = vadd.xlane.f32.xlu0 %v2064
        %v2096 = vpop.xlane.xlu0 %2095
        %2097 = vadd.xlane.f32.xlu0 %v2066
        %v2098 = vpop.xlane.xlu0 %2097
        %2099 = vadd.xlane.f32.xlu0 %v2068
        %v2100 = vpop.xlane.xlu0 %2099
        %2101 = vadd.xlane.f32.xlu0 %v2070
        %v2102 = vpop.xlane.xlu0 %2101
        %2103 = vadd.xlane.f32.xlu0 %v2072
        %v2104 = vpop.xlane.xlu0 %2103
        %2105 = vadd.xlane.f32.xlu0 %v2074
        %v2106 = vpop.xlane.xlu0 %2105
        %2107 = vadd.xlane.f32.xlu0 %v2076
        %v2108 = vpop.xlane.xlu0 %2107
        %2109 = vadd.xlane.f32.xlu0 %v2078
        %v2110 = vpop.xlane.xlu0 %2109
        %2111 = vadd.xlane.f32.xlu0 %v2080
        %v2112 = vpop.xlane.xlu0 %2111
        %2113 = vadd.xlane.f32.xlu0 %v2082
        %v2114 = vpop.xlane.xlu0 %2113
        %2115 = vadd.xlane.f32.xlu0 %v2084
        %v2116 = vpop.xlane.xlu0 %2115
        %2117 = vadd.xlane.f32.xlu0 %v2086
        %v2118 = vpop.xlane.xlu0 %2117
        %2119 = vadd.xlane.f32.xlu0 %v2088
        %v2120 = vpop.xlane.xlu0 %2119
        %2121 = vadd.xlane.f32.xlu0 %v2090
        %v2122 = vpop.xlane.xlu0 %2121
        %v2123 = vrcp.pop %v2092
        %v2124 = vrcp.pop %v2094
        %v2125 = vrcp.pop %v2096
        %v2126 = vrcp.pop %v2098
        %v2127 = vrcp.pop %v2100
        %v2128 = vrcp.pop %v2102
        %v2129 = vrcp.pop %v2104
        %v2130 = vrcp.pop %v2106
        %v2131 = vrcp.pop %v2108
        %v2132 = vrcp.pop %v2110
        %v2133 = vrcp.pop %v2112
        %v2134 = vrcp.pop %v2114
        %v2135 = vrcp.pop %v2116
        %v2136 = vrcp.pop %v2118
        %v2137 = vrcp.pop %v2120
        %v2138 = vrcp.pop %v2122
        %v2139 = vmul.f32 %v2060, %v2123
        %v2140 = vmul.f32 %v2062, %v2124
        %v2141 = vmul.f32 %v2064, %v2125
        %v2142 = vmul.f32 %v2066, %v2126
        %v2143 = vmul.f32 %v2068, %v2127
        %v2144 = vmul.f32 %v2070, %v2128
        %v2145 = vmul.f32 %v2072, %v2129
        %v2146 = vmul.f32 %v2074, %v2130
        %v2147 = vmul.f32 %v2076, %v2131
        %v2148 = vmul.f32 %v2078, %v2132
        %v2149 = vmul.f32 %v2080, %v2133
        %v2150 = vmul.f32 %v2082, %v2134
        %v2151 = vmul.f32 %v2084, %v2135
        %v2152 = vmul.f32 %v2086, %v2136
        %v2153 = vmul.f32 %v2088, %v2137
        %v2154 = vmul.f32 %v2090, %v2138
        %v2155 = vpack.c.bf16 %v2140, %v2139
        %v2156 = vpack.c.bf16 %v2142, %v2141
        %v2157 = vpack.c.bf16 %v2144, %v2143
        %v2158 = vpack.c.bf16 %v2146, %v2145
        %v2159 = vpack.c.bf16 %v2148, %v2147
        %v2160 = vpack.c.bf16 %v2150, %v2149
        %v2161 = vpack.c.bf16 %v2152, %v2151
        %v2162 = vpack.c.bf16 %v2154, %v2153
        %v2171 = vunpack.c.l.b16 %v2155
        %v2172 = vunpack.c.h.b16 %v2155
        %v2173 = vunpack.c.l.b16 %v2156
        %v2174 = vunpack.c.h.b16 %v2156
        %v2175 = vunpack.c.l.b16 %v2157
        %v2176 = vunpack.c.h.b16 %v2157
        %v2177 = vunpack.c.l.b16 %v2158
        %v2178 = vunpack.c.h.b16 %v2158
        %v2179 = vunpack.c.l.b16 %v2159
        %v2180 = vunpack.c.h.b16 %v2159
        %v2181 = vunpack.c.l.b16 %v2160
        %v2182 = vunpack.c.h.b16 %v2160
        %v2183 = vunpack.c.l.b16 %v2161
        %v2184 = vunpack.c.h.b16 %v2161
        %v2185 = vunpack.c.l.b16 %v2162
        %v2186 = vunpack.c.h.b16 %v2162
        %v2187 = vpack.c.b16 %v2171, %v2171
        %v2188 = vpack.c.b16 %v2172, %v2172
        %v2189 = vpack.c.b16 %v2173, %v2173
        %v2190 = vpack.c.b16 %v2174, %v2174
        %v2191 = vpack.c.b16 %v2175, %v2175
        %v2192 = vpack.c.b16 %v2176, %v2176
        %v2193 = vpack.c.b16 %v2177, %v2177
        %v2194 = vpack.c.b16 %v2178, %v2178
        %v2195 = vpack.c.b16 %v2179, %v2179
        %v2196 = vpack.c.b16 %v2180, %v2180
        %v2197 = vpack.c.b16 %v2181, %v2181
        %v2198 = vpack.c.b16 %v2182, %v2182
        %v2199 = vpack.c.b16 %v2183, %v2183
        %v2200 = vpack.c.b16 %v2184, %v2184
        %v2201 = vpack.c.b16 %v2185, %v2185
        %v2202 = vpack.c.b16 %v2186, %v2186
        %s2219 = scalar_lea.vmem %s306, 128 [#allocation2]
        %2220 = vst [vmem:[%s2219] sm:$0xf] %v2187
        %2221 = vst [vmem:[%s2219 + $0x4] sm:$0xf] %v2188
        %2222 = vst [vmem:[%s2219 + $0x8] sm:$0xf] %v2189
        %2223 = vst [vmem:[%s2219 + $0xc] sm:$0xf] %v2190
        %2224 = vst [vmem:[%s2219 + $0x10] sm:$0xf] %v2191
        %2225 = vst [vmem:[%s2219 + $0x14] sm:$0xf] %v2192
        %2226 = vst [vmem:[%s2219 + $0x18] sm:$0xf] %v2193
        %2227 = vst [vmem:[%s2219 + $0x1c] sm:$0xf] %v2194
        %2228 = vst [vmem:[%s2219 + $0x20] sm:$0xf] %v2195
        %2229 = vst [vmem:[%s2219 + $0x24] sm:$0xf] %v2196
        %2230 = vst [vmem:[%s2219 + $0x28] sm:$0xf] %v2197
        %2231 = vst [vmem:[%s2219 + $0x2c] sm:$0xf] %v2198
        %2232 = vst [vmem:[%s2219 + $0x30] sm:$0xf] %v2199
        %2233 = vst [vmem:[%s2219 + $0x34] sm:$0xf] %v2200
        %2234 = vst [vmem:[%s2219 + $0x38] sm:$0xf] %v2201
        %2235 = vst [vmem:[%s2219 + $0x3c] sm:$0xf] %v2202
        %2236 = vrot.lane.b32.xlu0 %v767, 96
        %v2237 = vpop.permute.xlu0 %2236
        %2238 = vrot.lane.b32.xlu0 %v768, 96
        %v2239 = vpop.permute.xlu0 %2238
        %2240 = vrot.lane.b32.xlu0 %v769, 96
        %v2241 = vpop.permute.xlu0 %2240
        %2242 = vrot.lane.b32.xlu0 %v770, 96
        %v2243 = vpop.permute.xlu0 %2242
        %2244 = vrot.lane.b32.xlu0 %v771, 96
        %v2245 = vpop.permute.xlu0 %2244
        %2246 = vrot.lane.b32.xlu0 %v772, 96
        %v2247 = vpop.permute.xlu0 %2246
        %2248 = vrot.lane.b32.xlu0 %v773, 96
        %v2249 = vpop.permute.xlu0 %2248
        %2250 = vrot.lane.b32.xlu0 %v774, 96
        %v2251 = vpop.permute.xlu0 %2250
        %2260 = vmatprep.subr.bf16.mxu0 0
        %2261 = vmatpush1.bf16.msra.mxu0 %v2237
        %2262 = vmatprep.subr.bf16.mxu0 0
        %2263 = vmatpush1.bf16.msra.mxu0 %v2239
        %2264 = vmatprep.subr.bf16.mxu0 0
        %2265 = vmatpush1.bf16.msra.mxu0 %v2241
        %2266 = vmatprep.subr.bf16.mxu0 0
        %2267 = vmatpush1.bf16.msra.mxu0 %v2243
        %2268 = vmatprep.subr.bf16.mxu0 0
        %2269 = vmatpush1.bf16.msra.mxu0 %v2245
        %2270 = vmatprep.subr.bf16.mxu0 0
        %2271 = vmatpush1.bf16.msra.mxu0 %v2247
        %2272 = vmatprep.subr.bf16.mxu0 0
        %2273 = vmatpush1.bf16.msra.mxu0 %v2249
        %2274 = vmatprep.subr.bf16.mxu0 0
        %2275 = vmatpush1.bf16.msra.mxu0 %v2251
        %2276 = vmatprep.subr.bf16.mxu0 0
        %2277 = vmatpush1.bf16.msra.mxu0 0
        %2278 = vmatprep.subr.bf16.mxu0 0
        %2279 = vmatpush1.bf16.msra.mxu0 0
        %2280 = vmatprep.subr.bf16.mxu0 0
        %2281 = vmatpush1.bf16.msra.mxu0 0
        %2282 = vmatprep.subr.bf16.mxu0 0
        %2283 = vmatpush1.bf16.msra.mxu0 0
        %2284 = vmatprep.subr.bf16.mxu0 0
        %2285 = vmatpush1.bf16.msra.mxu0 0
        %2286 = vmatprep.subr.bf16.mxu0 0
        %2287 = vmatpush1.bf16.msra.mxu0 0
        %2288 = vmatprep.subr.bf16.mxu0 0
        %2289 = vmatpush1.bf16.msra.mxu0 0
        %2290 = vmatprep.subr.bf16.mxu0 0
        %2291 = vmatpush1.bf16.msra.mxu0 0
        %2292 = vmatprep.mubr.bf16.mxu0 0
        %2293 = vmatmul.mubr.bf16.gmra.mrb[0].mxu0 %v2155
        %v2294 = vpop.f32.mrb[0].mxu0
        %v2295 = vadd.f32 0.0, %v2294
        %v2296 = vpop.f32.mrb[0].mxu0
        %v2297 = vpop.f32.mrb[0].mxu0
        %v2298 = vadd.f32 0.0, %v2297
        %v2299 = vpop.f32.mrb[0].mxu0
        %2300 = vmatprep.mubr.bf16.mxu0 0
        %2301 = vmatmul.mubr.bf16.gmra.mrb[0].mxu0 %v2156
        %v2302 = vpop.f32.mrb[0].mxu0
        %v2303 = vadd.f32 0.0, %v2302
        %v2304 = vpop.f32.mrb[0].mxu0
        %v2305 = vpop.f32.mrb[0].mxu0
        %v2306 = vadd.f32 0.0, %v2305
        %v2307 = vpop.f32.mrb[0].mxu0
        %2308 = vmatprep.mubr.bf16.mxu0 0
        %2309 = vmatmul.mubr.bf16.gmra.mrb[0].mxu0 %v2157
        %v2310 = vpop.f32.mrb[0].mxu0
        %v2311 = vadd.f32 0.0, %v2310
        %v2312 = vpop.f32.mrb[0].mxu0
        %v2313 = vpop.f32.mrb[0].mxu0
        %v2314 = vadd.f32 0.0, %v2313
        %v2315 = vpop.f32.mrb[0].mxu0
        %2316 = vmatprep.mubr.bf16.mxu0 0
        %2317 = vmatmul.mubr.bf16.gmra.mrb[0].mxu0 %v2158
        %v2318 = vpop.f32.mrb[0].mxu0
        %v2319 = vadd.f32 0.0, %v2318
        %v2320 = vpop.f32.mrb[0].mxu0
        %v2321 = vpop.f32.mrb[0].mxu0
        %v2322 = vadd.f32 0.0, %v2321
        %v2323 = vpop.f32.mrb[0].mxu0
        %2324 = vmatprep.mubr.bf16.mxu0 0
        %2325 = vmatmul.mubr.bf16.gmra.mrb[0].mxu0 %v2159
        %v2326 = vpop.f32.mrb[0].mxu0
        %v2327 = vadd.f32 0.0, %v2326
        %v2328 = vpop.f32.mrb[0].mxu0
        %v2329 = vpop.f32.mrb[0].mxu0
        %v2330 = vadd.f32 0.0, %v2329
        %v2331 = vpop.f32.mrb[0].mxu0
        %2332 = vmatprep.mubr.bf16.mxu0 0
        %2333 = vmatmul.mubr.bf16.gmra.mrb[0].mxu0 %v2160
        %v2334 = vpop.f32.mrb[0].mxu0
        %v2335 = vadd.f32 0.0, %v2334
        %v2336 = vpop.f32.mrb[0].mxu0
        %v2337 = vpop.f32.mrb[0].mxu0
        %v2338 = vadd.f32 0.0, %v2337
        %v2339 = vpop.f32.mrb[0].mxu0
        %2340 = vmatprep.mubr.bf16.mxu0 0
        %2341 = vmatmul.mubr.bf16.gmra.mrb[0].mxu0 %v2161
        %v2342 = vpop.f32.mrb[0].mxu0
        %v2343 = vadd.f32 0.0, %v2342
        %v2344 = vpop.f32.mrb[0].mxu0
        %v2345 = vpop.f32.mrb[0].mxu0
        %v2346 = vadd.f32 0.0, %v2345
        %v2347 = vpop.f32.mrb[0].mxu0
        %2348 = vmatprep.mubr.bf16.mxu0 0
        %2349 = vmatmul.mubr.bf16.gmra.mrb[0].mxu0 %v2162
        %v2350 = vpop.f32.mrb[0].mxu0
        %v2351 = vadd.f32 0.0, %v2350
        %v2352 = vpop.f32.mrb[0].mxu0
        %v2353 = vpop.f32.mrb[0].mxu0
        %v2354 = vadd.f32 0.0, %v2353
        %v2355 = vpop.f32.mrb[0].mxu0
        %2356 = vdwg.mxu0
        %v2357 = vpack.c.bf16 %v2298, %v2295
        %v2358 = vpack.c.bf16 %v2306, %v2303
        %v2359 = vpack.c.bf16 %v2314, %v2311
        %v2360 = vpack.c.bf16 %v2322, %v2319
        %v2361 = vpack.c.bf16 %v2330, %v2327
        %v2362 = vpack.c.bf16 %v2338, %v2335
        %v2363 = vpack.c.bf16 %v2346, %v2343
        %v2364 = vpack.c.bf16 %v2354, %v2351
        %v2365 = vld [vmem:[%s6] sm:$0x1]
        %v2367 = vlaneseq
        %v2368 = vshrl.u32 %v2367, 7
        %v2369 = vsub.s32 0, %v2368
        %v2370 = vrot.slane %v2365, %v2369
        %2372 = vrot.lane.b32.xlu0 %v759, 80
        %v2373 = vpop.permute.xlu0 %2372
        %2374 = vrot.lane.b32.xlu0 %v760, 80
        %v2375 = vpop.permute.xlu0 %2374
        %2376 = vrot.lane.b32.xlu0 %v761, 80
        %v2377 = vpop.permute.xlu0 %2376
        %2378 = vrot.lane.b32.xlu0 %v762, 80
        %v2379 = vpop.permute.xlu0 %2378
        %2380 = vrot.lane.b32.xlu0 %v763, 80
        %v2381 = vpop.permute.xlu0 %2380
        %2382 = vrot.lane.b32.xlu0 %v764, 80
        %v2383 = vpop.permute.xlu0 %2382
        %2384 = vrot.lane.b32.xlu0 %v765, 80
        %v2385 = vpop.permute.xlu0 %2384
        %2386 = vrot.lane.b32.xlu0 %v766, 80
        %v2387 = vpop.permute.xlu0 %2386
        %2388 = vrot.lane.b32.xlu0 %v759, 16
        %v2389 = vpop.permute.xlu0 %2388
        %2390 = vrot.lane.b32.xlu0 %v760, 16
        %v2391 = vpop.permute.xlu0 %2390
        %2392 = vrot.lane.b32.xlu0 %v761, 16
        %v2393 = vpop.permute.xlu0 %2392
        %2394 = vrot.lane.b32.xlu0 %v762, 16
        %v2395 = vpop.permute.xlu0 %2394
        %2396 = vrot.lane.b32.xlu0 %v763, 16
        %v2397 = vpop.permute.xlu0 %2396
        %2398 = vrot.lane.b32.xlu0 %v764, 16
        %v2399 = vpop.permute.xlu0 %2398
        %2400 = vrot.lane.b32.xlu0 %v765, 16
        %v2401 = vpop.permute.xlu0 %2400
        %2402 = vrot.lane.b32.xlu0 %v766, 16
        %v2403 = vpop.permute.xlu0 %2402
        %v2405 = vsel %vm806, %v2373, 0
        %v2408 = vsel %vm806, %v2375, 0
        %v2411 = vsel %vm806, %v2377, 0
        %v2414 = vsel %vm806, %v2379, 0
        %v2417 = vsel %vm806, %v2381, 0
        %v2420 = vsel %vm806, %v2383, 0
        %v2423 = vsel %vm806, %v2385, 0
        %v2426 = vsel %vm806, %v2387, 0
        %v2429 = vsel %vm806, %v2389, 0
        %v2432 = vsel %vm806, %v2391, 0
        %v2435 = vsel %vm806, %v2393, 0
        %v2438 = vsel %vm806, %v2395, 0
        %v2441 = vsel %vm806, %v2397, 0
        %v2444 = vsel %vm806, %v2399, 0
        %v2447 = vsel %vm806, %v2401, 0
        %v2450 = vsel %vm806, %v2403, 0
        %2452 = vmatprep.subr.bf16.mxu0 0
        %2453 = vmatpush1.bf16.xpose.msra.mxu0 %v2429
        %2454 = vmatprep.subr.bf16.mxu0 0
        %2455 = vmatpush1.bf16.xpose.msra.mxu0 %v2432
        %2456 = vmatprep.subr.bf16.mxu0 0
        %2457 = vmatpush1.bf16.xpose.msra.mxu0 %v2435
        %2458 = vmatprep.subr.bf16.mxu0 0
        %2459 = vmatpush1.bf16.xpose.msra.mxu0 %v2438
        %2460 = vmatprep.subr.bf16.mxu0 0
        %2461 = vmatpush1.bf16.xpose.msra.mxu0 %v2441
        %2462 = vmatprep.subr.bf16.mxu0 0
        %2463 = vmatpush1.bf16.xpose.msra.mxu0 %v2444
        %2464 = vmatprep.subr.bf16.mxu0 0
        %2465 = vmatpush1.bf16.xpose.msra.mxu0 %v2447
        %2466 = vmatprep.subr.bf16.mxu0 0
        %2467 = vmatpush1.bf16.xpose.msra.mxu0 %v2450
        %2468 = vmatprep.subr.bf16.mxu0 0
        %2469 = vmatpush1.bf16.xpose.msra.mxu0 0
        %2470 = vmatprep.subr.bf16.mxu0 0
        %2471 = vmatpush1.bf16.xpose.msra.mxu0 0
        %2472 = vmatprep.subr.bf16.mxu0 0
        %2473 = vmatpush1.bf16.xpose.msra.mxu0 0
        %2474 = vmatprep.subr.bf16.mxu0 0
        %2475 = vmatpush1.bf16.xpose.msra.mxu0 0
        %2476 = vmatprep.subr.bf16.mxu0 0
        %2477 = vmatpush1.bf16.xpose.msra.mxu0 0
        %2478 = vmatprep.subr.bf16.mxu0 0
        %2479 = vmatpush1.bf16.xpose.msra.mxu0 0
        %2480 = vmatprep.subr.bf16.mxu0 0
        %2481 = vmatpush1.bf16.xpose.msra.mxu0 0
        %2482 = vmatprep.subr.bf16.mxu0 0
        %2483 = vmatpush1.bf16.xpose.msra.mxu0 0
        %2484 = vmatprep.mubr.bf16.mxu0 0
        %2485 = vmatmul.mubr.bf16.gmra.mrb[0].mxu0 %v2405
        %v2486 = vpop.f32.mrb[0].mxu0
        %v2487 = vadd.f32 %v2370, %v2486
        %v2488 = vpop.f32.mrb[0].mxu0
        %v2489 = vpop.f32.mrb[0].mxu0
        %v2490 = vadd.f32 %v2370, %v2489
        %v2491 = vpop.f32.mrb[0].mxu0
        %2492 = vmatprep.mubr.bf16.mxu0 0
        %2493 = vmatmul.mubr.bf16.gmra.mrb[0].mxu0 %v2408
        %v2494 = vpop.f32.mrb[0].mxu0
        %v2495 = vadd.f32 %v2370, %v2494
        %v2496 = vpop.f32.mrb[0].mxu0
        %v2497 = vpop.f32.mrb[0].mxu0
        %v2498 = vadd.f32 %v2370, %v2497
        %v2499 = vpop.f32.mrb[0].mxu0
        %2500 = vmatprep.mubr.bf16.mxu0 0
        %2501 = vmatmul.mubr.bf16.gmra.mrb[0].mxu0 %v2411
        %v2502 = vpop.f32.mrb[0].mxu0
        %v2503 = vadd.f32 %v2370, %v2502
        %v2504 = vpop.f32.mrb[0].mxu0
        %v2505 = vpop.f32.mrb[0].mxu0
        %v2506 = vadd.f32 %v2370, %v2505
        %v2507 = vpop.f32.mrb[0].mxu0
        %2508 = vmatprep.mubr.bf16.mxu0 0
        %2509 = vmatmul.mubr.bf16.gmra.mrb[0].mxu0 %v2414
        %v2510 = vpop.f32.mrb[0].mxu0
        %v2511 = vadd.f32 %v2370, %v2510
        %v2512 = vpop.f32.mrb[0].mxu0
        %v2513 = vpop.f32.mrb[0].mxu0
        %v2514 = vadd.f32 %v2370, %v2513
        %v2515 = vpop.f32.mrb[0].mxu0
        %2516 = vmatprep.mubr.bf16.mxu0 0
        %2517 = vmatmul.mubr.bf16.gmra.mrb[0].mxu0 %v2417
        %v2518 = vpop.f32.mrb[0].mxu0
        %v2519 = vadd.f32 %v2370, %v2518
        %v2520 = vpop.f32.mrb[0].mxu0
        %v2521 = vpop.f32.mrb[0].mxu0
        %v2522 = vadd.f32 %v2370, %v2521
        %v2523 = vpop.f32.mrb[0].mxu0
        %2524 = vmatprep.mubr.bf16.mxu0 0
        %2525 = vmatmul.mubr.bf16.gmra.mrb[0].mxu0 %v2420
        %v2526 = vpop.f32.mrb[0].mxu0
        %v2527 = vadd.f32 %v2370, %v2526
        %v2528 = vpop.f32.mrb[0].mxu0
        %v2529 = vpop.f32.mrb[0].mxu0
        %v2530 = vadd.f32 %v2370, %v2529
        %v2531 = vpop.f32.mrb[0].mxu0
        %2532 = vmatprep.mubr.bf16.mxu0 0
        %2533 = vmatmul.mubr.bf16.gmra.mrb[0].mxu0 %v2423
        %v2534 = vpop.f32.mrb[0].mxu0
        %v2535 = vadd.f32 %v2370, %v2534
        %v2536 = vpop.f32.mrb[0].mxu0
        %v2537 = vpop.f32.mrb[0].mxu0
        %v2538 = vadd.f32 %v2370, %v2537
        %v2539 = vpop.f32.mrb[0].mxu0
        %2540 = vmatprep.mubr.bf16.mxu0 0
        %2541 = vmatmul.mubr.bf16.gmra.mrb[0].mxu0 %v2426
        %v2542 = vpop.f32.mrb[0].mxu0
        %v2543 = vadd.f32 %v2370, %v2542
        %v2544 = vpop.f32.mrb[0].mxu0
        %v2545 = vpop.f32.mrb[0].mxu0
        %v2546 = vadd.f32 %v2370, %v2545
        %v2547 = vpop.f32.mrb[0].mxu0
        %2548 = vdwg.mxu0
        %2549 = vmax.xlane.f32.xlu0 %v2487
        %v2550 = vpop.xlane.xlu0 %2549
        %2551 = vmax.xlane.f32.xlu0 %v2490
        %v2552 = vpop.xlane.xlu0 %2551
        %2553 = vmax.xlane.f32.xlu0 %v2495
        %v2554 = vpop.xlane.xlu0 %2553
        %2555 = vmax.xlane.f32.xlu0 %v2498
        %v2556 = vpop.xlane.xlu0 %2555
        %2557 = vmax.xlane.f32.xlu0 %v2503
        %v2558 = vpop.xlane.xlu0 %2557
        %2559 = vmax.xlane.f32.xlu0 %v2506
        %v2560 = vpop.xlane.xlu0 %2559
        %2561 = vmax.xlane.f32.xlu0 %v2511
        %v2562 = vpop.xlane.xlu0 %2561
        %2563 = vmax.xlane.f32.xlu0 %v2514
        %v2564 = vpop.xlane.xlu0 %2563
        %2565 = vmax.xlane.f32.xlu0 %v2519
        %v2566 = vpop.xlane.xlu0 %2565
        %2567 = vmax.xlane.f32.xlu0 %v2522
        %v2568 = vpop.xlane.xlu0 %2567
        %2569 = vmax.xlane.f32.xlu0 %v2527
        %v2570 = vpop.xlane.xlu0 %2569
        %2571 = vmax.xlane.f32.xlu0 %v2530
        %v2572 = vpop.xlane.xlu0 %2571
        %2573 = vmax.xlane.f32.xlu0 %v2535
        %v2574 = vpop.xlane.xlu0 %2573
        %2575 = vmax.xlane.f32.xlu0 %v2538
        %v2576 = vpop.xlane.xlu0 %2575
        %2577 = vmax.xlane.f32.xlu0 %v2543
        %v2578 = vpop.xlane.xlu0 %2577
        %2579 = vmax.xlane.f32.xlu0 %v2546
        %v2580 = vpop.xlane.xlu0 %2579
        %v2581 = vsub.f32 %v2487, %v2550
        %v2582 = vsub.f32 %v2490, %v2552
        %v2583 = vsub.f32 %v2495, %v2554
        %v2584 = vsub.f32 %v2498, %v2556
        %v2585 = vsub.f32 %v2503, %v2558
        %v2586 = vsub.f32 %v2506, %v2560
        %v2587 = vsub.f32 %v2511, %v2562
        %v2588 = vsub.f32 %v2514, %v2564
        %v2589 = vsub.f32 %v2519, %v2566
        %v2590 = vsub.f32 %v2522, %v2568
        %v2591 = vsub.f32 %v2527, %v2570
        %v2592 = vsub.f32 %v2530, %v2572
        %v2593 = vsub.f32 %v2535, %v2574
        %v2594 = vsub.f32 %v2538, %v2576
        %v2595 = vsub.f32 %v2543, %v2578
        %v2596 = vsub.f32 %v2546, %v2580
        %v2597 = vmul.f32 %v2581, 1.442695
        %v2598 = vpow.pop %v2597
        %v2599 = vmul.f32 %v2582, 1.442695
        %v2600 = vpow.pop %v2599
        %v2601 = vmul.f32 %v2583, 1.442695
        %v2602 = vpow.pop %v2601
        %v2603 = vmul.f32 %v2584, 1.442695
        %v2604 = vpow.pop %v2603
        %v2605 = vmul.f32 %v2585, 1.442695
        %v2606 = vpow.pop %v2605
        %v2607 = vmul.f32 %v2586, 1.442695
        %v2608 = vpow.pop %v2607
        %v2609 = vmul.f32 %v2587, 1.442695
        %v2610 = vpow.pop %v2609
        %v2611 = vmul.f32 %v2588, 1.442695
        %v2612 = vpow.pop %v2611
        %v2613 = vmul.f32 %v2589, 1.442695
        %v2614 = vpow.pop %v2613
        %v2615 = vmul.f32 %v2590, 1.442695
        %v2616 = vpow.pop %v2615
        %v2617 = vmul.f32 %v2591, 1.442695
        %v2618 = vpow.pop %v2617
        %v2619 = vmul.f32 %v2592, 1.442695
        %v2620 = vpow.pop %v2619
        %v2621 = vmul.f32 %v2593, 1.442695
        %v2622 = vpow.pop %v2621
        %v2623 = vmul.f32 %v2594, 1.442695
        %v2624 = vpow.pop %v2623
        %v2625 = vmul.f32 %v2595, 1.442695
        %v2626 = vpow.pop %v2625
        %v2627 = vmul.f32 %v2596, 1.442695
        %v2628 = vpow.pop %v2627
        %2629 = vadd.xlane.f32.xlu0 %v2598
        %v2630 = vpop.xlane.xlu0 %2629
        %2631 = vadd.xlane.f32.xlu0 %v2600
        %v2632 = vpop.xlane.xlu0 %2631
        %2633 = vadd.xlane.f32.xlu0 %v2602
        %v2634 = vpop.xlane.xlu0 %2633
        %2635 = vadd.xlane.f32.xlu0 %v2604
        %v2636 = vpop.xlane.xlu0 %2635
        %2637 = vadd.xlane.f32.xlu0 %v2606
        %v2638 = vpop.xlane.xlu0 %2637
        %2639 = vadd.xlane.f32.xlu0 %v2608
        %v2640 = vpop.xlane.xlu0 %2639
        %2641 = vadd.xlane.f32.xlu0 %v2610
        %v2642 = vpop.xlane.xlu0 %2641
        %2643 = vadd.xlane.f32.xlu0 %v2612
        %v2644 = vpop.xlane.xlu0 %2643
        %2645 = vadd.xlane.f32.xlu0 %v2614
        %v2646 = vpop.xlane.xlu0 %2645
        %2647 = vadd.xlane.f32.xlu0 %v2616
        %v2648 = vpop.xlane.xlu0 %2647
        %2649 = vadd.xlane.f32.xlu0 %v2618
        %v2650 = vpop.xlane.xlu0 %2649
        %2651 = vadd.xlane.f32.xlu0 %v2620
        %v2652 = vpop.xlane.xlu0 %2651
        %2653 = vadd.xlane.f32.xlu0 %v2622
        %v2654 = vpop.xlane.xlu0 %2653
        %2655 = vadd.xlane.f32.xlu0 %v2624
        %v2656 = vpop.xlane.xlu0 %2655
        %2657 = vadd.xlane.f32.xlu0 %v2626
        %v2658 = vpop.xlane.xlu0 %2657
        %2659 = vadd.xlane.f32.xlu0 %v2628
        %v2660 = vpop.xlane.xlu0 %2659
        %v2661 = vrcp.pop %v2630
        %v2662 = vrcp.pop %v2632
        %v2663 = vrcp.pop %v2634
        %v2664 = vrcp.pop %v2636
        %v2665 = vrcp.pop %v2638
        %v2666 = vrcp.pop %v2640
        %v2667 = vrcp.pop %v2642
        %v2668 = vrcp.pop %v2644
        %v2669 = vrcp.pop %v2646
        %v2670 = vrcp.pop %v2648
        %v2671 = vrcp.pop %v2650
        %v2672 = vrcp.pop %v2652
        %v2673 = vrcp.pop %v2654
        %v2674 = vrcp.pop %v2656
        %v2675 = vrcp.pop %v2658
        %v2676 = vrcp.pop %v2660
        %v2677 = vmul.f32 %v2598, %v2661
        %v2678 = vmul.f32 %v2600, %v2662
        %v2679 = vmul.f32 %v2602, %v2663
        %v2680 = vmul.f32 %v2604, %v2664
        %v2681 = vmul.f32 %v2606, %v2665
        %v2682 = vmul.f32 %v2608, %v2666
        %v2683 = vmul.f32 %v2610, %v2667
        %v2684 = vmul.f32 %v2612, %v2668
        %v2685 = vmul.f32 %v2614, %v2669
        %v2686 = vmul.f32 %v2616, %v2670
        %v2687 = vmul.f32 %v2618, %v2671
        %v2688 = vmul.f32 %v2620, %v2672
        %v2689 = vmul.f32 %v2622, %v2673
        %v2690 = vmul.f32 %v2624, %v2674
        %v2691 = vmul.f32 %v2626, %v2675
        %v2692 = vmul.f32 %v2628, %v2676
        %v2693 = vpack.c.bf16 %v2678, %v2677
        %v2694 = vpack.c.bf16 %v2680, %v2679
        %v2695 = vpack.c.bf16 %v2682, %v2681
        %v2696 = vpack.c.bf16 %v2684, %v2683
        %v2697 = vpack.c.bf16 %v2686, %v2685
        %v2698 = vpack.c.bf16 %v2688, %v2687
        %v2699 = vpack.c.bf16 %v2690, %v2689
        %v2700 = vpack.c.bf16 %v2692, %v2691
        %v2709 = vunpack.c.l.b16 %v2693
        %v2710 = vunpack.c.h.b16 %v2693
        %v2711 = vunpack.c.l.b16 %v2694
        %v2712 = vunpack.c.h.b16 %v2694
        %v2713 = vunpack.c.l.b16 %v2695
        %v2714 = vunpack.c.h.b16 %v2695
        %v2715 = vunpack.c.l.b16 %v2696
        %v2716 = vunpack.c.h.b16 %v2696
        %v2717 = vunpack.c.l.b16 %v2697
        %v2718 = vunpack.c.h.b16 %v2697
        %v2719 = vunpack.c.l.b16 %v2698
        %v2720 = vunpack.c.h.b16 %v2698
        %v2721 = vunpack.c.l.b16 %v2699
        %v2722 = vunpack.c.h.b16 %v2699
        %v2723 = vunpack.c.l.b16 %v2700
        %v2724 = vunpack.c.h.b16 %v2700
        %v2725 = vpack.c.b16 %v2709, %v2709
        %v2726 = vpack.c.b16 %v2710, %v2710
        %v2727 = vpack.c.b16 %v2711, %v2711
        %v2728 = vpack.c.b16 %v2712, %v2712
        %v2729 = vpack.c.b16 %v2713, %v2713
        %v2730 = vpack.c.b16 %v2714, %v2714
        %v2731 = vpack.c.b16 %v2715, %v2715
        %v2732 = vpack.c.b16 %v2716, %v2716
        %v2733 = vpack.c.b16 %v2717, %v2717
        %v2734 = vpack.c.b16 %v2718, %v2718
        %v2735 = vpack.c.b16 %v2719, %v2719
        %v2736 = vpack.c.b16 %v2720, %v2720
        %v2737 = vpack.c.b16 %v2721, %v2721
        %v2738 = vpack.c.b16 %v2722, %v2722
        %v2739 = vpack.c.b16 %v2723, %v2723
        %v2740 = vpack.c.b16 %v2724, %v2724
        %s2757 = scalar_lea.vmem %s306, 192 [#allocation2]
        %2758 = vst [vmem:[%s2757] sm:$0xf] %v2725
        %2759 = vst [vmem:[%s2757 + $0x4] sm:$0xf] %v2726
        %2760 = vst [vmem:[%s2757 + $0x8] sm:$0xf] %v2727
        %2761 = vst [vmem:[%s2757 + $0xc] sm:$0xf] %v2728
        %2762 = vst [vmem:[%s2757 + $0x10] sm:$0xf] %v2729
        %2763 = vst [vmem:[%s2757 + $0x14] sm:$0xf] %v2730
        %2764 = vst [vmem:[%s2757 + $0x18] sm:$0xf] %v2731
        %2765 = vst [vmem:[%s2757 + $0x1c] sm:$0xf] %v2732
        %2766 = vst [vmem:[%s2757 + $0x20] sm:$0xf] %v2733
        %2767 = vst [vmem:[%s2757 + $0x24] sm:$0xf] %v2734
        %2768 = vst [vmem:[%s2757 + $0x28] sm:$0xf] %v2735
        %2769 = vst [vmem:[%s2757 + $0x2c] sm:$0xf] %v2736
        %2770 = vst [vmem:[%s2757 + $0x30] sm:$0xf] %v2737
        %2771 = vst [vmem:[%s2757 + $0x34] sm:$0xf] %v2738
        %2772 = vst [vmem:[%s2757 + $0x38] sm:$0xf] %v2739
        %2773 = vst [vmem:[%s2757 + $0x3c] sm:$0xf] %v2740
        %2774 = vrot.lane.b32.xlu0 %v767, 80
        %v2775 = vpop.permute.xlu0 %2774
        %2776 = vrot.lane.b32.xlu0 %v768, 80
        %v2777 = vpop.permute.xlu0 %2776
        %2778 = vrot.lane.b32.xlu0 %v769, 80
        %v2779 = vpop.permute.xlu0 %2778
        %2780 = vrot.lane.b32.xlu0 %v770, 80
        %v2781 = vpop.permute.xlu0 %2780
        %2782 = vrot.lane.b32.xlu0 %v771, 80
        %v2783 = vpop.permute.xlu0 %2782
        %2784 = vrot.lane.b32.xlu0 %v772, 80
        %v2785 = vpop.permute.xlu0 %2784
        %2786 = vrot.lane.b32.xlu0 %v773, 80
        %v2787 = vpop.permute.xlu0 %2786
        %2788 = vrot.lane.b32.xlu0 %v774, 80
        %v2789 = vpop.permute.xlu0 %2788
        %2798 = vmatprep.subr.bf16.mxu0 0
        %2799 = vmatpush1.bf16.msra.mxu0 %v2775
        %2800 = vmatprep.subr.bf16.mxu0 0
        %2801 = vmatpush1.bf16.msra.mxu0 %v2777
        %2802 = vmatprep.subr.bf16.mxu0 0
        %2803 = vmatpush1.bf16.msra.mxu0 %v2779
        %2804 = vmatprep.subr.bf16.mxu0 0
        %2805 = vmatpush1.bf16.msra.mxu0 %v2781
        %2806 = vmatprep.subr.bf16.mxu0 0
        %2807 = vmatpush1.bf16.msra.mxu0 %v2783
        %2808 = vmatprep.subr.bf16.mxu0 0
        %2809 = vmatpush1.bf16.msra.mxu0 %v2785
        %2810 = vmatprep.subr.bf16.mxu0 0
        %2811 = vmatpush1.bf16.msra.mxu0 %v2787
        %2812 = vmatprep.subr.bf16.mxu0 0
        %2813 = vmatpush1.bf16.msra.mxu0 %v2789
        %2814 = vmatprep.subr.bf16.mxu0 0
        %2815 = vmatpush1.bf16.msra.mxu0 0
        %2816 = vmatprep.subr.bf16.mxu0 0
        %2817 = vmatpush1.bf16.msra.mxu0 0
        %2818 = vmatprep.subr.bf16.mxu0 0
        %2819 = vmatpush1.bf16.msra.mxu0 0
        %2820 = vmatprep.subr.bf16.mxu0 0
        %2821 = vmatpush1.bf16.msra.mxu0 0
        %2822 = vmatprep.subr.bf16.mxu0 0
        %2823 = vmatpush1.bf16.msra.mxu0 0
        %2824 = vmatprep.subr.bf16.mxu0 0
        %2825 = vmatpush1.bf16.msra.mxu0 0
        %2826 = vmatprep.subr.bf16.mxu0 0
        %2827 = vmatpush1.bf16.msra.mxu0 0
        %2828 = vmatprep.subr.bf16.mxu0 0
        %2829 = vmatpush1.bf16.msra.mxu0 0
        %2830 = vmatprep.mubr.bf16.mxu0 0
        %2831 = vmatmul.mubr.bf16.gmra.mrb[0].mxu0 %v2693
        %v2832 = vpop.f32.mrb[0].mxu0
        %v2833 = vadd.f32 0.0, %v2832
        %v2834 = vpop.f32.mrb[0].mxu0
        %v2835 = vpop.f32.mrb[0].mxu0
        %v2836 = vadd.f32 0.0, %v2835
        %v2837 = vpop.f32.mrb[0].mxu0
        %2838 = vmatprep.mubr.bf16.mxu0 0
        %2839 = vmatmul.mubr.bf16.gmra.mrb[0].mxu0 %v2694
        %v2840 = vpop.f32.mrb[0].mxu0
        %v2841 = vadd.f32 0.0, %v2840
        %v2842 = vpop.f32.mrb[0].mxu0
        %v2843 = vpop.f32.mrb[0].mxu0
        %v2844 = vadd.f32 0.0, %v2843
        %v2845 = vpop.f32.mrb[0].mxu0
        %2846 = vmatprep.mubr.bf16.mxu0 0
        %2847 = vmatmul.mubr.bf16.gmra.mrb[0].mxu0 %v2695
        %v2848 = vpop.f32.mrb[0].mxu0
        %v2849 = vadd.f32 0.0, %v2848
        %v2850 = vpop.f32.mrb[0].mxu0
        %v2851 = vpop.f32.mrb[0].mxu0
        %v2852 = vadd.f32 0.0, %v2851
        %v2853 = vpop.f32.mrb[0].mxu0
        %2854 = vmatprep.mubr.bf16.mxu0 0
        %2855 = vmatmul.mubr.bf16.gmra.mrb[0].mxu0 %v2696
        %v2856 = vpop.f32.mrb[0].mxu0
        %v2857 = vadd.f32 0.0, %v2856
        %v2858 = vpop.f32.mrb[0].mxu0
        %v2859 = vpop.f32.mrb[0].mxu0
        %v2860 = vadd.f32 0.0, %v2859
        %v2861 = vpop.f32.mrb[0].mxu0
        %2862 = vmatprep.mubr.bf16.mxu0 0
        %2863 = vmatmul.mubr.bf16.gmra.mrb[0].mxu0 %v2697
        %v2864 = vpop.f32.mrb[0].mxu0
        %v2865 = vadd.f32 0.0, %v2864
        %v2866 = vpop.f32.mrb[0].mxu0
        %v2867 = vpop.f32.mrb[0].mxu0
        %v2868 = vadd.f32 0.0, %v2867
        %v2869 = vpop.f32.mrb[0].mxu0
        %2870 = vmatprep.mubr.bf16.mxu0 0
        %2871 = vmatmul.mubr.bf16.gmra.mrb[0].mxu0 %v2698
        %v2872 = vpop.f32.mrb[0].mxu0
        %v2873 = vadd.f32 0.0, %v2872
        %v2874 = vpop.f32.mrb[0].mxu0
        %v2875 = vpop.f32.mrb[0].mxu0
        %v2876 = vadd.f32 0.0, %v2875
        %v2877 = vpop.f32.mrb[0].mxu0
        %2878 = vmatprep.mubr.bf16.mxu0 0
        %2879 = vmatmul.mubr.bf16.gmra.mrb[0].mxu0 %v2699
        %v2880 = vpop.f32.mrb[0].mxu0
        %v2881 = vadd.f32 0.0, %v2880
        %v2882 = vpop.f32.mrb[0].mxu0
        %v2883 = vpop.f32.mrb[0].mxu0
        %v2884 = vadd.f32 0.0, %v2883
        %v2885 = vpop.f32.mrb[0].mxu0
        %2886 = vmatprep.mubr.bf16.mxu0 0
        %2887 = vmatmul.mubr.bf16.gmra.mrb[0].mxu0 %v2700
        %v2888 = vpop.f32.mrb[0].mxu0
        %v2889 = vadd.f32 0.0, %v2888
        %v2890 = vpop.f32.mrb[0].mxu0
        %v2891 = vpop.f32.mrb[0].mxu0
        %v2892 = vadd.f32 0.0, %v2891
        %v2893 = vpop.f32.mrb[0].mxu0
        %2894 = vdwg.mxu0
        %v2895 = vpack.c.bf16 %v2836, %v2833
        %v2896 = vpack.c.bf16 %v2844, %v2841
        %v2897 = vpack.c.bf16 %v2852, %v2849
        %v2898 = vpack.c.bf16 %v2860, %v2857
        %v2899 = vpack.c.bf16 %v2868, %v2865
        %v2900 = vpack.c.bf16 %v2876, %v2873
        %v2901 = vpack.c.bf16 %v2884, %v2881
        %v2902 = vpack.c.bf16 %v2892, %v2889
        %2911 = vrot.lane.b32.xlu0 %v1819, 16
        %v2912 = vpop.permute.xlu0 %2911
        %2913 = vrot.lane.b32.xlu0 %v1820, 16
        %v2914 = vpop.permute.xlu0 %2913
        %2915 = vrot.lane.b32.xlu0 %v1821, 16
        %v2916 = vpop.permute.xlu0 %2915
        %2917 = vrot.lane.b32.xlu0 %v1822, 16
        %v2918 = vpop.permute.xlu0 %2917
        %2919 = vrot.lane.b32.xlu0 %v1823, 16
        %v2920 = vpop.permute.xlu0 %2919
        %2921 = vrot.lane.b32.xlu0 %v1824, 16
        %v2922 = vpop.permute.xlu0 %2921
        %2923 = vrot.lane.b32.xlu0 %v1825, 16
        %v2924 = vpop.permute.xlu0 %2923
        %2925 = vrot.lane.b32.xlu0 %v1826, 16
        %v2926 = vpop.permute.xlu0 %2925
        %2935 = vrot.lane.b32.xlu0 %v2357, 32
        %v2936 = vpop.permute.xlu0 %2935
        %2937 = vrot.lane.b32.xlu0 %v2358, 32
        %v2938 = vpop.permute.xlu0 %2937
        %2939 = vrot.lane.b32.xlu0 %v2359, 32
        %v2940 = vpop.permute.xlu0 %2939
        %2941 = vrot.lane.b32.xlu0 %v2360, 32
        %v2942 = vpop.permute.xlu0 %2941
        %2943 = vrot.lane.b32.xlu0 %v2361, 32
        %v2944 = vpop.permute.xlu0 %2943
        %2945 = vrot.lane.b32.xlu0 %v2362, 32
        %v2946 = vpop.permute.xlu0 %2945
        %2947 = vrot.lane.b32.xlu0 %v2363, 32
        %v2948 = vpop.permute.xlu0 %2947
        %2949 = vrot.lane.b32.xlu0 %v2364, 32
        %v2950 = vpop.permute.xlu0 %2949
        %2959 = vrot.lane.b32.xlu0 %v2895, 48
        %v2960 = vpop.permute.xlu0 %2959
        %2961 = vrot.lane.b32.xlu0 %v2896, 48
        %v2962 = vpop.permute.xlu0 %2961
        %2963 = vrot.lane.b32.xlu0 %v2897, 48
        %v2964 = vpop.permute.xlu0 %2963
        %2965 = vrot.lane.b32.xlu0 %v2898, 48
        %v2966 = vpop.permute.xlu0 %2965
        %2967 = vrot.lane.b32.xlu0 %v2899, 48
        %v2968 = vpop.permute.xlu0 %2967
        %2969 = vrot.lane.b32.xlu0 %v2900, 48
        %v2970 = vpop.permute.xlu0 %2969
        %2971 = vrot.lane.b32.xlu0 %v2901, 48
        %v2972 = vpop.permute.xlu0 %2971
        %2973 = vrot.lane.b32.xlu0 %v2902, 48
        %v2974 = vpop.permute.xlu0 %2973
        %v2977 = vsel %vm806, %v1273, %v2912
        %v2980 = vsel %vm806, %v1274, %v2914
        %v2983 = vsel %vm806, %v1275, %v2916
        %v2986 = vsel %vm806, %v1276, %v2918
        %v2989 = vsel %vm806, %v1277, %v2920
        %v2992 = vsel %vm806, %v1278, %v2922
        %v2995 = vsel %vm806, %v1279, %v2924
        %v2998 = vsel %vm806, %v1280, %v2926
        %v3000 = vsel %vm334, %v2977, %v2936
        %v3002 = vsel %vm334, %v2980, %v2938
        %v3004 = vsel %vm334, %v2983, %v2940
        %v3006 = vsel %vm334, %v2986, %v2942
        %v3008 = vsel %vm334, %v2989, %v2944
        %v3010 = vsel %vm334, %v2992, %v2946
        %v3012 = vsel %vm334, %v2995, %v2948
        %v3014 = vsel %vm334, %v2998, %v2950
        %vm3015 = vcmask 392192
        %v3017 = vsel %vm3015, %v3000, %v2960
        %v3019 = vsel %vm3015, %v3002, %v2962
        %v3021 = vsel %vm3015, %v3004, %v2964
        %v3023 = vsel %vm3015, %v3006, %v2966
        %v3025 = vsel %vm3015, %v3008, %v2968
        %v3027 = vsel %vm3015, %v3010, %v2970
        %v3029 = vsel %vm3015, %v3012, %v2972
        %v3031 = vsel %vm3015, %v3014, %v2974
        %v3032 = vld [vmem:[%s4] sm:$0xf]
        %v3033 = vld [vmem:[%s4 + $0x4] sm:$0xf]
        %v3034 = vld [vmem:[%s4 + $0x8] sm:$0xf]
        %v3035 = vld [vmem:[%s4 + $0xc] sm:$0xf]
        %v3036 = vld [vmem:[%s4 + $0x10] sm:$0xf]
        %v3037 = vld [vmem:[%s4 + $0x14] sm:$0xf]
        %v3038 = vld [vmem:[%s4 + $0x18] sm:$0xf]
        %v3039 = vld [vmem:[%s4 + $0x1c] sm:$0xf]
        %v3040 = vld [vmem:[%s5] sm:$0x1]
        %v3042 = vlaneseq
        %v3043 = vshrl.u32 %v3042, 7
        %v3044 = vsub.s32 0, %v3043
        %v3045 = vrot.slane %v3040, %v3044
        %v3055 = vunpack.c.l.b16 %v3032
        %v3056 = vunpack.c.l.b16 %v3033
        %v3057 = vunpack.c.l.b16 %v3034
        %v3058 = vunpack.c.l.b16 %v3035
        %v3059 = vunpack.c.l.b16 %v3036
        %v3060 = vunpack.c.l.b16 %v3037
        %v3061 = vunpack.c.l.b16 %v3038
        %v3062 = vunpack.c.l.b16 %v3039
        %v3063 = vpack.c.b16 %v3056, %v3055
        %v3064 = vpack.c.b16 %v3058, %v3057
        %v3065 = vpack.c.b16 %v3060, %v3059
        %v3066 = vpack.c.b16 %v3062, %v3061
        %vm3071 = vcmask 523264
        %v3072 = vsel %vm3071, %v3017, 0
        %v3074 = vsel %vm3071, %v3019, 0
        %v3076 = vsel %vm3071, %v3021, 0
        %v3078 = vsel %vm3071, %v3023, 0
        %v3080 = vsel %vm3071, %v3025, 0
        %v3082 = vsel %vm3071, %v3027, 0
        %v3084 = vsel %vm3071, %v3029, 0
        %v3086 = vsel %vm3071, %v3031, 0
        %3088 = vmatprep.subr.bf16.mxu0 0
        %3089 = vmatpush1.bf16.msra.mxu0 %v3063
        %3090 = vmatprep.subr.bf16.mxu0 0
        %3091 = vmatpush1.bf16.msra.mxu0 %v3064
        %3092 = vmatprep.subr.bf16.mxu0 0
        %3093 = vmatpush1.bf16.msra.mxu0 %v3065
        %3094 = vmatprep.subr.bf16.mxu0 0
        %3095 = vmatpush1.bf16.msra.mxu0 %v3066
        %3096 = vmatprep.subr.bf16.mxu0 0
        %3097 = vmatpush1.bf16.msra.mxu0 0
        %3098 = vmatprep.subr.bf16.mxu0 0
        %3099 = vmatpush1.bf16.msra.mxu0 0
        %3100 = vmatprep.subr.bf16.mxu0 0
        %3101 = vmatpush1.bf16.msra.mxu0 0
        %3102 = vmatprep.subr.bf16.mxu0 0
        %3103 = vmatpush1.bf16.msra.mxu0 0
        %3104 = vmatprep.subr.bf16.mxu0 0
        %3105 = vmatpush1.bf16.msra.mxu0 0
        %3106 = vmatprep.subr.bf16.mxu0 0
        %3107 = vmatpush1.bf16.msra.mxu0 0
        %3108 = vmatprep.subr.bf16.mxu0 0
        %3109 = vmatpush1.bf16.msra.mxu0 0
        %3110 = vmatprep.subr.bf16.mxu0 0
        %3111 = vmatpush1.bf16.msra.mxu0 0
        %3112 = vmatprep.subr.bf16.mxu0 0
        %3113 = vmatpush1.bf16.msra.mxu0 0
        %3114 = vmatprep.subr.bf16.mxu0 0
        %3115 = vmatpush1.bf16.msra.mxu0 0
        %3116 = vmatprep.subr.bf16.mxu0 0
        %3117 = vmatpush1.bf16.msra.mxu0 0
        %3118 = vmatprep.subr.bf16.mxu0 0
        %3119 = vmatpush1.bf16.msra.mxu0 0
        %3120 = vmatprep.mubr.bf16.mxu0 0
        %3121 = vmatmul.mubr.bf16.gmra.mrb[0].mxu0 %v3072
        %v3122 = vpop.f32.mrb[0].mxu0
        %v3123 = vadd.f32 %v3045, %v3122
        %v3124 = vpop.f32.mrb[0].mxu0
        %v3125 = vpop.f32.mrb[0].mxu0
        %v3126 = vadd.f32 %v3045, %v3125
        %v3127 = vpop.f32.mrb[0].mxu0
        %3128 = vmatprep.mubr.bf16.mxu0 0
        %3129 = vmatmul.mubr.bf16.gmra.mrb[0].mxu0 %v3074
        %v3130 = vpop.f32.mrb[0].mxu0
        %v3131 = vadd.f32 %v3045, %v3130
        %v3132 = vpop.f32.mrb[0].mxu0
        %v3133 = vpop.f32.mrb[0].mxu0
        %v3134 = vadd.f32 %v3045, %v3133
        %v3135 = vpop.f32.mrb[0].mxu0
        %3136 = vmatprep.mubr.bf16.mxu0 0
        %3137 = vmatmul.mubr.bf16.gmra.mrb[0].mxu0 %v3076
        %v3138 = vpop.f32.mrb[0].mxu0
        %v3139 = vadd.f32 %v3045, %v3138
        %v3140 = vpop.f32.mrb[0].mxu0
        %v3141 = vpop.f32.mrb[0].mxu0
        %v3142 = vadd.f32 %v3045, %v3141
        %v3143 = vpop.f32.mrb[0].mxu0
        %3144 = vmatprep.mubr.bf16.mxu0 0
        %3145 = vmatmul.mubr.bf16.gmra.mrb[0].mxu0 %v3078
        %v3146 = vpop.f32.mrb[0].mxu0
        %v3147 = vadd.f32 %v3045, %v3146
        %v3148 = vpop.f32.mrb[0].mxu0
        %v3149 = vpop.f32.mrb[0].mxu0
        %v3150 = vadd.f32 %v3045, %v3149
        %v3151 = vpop.f32.mrb[0].mxu0
        %3152 = vmatprep.mubr.bf16.mxu0 0
        %3153 = vmatmul.mubr.bf16.gmra.mrb[0].mxu0 %v3080
        %v3154 = vpop.f32.mrb[0].mxu0
        %v3155 = vadd.f32 %v3045, %v3154
        %v3156 = vpop.f32.mrb[0].mxu0
        %v3157 = vpop.f32.mrb[0].mxu0
        %v3158 = vadd.f32 %v3045, %v3157
        %v3159 = vpop.f32.mrb[0].mxu0
        %3160 = vmatprep.mubr.bf16.mxu0 0
        %3161 = vmatmul.mubr.bf16.gmra.mrb[0].mxu0 %v3082
        %v3162 = vpop.f32.mrb[0].mxu0
        %v3163 = vadd.f32 %v3045, %v3162
        %v3164 = vpop.f32.mrb[0].mxu0
        %v3165 = vpop.f32.mrb[0].mxu0
        %v3166 = vadd.f32 %v3045, %v3165
        %v3167 = vpop.f32.mrb[0].mxu0
        %3168 = vmatprep.mubr.bf16.mxu0 0
        %3169 = vmatmul.mubr.bf16.gmra.mrb[0].mxu0 %v3084
        %v3170 = vpop.f32.mrb[0].mxu0
        %v3171 = vadd.f32 %v3045, %v3170
        %v3172 = vpop.f32.mrb[0].mxu0
        %v3173 = vpop.f32.mrb[0].mxu0
        %v3174 = vadd.f32 %v3045, %v3173
        %v3175 = vpop.f32.mrb[0].mxu0
        %3176 = vmatprep.mubr.bf16.mxu0 0
        %3177 = vmatmul.mubr.bf16.gmra.mrb[0].mxu0 %v3086
        %v3178 = vpop.f32.mrb[0].mxu0
        %v3179 = vadd.f32 %v3045, %v3178
        %v3180 = vpop.f32.mrb[0].mxu0
        %v3181 = vpop.f32.mrb[0].mxu0
        %v3182 = vadd.f32 %v3045, %v3181
        %v3183 = vpop.f32.mrb[0].mxu0
        %3184 = vdwg.mxu0
        %3185 = vst.msk [vmem:[%s316] sm:$0xff] %vm334, %v3123
        %3186 = vst.msk [vmem:[%s316 + $0x8] sm:$0xff] %vm334, %v3126
        %3187 = vst.msk [vmem:[%s316 + $0x10] sm:$0xff] %vm334, %v3131
        %3188 = vst.msk [vmem:[%s316 + $0x18] sm:$0xff] %vm334, %v3134
        %3189 = vst.msk [vmem:[%s316 + $0x20] sm:$0xff] %vm334, %v3139
        %3190 = vst.msk [vmem:[%s316 + $0x28] sm:$0xff] %vm334, %v3142
        %3191 = vst.msk [vmem:[%s316 + $0x30] sm:$0xff] %vm334, %v3147
        %3192 = vst.msk [vmem:[%s316 + $0x38] sm:$0xff] %vm334, %v3150
        %3193 = vst.msk [vmem:[%s316 + $0x40] sm:$0xff] %vm334, %v3155
        %3194 = vst.msk [vmem:[%s316 + $0x48] sm:$0xff] %vm334, %v3158
        %3195 = vst.msk [vmem:[%s316 + $0x50] sm:$0xff] %vm334, %v3163
        %3196 = vst.msk [vmem:[%s316 + $0x58] sm:$0xff] %vm334, %v3166
        %3197 = vst.msk [vmem:[%s316 + $0x60] sm:$0xff] %vm334, %v3171
        %3198 = vst.msk [vmem:[%s316 + $0x68] sm:$0xff] %vm334, %v3174
        %3199 = vst.msk [vmem:[%s316 + $0x70] sm:$0xff] %vm334, %v3179
        %3200 = vst.msk [vmem:[%s316 + $0x78] sm:$0xff] %vm334, %v3182
        %p3201 = scmp.lt.s32.totalorder %s23, 1
        %s3202 = scalar_select %p3201, %s23, 1
        %s3203 = smul.addr %s3202, 16
        %s3204 = smul.addr %s3203, 8
        %s3205 = scalar_lea.vmem %s7, %s3204
        %s3206 = sand.u32 %s209, 1
        %s3207 = scalar_lea.sflag [#allocation3], %s3206
        %s3208 = sand.u32 %s209, 1
        %s3209 = smul.addr %s3208, 256
        %s3210 = scalar_lea.vmem [#allocation2], %s3209
        // Predicated region
        $region49: #{tpu_custom_call.1} parent=47 // pred_check
          %p3211 = pneg %p193
        $region50: #{tpu_custom_call.1} parent=47 // pred_check_branch
          %3213 = sbr.rel (%p3211) target = $region52
        $region51: #{tpu_custom_call.1} parent=47 // pred_region
          _
        $region52: #{tpu_custom_call.1} parent=47 // pred_fallthru
          _
        // Predicated region
        $region53: #{tpu_custom_call.1} parent=47 // pred_check
          %p3214 = pneg %p219
        $region54: #{tpu_custom_call.1} parent=47 // pred_check_branch
          %3216 = sbr.rel (%p3214) target = $region56
        $region55: #{tpu_custom_call.1} parent=47 // pred_region
          %s3218 = ssub.s32 4096, 4096
          %3219 = vsyncadd %s3207, %s3218
          %s3220 = smul.addr %s23, 64
          %s3221 = smul.addr %s3220, 64
          %s3222 = scalar_lea.hbm %s8, %s3221
          %s3223 = sshll.u32 %s3210, 4
          %s3224 = int_to_ptr.vmem [resolvable:$true] %s3223
          %3229 = dma.vmem_to_hbm [thread:$0]  %s3224, 4096, %s3222, %s3207, 64, 64, 4
        $region56: #{tpu_custom_call.1} parent=47 // pred_fallthru
          _
      $region48: #{tpu_custom_call.1} parent=5 // pred_fallthru
        _
      %p3230 = scmp.le.s32.totalorder 2, %s18
      // Predicated region
      $region57: #{tpu_custom_call.1} parent=5 // pred_check
        %p3231 = pneg %p3230
      $region58: #{tpu_custom_call.1} parent=5 // pred_check_branch
        %3233 = sbr.rel (%p3231) target = $region60
      $region59: #{tpu_custom_call.1} parent=5 // pred_region
        %s3234 = ssub.s32 %s18, 2
        // Predicated region
        $region61: #{tpu_custom_call.1} parent=59 // pred_check
          %p3235 = pneg %p199
        $region62: #{tpu_custom_call.1} parent=59 // pred_check_branch
          %3237 = sbr.rel (%p3235) target = $region64
        $region63: #{tpu_custom_call.1} parent=59 // pred_region
          %p3238 = scmp.lt.s32.totalorder %s24, 1
          %s3239 = scalar_select %p3238, %s24, 1
          %s3240 = smul.addr %s3239, 16
          %s3241 = smul.addr %s3240, 8
          %s3242 = scalar_lea.vmem %s7, %s3241
        $region64: #{tpu_custom_call.1} parent=59 // pred_fallthru
          _
        // Predicated region
        $region65: #{tpu_custom_call.1} parent=59 // pred_check
          %p3243 = pneg %p225
        $region66: #{tpu_custom_call.1} parent=59 // pred_check_branch
          %3245 = sbr.rel (%p3243) target = $region68
        $region67: #{tpu_custom_call.1} parent=59 // pred_region
          %s3246 = sand.u32 %s210, 1
          %s3247 = scalar_lea.sflag [#allocation3], %s3246
          %s3248 = sand.u32 %s210, 1
          %s3249 = smul.addr %s3248, 256
          %s3250 = scalar_lea.vmem [#allocation2], %s3249
          %3251 = dma.done %s3247, 4096
        $region68: #{tpu_custom_call.1} parent=59 // pred_fallthru
          _
      $region60: #{tpu_custom_call.1} parent=5 // pred_fallthru
        _
    $region6: #{tpu_custom_call.1} parent=1 // loop_footer
      %s22 = sadd.s32 1, %s18
    $region7: #{tpu_custom_call.1} parent=1 // loop_footer_branch
      %17 = sbr.rel target = $region3
    $region8: #{tpu_custom_call.1} parent=1 // loop_exit
      _
    %3252 = vsyncpa [#allocation3], 1
    %s3253 = scalar_lea.sflag [#allocation3], 1
    %3254 = vsyncpa %s3253, 1

</llo_original>
